<compile_context>
chip_gen: v7x
topology: tpu7x:2x2x1
jax: 0.10.0
libtpu: 0.0.40
codegen_flags: <defaults>
</compile_context>

<pallas_src>
import functools

import jax
import jax.numpy as jnp
from jax import lax
from jax.experimental import pallas as pl
from jax.experimental.pallas import tpu as pltpu


def _ceil_to(v, m):
    return -(-int(v) // int(m)) * int(m)


# ---------------------------------------------------------------------------
# Pallas kernel: whole Net_DGM forward (input layer, 3 DGM layers, output layer)
# ---------------------------------------------------------------------------
def _make_net_dgm_kernel(dim_S, zgr_offs, h_offs, act_dtype):
    """Build the kernel body with the (static) lane-aligned column layout baked in."""

    def kernel(x_ref,        # (TB, dim_x)                 f32
               wx_ref,       # (dim_x, total_cols)         weight dtype (bf16)
               b_ref,        # (1, total_cols)             f32
               ws_zgr_ref,   # (3, dim_S, 3*dim_S)         weight dtype
               ws_h_ref,     # (3, dim_S, dim_S)           weight dtype
               w_out_ref,    # (1, dim_S)                  f32
               b_out_ref,    # (1, 1)                      f32
               out_ref):     # (1, 1, TB)                  f32  (lane-dense row)
        cdt = wx_ref.dtype                       # MXU operand dtype (bf16 or f32)

        # All x-side projections + biases, once per tile (x is loop-invariant).
        x = x_ref[...].astype(cdt)
        xproj = (jnp.dot(x, wx_ref[...], preferred_element_type=jnp.float32)
                 + b_ref[...])                   # (TB, total_cols), f32

        # input_layer: S1 = tanh(x @ W_in + b_in)   (lane-aligned columns [0, dim_S))
        S = jnp.tanh(xproj[:, :dim_S].astype(act_dtype)).astype(jnp.float32)

        # Three DGM layers, statically unrolled.
        for l in range(3):
            zo = zgr_offs[l]                     # 128-lane-aligned ZGR group offset
            ho = h_offs[l]                       # 128-lane-aligned H group offset

            # Fused Z/G/R: one (TB,dim_S)@(dim_S,3*dim_S) matmul + one packed tanh.
            zgr_pre = xproj[:, zo:zo + 3 * dim_S] + jnp.dot(
                S.astype(cdt), ws_zgr_ref[l], preferred_element_type=jnp.float32)
            zgr = jnp.tanh(zgr_pre.astype(act_dtype)).astype(jnp.float32)
            Z = zgr[:, :dim_S]
            G = zgr[:, dim_S:2 * dim_S]
            R = zgr[:, 2 * dim_S:3 * dim_S]

            # H gate: LHS is S*R, so it keeps its own matmul.
            h_pre = xproj[:, ho:ho + dim_S] + jnp.dot(
                (S * R).astype(cdt), ws_h_ref[l], preferred_element_type=jnp.float32)
            H = jnp.tanh(h_pre.astype(act_dtype)).astype(jnp.float32)

            # Recombination kept in f32 for accuracy margin.
            S = (1.0 - G) * H + Z * S

        # output_layer: Linear(dim_S, 1) as (1,dim_S) . (TB,dim_S)^T -> (1, TB),
        # which is already lane-dense for the store.
        row = lax.dot_general(w_out_ref[...], S, (((1,), (1,)), ((), ())),
                              preferred_element_type=jnp.float32)
        out_ref[0] = row + b_out_ref[...]

    return kernel


# ---------------------------------------------------------------------------
# Wrapper: batch grid, resident weights, lane-dense output, cost estimate
# ---------------------------------------------------------------------------
def net_dgm_forward(x, pp, *, tb=512, act_dtype=jnp.bfloat16):
    """Run Net_DGM forward via pallas_call over batch tiles of `tb` rows.

    act_dtype: jnp.bfloat16 for v6e/v7x (bf16 EUP tanh); use jnp.float32 on v5e.
    """
    B, dim_x = x.shape
    layout = pp["layout"]
    dim_S = layout["dim_S"]
    zgr_offs = layout["zgr_offs"]
    h_offs = layout["h_offs"]
    total_cols = pp["wx_all"].shape[1]

    # Tile sizing: multiple of 128 (lane-dense output), no gross over-padding of
    # small batches.
    tb = min(int(tb), _ceil_to(B, 128))
    tb = max(128, _ceil_to(tb, 128))
    n_tiles = pl.cdiv(B, tb)
    B_pad = n_tiles * tb
    if B_pad != B:
        x = jnp.pad(x, ((0, B_pad - B), (0, 0)))

    inputs = (x, pp["wx_all"], pp["b_all"], pp["ws_zgr"], pp["ws_h"],
              pp["w_out"], pp["b_out"])

    def resident(shape):
        nd = len(shape)
        return pl.BlockSpec(shape, lambda i, _nd=nd: (0,) * _nd)

    in_specs = [pl.BlockSpec((tb, dim_x), lambda i: (i, 0))]       # x: batch-tiled
    in_specs += [resident(a.shape) for a in inputs[1:]]            # weights: resident
    out_specs = pl.BlockSpec((1, 1, tb), lambda i: (i, 0, 0))      # lane-dense row

    kernel = _make_net_dgm_kernel(dim_S, zgr_offs, h_offs, act_dtype)

    cost = pl.CostEstimate(
        flops=2 * B_pad * (dim_x * total_cols + 12 * dim_S * dim_S + dim_S),
        transcendentals=13 * B_pad * dim_S,
        bytes_accessed=int(sum(int(a.size) * a.dtype.itemsize for a in inputs[1:])
                           + B_pad * dim_x * 4 + B_pad * 4),
    )

    out = pl.pallas_call(
        kernel,
        out_shape=jax.ShapeDtypeStruct((n_tiles, 1, tb), jnp.float32),
        grid=(n_tiles,),
        in_specs=in_specs,
        out_specs=out_specs,
        compiler_params=pltpu.CompilerParams(
            dimension_semantics=("parallel",),
            vmem_limit_bytes=48 * 1024 * 1024,     # safe on v7x (64 MiB physical)
        ),
        cost_estimate=cost,
    )(*inputs)
    # (n_tiles, 1, tb) row-major == (B_pad,) in original row order.
    return out.reshape(B_pad, 1)[:B]


# ---------------------------------------------------------------------------
# Deterministic parameter init (PyTorch nn.Linear-style uniform) + packing
# ---------------------------------------------------------------------------
def init_params(key, dim_x, dim_S):
    def linear(key, fan_in, fan_out):
        k1, k2 = jax.random.split(key)
        bound = 1.0 / (float(fan_in) ** 0.5)
        w = jax.random.uniform(k1, (fan_in, fan_out), jnp.float32, -bound, bound)
        b = jax.random.uniform(k2, (1, fan_out), jnp.float32, -bound, bound)
        return w, b

    keys = jax.random.split(key, 2 + 3 * 4)
    w_in, b_in = linear(keys[0], dim_x, dim_S)
    w_out, b_out = linear(keys[1], dim_S, 1)

    w_gates, b_gates = [], []
    ki = 2
    for _l in range(3):
        wl, bl = [], []
        for _g in range(4):                     # gate order: Z, G, R, H
            w, b = linear(keys[ki], dim_x + dim_S, dim_S)
            ki += 1
            wl.append(w)
            bl.append(b)
        w_gates.append(wl)
        b_gates.append(bl)

    return {"w_in": w_in, "b_in": b_in, "w": w_gates, "b": b_gates,
            "w_out": w_out, "b_out": b_out}


def pack_params(p, dim_x, dim_S, weight_dtype=jnp.bfloat16):
    """Repack raw Linear params into the fused, 128-lane-aligned kernel layout.

    Column layout of wx_all / b_all (each group zero-padded up to a 128 multiple):
        [ input(dim_S) | L0_ZGR(3*dim_S) | L0_H(dim_S) | L1_ZGR | L1_H | L2_ZGR | L2_H ]
    """
    LANE = 128
    gw_in = _ceil_to(dim_S, LANE)
    gw_zgr = _ceil_to(3 * dim_S, LANE)
    gw_h = _ceil_to(dim_S, LANE)

    zgr_offs, h_offs = [], []
    cur = gw_in
    for _l in range(3):
        zgr_offs.append(cur)
        cur += gw_zgr
        h_offs.append(cur)
        cur += gw_h
    total = cur

    wx = jnp.zeros((dim_x, total), jnp.float32)
    bb = jnp.zeros((1, total), jnp.float32)

    def put(wd, bd, off, w, b):
        wd = wd.at[:, off:off + w.shape[1]].set(w)
        bd = bd.at[:, off:off + b.shape[1]].set(b)
        return wd, bd

    wx, bb = put(wx, bb, 0, p["w_in"], p["b_in"])
    ws_zgr, ws_h = [], []
    for l in range(3):
        w_zgr_x = jnp.concatenate([p["w"][l][g][:dim_x] for g in range(3)], axis=1)
        b_zgr = jnp.concatenate([p["b"][l][g] for g in range(3)], axis=1)
        wx, bb = put(wx, bb, zgr_offs[l], w_zgr_x, b_zgr)
        wx, bb = put(wx, bb, h_offs[l], p["w"][l][3][:dim_x], p["b"][l][3])
        ws_zgr.append(jnp.concatenate([p["w"][l][g][dim_x:] for g in range(3)], axis=1))
        ws_h.append(p["w"][l][3][dim_x:])

    return {
        "wx_all": wx.astype(weight_dtype),                          # (dim_x, total)
        "b_all": bb,                                                # (1, total) f32
        "ws_zgr": jnp.stack(ws_zgr).astype(weight_dtype),           # (3, dim_S, 3*dim_S)
        "ws_h": jnp.stack(ws_h).astype(weight_dtype),               # (3, dim_S, dim_S)
        "w_out": p["w_out"].T.astype(jnp.float32),                  # (1, dim_S)
        "b_out": p["b_out"].astype(jnp.float32),                    # (1, 1)
        "layout": {"dim_S": dim_S,
                   "zgr_offs": tuple(zgr_offs),
                   "h_offs": tuple(h_offs)},
    }


# ---------------------------------------------------------------------------
# References
# ---------------------------------------------------------------------------
def net_dgm_reference_f32(x, p):
    """Pure-f32 JAX mirror of the PyTorch module (concat form)."""
    S = jnp.tanh(x @ p["w_in"] + p["b_in"])
    for l in range(3):
        xs = jnp.concatenate([x, S], axis=1)
        Z = jnp.tanh(xs @ p["w"][l][0] + p["b"][l][0])
        G = jnp.tanh(xs @ p["w"][l][1] + p["b"][l][1])
        R = jnp.tanh(xs @ p["w"][l][2] + p["b"][l][2])
        xsr = jnp.concatenate([x, S * R], axis=1)
        H = jnp.tanh(xsr @ p["w"][l][3] + p["b"][l][3])
        S = (1.0 - G) * H + Z * S
    return S @ p["w_out"] + p["b_out"]


def net_dgm_reference_packed(x, pp, act_dtype=jnp.bfloat16):
    """Plain-JAX mirror of the kernel's fused / aligned / mixed-precision numerics."""
    layout = pp["layout"]
    dim_S = layout["dim_S"]
    cdt = pp["wx_all"].dtype
    xproj = (jnp.dot(x.astype(cdt), pp["wx_all"],
                     preferred_element_type=jnp.float32) + pp["b_all"])
    S = jnp.tanh(xproj[:, :dim_S].astype(act_dtype)).astype(jnp.float32)
    for l in range(3):
        zo = layout["zgr_offs"][l]
        ho = layout["h_offs"][l]
        zgr = jnp.tanh((xproj[:, zo:zo + 3 * dim_S]
                        + jnp.dot(S.astype(cdt), pp["ws_zgr"][l],
                                  preferred_element_type=jnp.float32)
                        ).astype(act_dtype)).astype(jnp.float32)
        Z = zgr[:, :dim_S]
        G = zgr[:, dim_S:2 * dim_S]
        R = zgr[:, 2 * dim_S:3 * dim_S]
        H = jnp.tanh((xproj[:, ho:ho + dim_S]
                      + jnp.dot((S * R).astype(cdt), pp["ws_h"][l],
                                preferred_element_type=jnp.float32)
                      ).astype(act_dtype)).astype(jnp.float32)
        S = (1.0 - G) * H + Z * S
    y = lax.dot_general(pp["w_out"], S, (((1,), (1,)), ((), ())),
                        preferred_element_type=jnp.float32) + pp["b_out"]
    return y.T                                                    # (B, 1)


if __name__ == "__main__":
    B, dim_x, dim_S = 200, 4, 32          # B=200 exercises the batch-padding path

    key = jax.random.PRNGKey(0)
    k_param, k_x, k_x2 = jax.random.split(key, 3)
    raw = init_params(k_param, dim_x, dim_S)
    x = jax.random.normal(k_x, (B, dim_x), jnp.float32)

    packed = pack_params(raw, dim_x, dim_S, weight_dtype=jnp.bfloat16)
    ref_f32 = net_dgm_reference_f32(x, raw)

    # (a) f32 activations (v5e setting): tight numerical check vs matching reference.
    out_a = jax.block_until_ready(
        net_dgm_forward(x, packed, tb=512, act_dtype=jnp.float32))
    assert out_a.shape == (B, 1)
    ref_a = net_dgm_reference_packed(x, packed, act_dtype=jnp.float32)
    assert jnp.allclose(out_a, ref_a, atol=1e-2, rtol=1e-2), \
        float(jnp.max(jnp.abs(out_a - ref_a)))
    assert jnp.allclose(out_a, ref_f32, atol=1.5e-1, rtol=1.5e-1), \
        float(jnp.max(jnp.abs(out_a - ref_f32)))

    # (b) bf16 activations (v6e/v7x default): moderate check vs matching reference,
    #     loose check vs exact f32 math.
    out_b = jax.block_until_ready(net_dgm_forward(x, packed, tb=512))
    assert out_b.shape == (B, 1)
    ref_b = net_dgm_reference_packed(x, packed, act_dtype=jnp.bfloat16)
    assert jnp.allclose(out_b, ref_b, atol=5e-2, rtol=5e-2), \
        float(jnp.max(jnp.abs(out_b - ref_b)))
    assert jnp.allclose(out_b, ref_f32, atol=2e-1, rtol=2e-1), \
        float(jnp.max(jnp.abs(out_b - ref_f32)))

    # (c) multi-tile grid (n_tiles > 1) to exercise the parallel batch grid and the
    #     lane-dense (n_tiles, 1, tb) output layout.
    B2 = 1000
    x2 = jax.random.normal(k_x2, (B2, dim_x), jnp.float32)
    out_c = jax.block_until_ready(net_dgm_forward(x2, packed, tb=256))
    assert out_c.shape == (B2, 1)
    ref_c = net_dgm_reference_packed(x2, packed, act_dtype=jnp.bfloat16)
    assert jnp.allclose(out_c, ref_c, atol=5e-2, rtol=5e-2), \
        float(jnp.max(jnp.abs(out_c - ref_c)))

    print("KERNEL_OK")
</pallas_src>

<mosaic_0001>
module attributes {stable_mosaic.version = 11 : i64} {
  func.func @kernel(%arg0: i32, %arg1: memref<256x4xf32, #tpu.memory_space<vmem>>, %arg2: memref<4x896xbf16, #tpu.memory_space<vmem>>, %arg3: memref<1x896xf32, #tpu.memory_space<vmem>>, %arg4: memref<3x32x96xbf16, #tpu.memory_space<vmem>>, %arg5: memref<3x32x32xbf16, #tpu.memory_space<vmem>>, %arg6: memref<1x32xf32, #tpu.memory_space<vmem>>, %arg7: memref<1x1xf32, #tpu.memory_space<vmem>>, %arg8: memref<1x1x256xf32, #tpu.memory_space<vmem>>) attributes {dimension_semantics = [#tpu.dimension_semantics<parallel>], iteration_bounds = array<i64: 1>, scalar_prefetch = 0 : i64, scratch_operands = 0 : i64, tpu.core_type = #tpu.core_type<tc>, window_params = [{transform_indices = @transform_0, window_bounds = array<i64: 256, 4>}, {pipeline_mode = #tpu.pipeline_mode<synchronous>, transform_indices = @transform_1, window_bounds = array<i64: 4, 896>}, {pipeline_mode = #tpu.pipeline_mode<synchronous>, transform_indices = @transform_2, window_bounds = array<i64: 1, 896>}, {pipeline_mode = #tpu.pipeline_mode<synchronous>, transform_indices = @transform_3, window_bounds = array<i64: 3, 32, 96>}, {pipeline_mode = #tpu.pipeline_mode<synchronous>, transform_indices = @transform_4, window_bounds = array<i64: 3, 32, 32>}, {pipeline_mode = #tpu.pipeline_mode<synchronous>, transform_indices = @transform_5, window_bounds = array<i64: 1, 32>}, {pipeline_mode = #tpu.pipeline_mode<synchronous>, transform_indices = @transform_6, window_bounds = array<i64: 1, 1>}, {transform_indices = @transform_7, window_bounds = array<i64: 1, 1, 256>}]} {
    %c0 = arith.constant 0 : index
    %c0_0 = arith.constant 0 : index
    %0 = vector.load %arg1[%c0, %c0_0] : memref<256x4xf32, #tpu.memory_space<vmem>>, vector<256x4xf32>
    %1 = arith.truncf %0 : vector<256x4xf32> to vector<256x4xbf16>
    %c0_1 = arith.constant 0 : index
    %c0_2 = arith.constant 0 : index
    %2 = vector.load %arg2[%c0_1, %c0_2] : memref<4x896xbf16, #tpu.memory_space<vmem>>, vector<4x896xbf16>
    %cst = arith.constant dense<0.000000e+00> : vector<256x896xf32>
    %3 = tpu.matmul %1, %2, %cst {dimension_numbers = #tpu.dot_dimension_numbers<[1], [0], [0], [1], [0, 0, 1, 1], [], []>} : vector<256x4xbf16>, vector<4x896xbf16>, vector<256x896xf32> -> vector<256x896xf32>
    %c0_3 = arith.constant 0 : index
    %c0_4 = arith.constant 0 : index
    %4 = vector.load %arg3[%c0_3, %c0_4] : memref<1x896xf32, #tpu.memory_space<vmem>>, vector<1x896xf32>
    %5 = vector.broadcast %4 : vector<1x896xf32> to vector<256x896xf32>
    %6 = arith.addf %3, %5 : vector<256x896xf32>
    %7 = vector.extract_strided_slice %6 {offsets = [0, 0], sizes = [256, 32], strides = [1, 1]} : vector<256x896xf32> to vector<256x32xf32>
    %8 = math.tanh %7 : vector<256x32xf32>
    %9 = vector.extract_strided_slice %6 {offsets = [0, 128], sizes = [256, 96], strides = [1, 1]} : vector<256x896xf32> to vector<256x96xf32>
    %10 = arith.truncf %8 : vector<256x32xf32> to vector<256x32xbf16>
    %c0_5 = arith.constant 0 : index
    %c0_6 = arith.constant 0 : index
    %c0_7 = arith.constant 0 : index
    %11 = vector.load %arg4[%c0_5, %c0_6, %c0_7] : memref<3x32x96xbf16, #tpu.memory_space<vmem>>, vector<1x32x96xbf16>
    %12 = vector.shape_cast %11 : vector<1x32x96xbf16> to vector<32x96xbf16>
    %cst_8 = arith.constant dense<0.000000e+00> : vector<256x96xf32>
    %13 = tpu.matmul %10, %12, %cst_8 {dimension_numbers = #tpu.dot_dimension_numbers<[1], [0], [0], [1], [0, 0, 1, 1], [], []>} : vector<256x32xbf16>, vector<32x96xbf16>, vector<256x96xf32> -> vector<256x96xf32>
    %14 = arith.addf %9, %13 : vector<256x96xf32>
    %15 = math.tanh %14 : vector<256x96xf32>
    %16 = vector.extract_strided_slice %15 {offsets = [0, 0], sizes = [256, 32], strides = [1, 1]} : vector<256x96xf32> to vector<256x32xf32>
    %17 = vector.extract_strided_slice %15 {offsets = [0, 32], sizes = [256, 32], strides = [1, 1]} : vector<256x96xf32> to vector<256x32xf32>
    %18 = vector.extract_strided_slice %15 {offsets = [0, 64], sizes = [256, 32], strides = [1, 1]} : vector<256x96xf32> to vector<256x32xf32>
    %19 = vector.extract_strided_slice %6 {offsets = [0, 256], sizes = [256, 32], strides = [1, 1]} : vector<256x896xf32> to vector<256x32xf32>
    %20 = arith.mulf %8, %18 : vector<256x32xf32>
    %21 = arith.truncf %20 : vector<256x32xf32> to vector<256x32xbf16>
    %c0_9 = arith.constant 0 : index
    %c0_10 = arith.constant 0 : index
    %c0_11 = arith.constant 0 : index
    %22 = vector.load %arg5[%c0_9, %c0_10, %c0_11] : memref<3x32x32xbf16, #tpu.memory_space<vmem>>, vector<1x32x32xbf16>
    %23 = vector.shape_cast %22 : vector<1x32x32xbf16> to vector<32x32xbf16>
    %cst_12 = arith.constant dense<0.000000e+00> : vector<256x32xf32>
    %24 = tpu.matmul %21, %23, %cst_12 {dimension_numbers = #tpu.dot_dimension_numbers<[1], [0], [0], [1], [0, 0, 1, 1], [], []>} : vector<256x32xbf16>, vector<32x32xbf16>, vector<256x32xf32> -> vector<256x32xf32>
    %25 = arith.addf %19, %24 : vector<256x32xf32>
    %26 = math.tanh %25 : vector<256x32xf32>
    %cst_13 = arith.constant 1.000000e+00 : f32
    %27 = vector.broadcast %cst_13 : f32 to vector<256x32xf32>
    %28 = arith.subf %27, %17 : vector<256x32xf32>
    %29 = arith.mulf %28, %26 : vector<256x32xf32>
    %30 = arith.mulf %16, %8 : vector<256x32xf32>
    %31 = arith.addf %29, %30 : vector<256x32xf32>
    %32 = vector.extract_strided_slice %6 {offsets = [0, 384], sizes = [256, 96], strides = [1, 1]} : vector<256x896xf32> to vector<256x96xf32>
    %33 = arith.truncf %31 : vector<256x32xf32> to vector<256x32xbf16>
    %c1 = arith.constant 1 : index
    %c0_14 = arith.constant 0 : index
    %c0_15 = arith.constant 0 : index
    %34 = vector.load %arg4[%c1, %c0_14, %c0_15] : memref<3x32x96xbf16, #tpu.memory_space<vmem>>, vector<1x32x96xbf16>
    %35 = vector.shape_cast %34 : vector<1x32x96xbf16> to vector<32x96xbf16>
    %cst_16 = arith.constant dense<0.000000e+00> : vector<256x96xf32>
    %36 = tpu.matmul %33, %35, %cst_16 {dimension_numbers = #tpu.dot_dimension_numbers<[1], [0], [0], [1], [0, 0, 1, 1], [], []>} : vector<256x32xbf16>, vector<32x96xbf16>, vector<256x96xf32> -> vector<256x96xf32>
    %37 = arith.addf %32, %36 : vector<256x96xf32>
    %38 = math.tanh %37 : vector<256x96xf32>
    %39 = vector.extract_strided_slice %38 {offsets = [0, 0], sizes = [256, 32], strides = [1, 1]} : vector<256x96xf32> to vector<256x32xf32>
    %40 = vector.extract_strided_slice %38 {offsets = [0, 32], sizes = [256, 32], strides = [1, 1]} : vector<256x96xf32> to vector<256x32xf32>
    %41 = vector.extract_strided_slice %38 {offsets = [0, 64], sizes = [256, 32], strides = [1, 1]} : vector<256x96xf32> to vector<256x32xf32>
    %42 = vector.extract_strided_slice %6 {offsets = [0, 512], sizes = [256, 32], strides = [1, 1]} : vector<256x896xf32> to vector<256x32xf32>
    %43 = arith.mulf %31, %41 : vector<256x32xf32>
    %44 = arith.truncf %43 : vector<256x32xf32> to vector<256x32xbf16>
    %c1_17 = arith.constant 1 : index
    %c0_18 = arith.constant 0 : index
    %c0_19 = arith.constant 0 : index
    %45 = vector.load %arg5[%c1_17, %c0_18, %c0_19] : memref<3x32x32xbf16, #tpu.memory_space<vmem>>, vector<1x32x32xbf16>
    %46 = vector.shape_cast %45 : vector<1x32x32xbf16> to vector<32x32xbf16>
    %cst_20 = arith.constant dense<0.000000e+00> : vector<256x32xf32>
    %47 = tpu.matmul %44, %46, %cst_20 {dimension_numbers = #tpu.dot_dimension_numbers<[1], [0], [0], [1], [0, 0, 1, 1], [], []>} : vector<256x32xbf16>, vector<32x32xbf16>, vector<256x32xf32> -> vector<256x32xf32>
    %48 = arith.addf %42, %47 : vector<256x32xf32>
    %49 = math.tanh %48 : vector<256x32xf32>
    %cst_21 = arith.constant 1.000000e+00 : f32
    %50 = vector.broadcast %cst_21 : f32 to vector<256x32xf32>
    %51 = arith.subf %50, %40 : vector<256x32xf32>
    %52 = arith.mulf %51, %49 : vector<256x32xf32>
    %53 = arith.mulf %39, %31 : vector<256x32xf32>
    %54 = arith.addf %52, %53 : vector<256x32xf32>
    %55 = vector.extract_strided_slice %6 {offsets = [0, 640], sizes = [256, 96], strides = [1, 1]} : vector<256x896xf32> to vector<256x96xf32>
    %56 = arith.truncf %54 : vector<256x32xf32> to vector<256x32xbf16>
    %c2 = arith.constant 2 : index
    %c0_22 = arith.constant 0 : index
    %c0_23 = arith.constant 0 : index
    %57 = vector.load %arg4[%c2, %c0_22, %c0_23] : memref<3x32x96xbf16, #tpu.memory_space<vmem>>, vector<1x32x96xbf16>
    %58 = vector.shape_cast %57 : vector<1x32x96xbf16> to vector<32x96xbf16>
    %cst_24 = arith.constant dense<0.000000e+00> : vector<256x96xf32>
    %59 = tpu.matmul %56, %58, %cst_24 {dimension_numbers = #tpu.dot_dimension_numbers<[1], [0], [0], [1], [0, 0, 1, 1], [], []>} : vector<256x32xbf16>, vector<32x96xbf16>, vector<256x96xf32> -> vector<256x96xf32>
    %60 = arith.addf %55, %59 : vector<256x96xf32>
    %61 = math.tanh %60 : vector<256x96xf32>
    %62 = vector.extract_strided_slice %61 {offsets = [0, 0], sizes = [256, 32], strides = [1, 1]} : vector<256x96xf32> to vector<256x32xf32>
    %63 = vector.extract_strided_slice %61 {offsets = [0, 32], sizes = [256, 32], strides = [1, 1]} : vector<256x96xf32> to vector<256x32xf32>
    %64 = vector.extract_strided_slice %61 {offsets = [0, 64], sizes = [256, 32], strides = [1, 1]} : vector<256x96xf32> to vector<256x32xf32>
    %65 = vector.extract_strided_slice %6 {offsets = [0, 768], sizes = [256, 32], strides = [1, 1]} : vector<256x896xf32> to vector<256x32xf32>
    %66 = arith.mulf %54, %64 : vector<256x32xf32>
    %67 = arith.truncf %66 : vector<256x32xf32> to vector<256x32xbf16>
    %c2_25 = arith.constant 2 : index
    %c0_26 = arith.constant 0 : index
    %c0_27 = arith.constant 0 : index
    %68 = vector.load %arg5[%c2_25, %c0_26, %c0_27] : memref<3x32x32xbf16, #tpu.memory_space<vmem>>, vector<1x32x32xbf16>
    %69 = vector.shape_cast %68 : vector<1x32x32xbf16> to vector<32x32xbf16>
    %cst_28 = arith.constant dense<0.000000e+00> : vector<256x32xf32>
    %70 = tpu.matmul %67, %69, %cst_28 {dimension_numbers = #tpu.dot_dimension_numbers<[1], [0], [0], [1], [0, 0, 1, 1], [], []>} : vector<256x32xbf16>, vector<32x32xbf16>, vector<256x32xf32> -> vector<256x32xf32>
    %71 = arith.addf %65, %70 : vector<256x32xf32>
    %72 = math.tanh %71 : vector<256x32xf32>
    %cst_29 = arith.constant 1.000000e+00 : f32
    %73 = vector.broadcast %cst_29 : f32 to vector<256x32xf32>
    %74 = arith.subf %73, %63 : vector<256x32xf32>
    %75 = arith.mulf %74, %72 : vector<256x32xf32>
    %76 = arith.mulf %62, %54 : vector<256x32xf32>
    %77 = arith.addf %75, %76 : vector<256x32xf32>
    %c0_30 = arith.constant 0 : index
    %c0_31 = arith.constant 0 : index
    %78 = vector.load %arg6[%c0_30, %c0_31] : memref<1x32xf32, #tpu.memory_space<vmem>>, vector<1x32xf32>
    %cst_32 = arith.constant dense<0.000000e+00> : vector<1x256xf32>
    %79 = tpu.matmul %78, %77, %cst_32 {dimension_numbers = #tpu.dot_dimension_numbers<[1], [1], [0], [0], [0, 0, 1, 0], [], []>} : vector<1x32xf32>, vector<256x32xf32>, vector<1x256xf32> -> vector<1x256xf32>
    %c0_33 = arith.constant 0 : index
    %c0_34 = arith.constant 0 : index
    %80 = vector.load %arg7[%c0_33, %c0_34] : memref<1x1xf32, #tpu.memory_space<vmem>>, vector<1x1xf32>
    %81 = vector.broadcast %80 : vector<1x1xf32> to vector<1x256xf32>
    %82 = arith.addf %79, %81 : vector<1x256xf32>
    %c0_35 = arith.constant 0 : index
    %c0_36 = arith.constant 0 : index
    %c0_37 = arith.constant 0 : index
    %83 = vector.load %arg8[%c0_35, %c0_36, %c0_37] : memref<1x1x256xf32, #tpu.memory_space<vmem>>, vector<1x1x256xf32>
    %84 = vector.shape_cast %83 : vector<1x1x256xf32> to vector<1x256xf32>
    %85 = vector.shape_cast %82 : vector<1x256xf32> to vector<1x1x256xf32>
    tpu.vector_store %arg8[%c0_35, %c0_36, %c0_37], %85 {strides = array<i32>} : memref<1x1x256xf32, #tpu.memory_space<vmem>>, vector<1x1x256xf32>,
    return
  }
  func.func @transform_0(%arg0: i32) -> (i32, i32) {
    %c0_i32 = arith.constant 0 : i32
    %c0_i32_0 = arith.constant 0 : i32
    return %arg0, %c0_i32 : i32, i32
  }
  func.func @transform_1(%arg0: i32) -> (i32, i32) {
    %c0_i32 = arith.constant 0 : i32
    %c0_i32_0 = arith.constant 0 : i32
    %c0_i32_1 = arith.constant 0 : i32
    return %c0_i32, %c0_i32_0 : i32, i32
  }
  func.func @transform_2(%arg0: i32) -> (i32, i32) {
    %c0_i32 = arith.constant 0 : i32
    %c0_i32_0 = arith.constant 0 : i32
    %c0_i32_1 = arith.constant 0 : i32
    return %c0_i32, %c0_i32_0 : i32, i32
  }
  func.func @transform_3(%arg0: i32) -> (i32, i32, i32) {
    %c0_i32 = arith.constant 0 : i32
    %c0_i32_0 = arith.constant 0 : i32
    %c0_i32_1 = arith.constant 0 : i32
    %c0_i32_2 = arith.constant 0 : i32
    return %c0_i32, %c0_i32_0, %c0_i32_1 : i32, i32, i32
  }
  func.func @transform_4(%arg0: i32) -> (i32, i32, i32) {
    %c0_i32 = arith.constant 0 : i32
    %c0_i32_0 = arith.constant 0 : i32
    %c0_i32_1 = arith.constant 0 : i32
    %c0_i32_2 = arith.constant 0 : i32
    return %c0_i32, %c0_i32_0, %c0_i32_1 : i32, i32, i32
  }
  func.func @transform_5(%arg0: i32) -> (i32, i32) {
    %c0_i32 = arith.constant 0 : i32
    %c0_i32_0 = arith.constant 0 : i32
    %c0_i32_1 = arith.constant 0 : i32
    return %c0_i32, %c0_i32_0 : i32, i32
  }
  func.func @transform_6(%arg0: i32) -> (i32, i32) {
    %c0_i32 = arith.constant 0 : i32
    %c0_i32_0 = arith.constant 0 : i32
    %c0_i32_1 = arith.constant 0 : i32
    return %c0_i32, %c0_i32_0 : i32, i32
  }
  func.func @transform_7(%arg0: i32) -> (i32, i32, i32) {
    %c0_i32 = arith.constant 0 : i32
    %c0_i32_0 = arith.constant 0 : i32
    %c0_i32_1 = arith.constant 0 : i32
    return %arg0, %c0_i32, %c0_i32_0 : i32, i32, i32
  }
}

</mosaic_0001>

<llo_original>
// kernel: tpu_custom_call.1
$region0: #{tpu_custom_call.1}
  #allocation0 [shape = 'u32[]', space=smem, size = 0x4, offset = 0x4, fixed_abs, tag = 'smem constant byte address 0x4 - core index']
  #allocation1 [shape = 'u32[144,128]{1,0:T(1,128)}', space=vmem, size = 0x12000, scoped, tag = 'internal scratch']
  #allocation2 [shape = 'f32[1,1]{1,0:T(1,128)S(1)}', space=vmem, size = 0x200, scoped, tag = 'scoped memory for tpu_custom_call.1']
  %s0 = inlined_call_operand.vmem [shape: f32[256,4], index: 0, kind: input, shape index: {}]
  %s1 = inlined_call_operand.vmem [shape: bf16[4,896], index: 1, kind: input, shape index: {}]
  %s2 = inlined_call_operand.vmem [shape: f32[1,896], index: 2, kind: input, shape index: {}]
  %s3 = inlined_call_operand.vmem [shape: bf16[3,32,96], index: 3, kind: input, shape index: {}]
  %s4 = inlined_call_operand.vmem [shape: bf16[3,32,32], index: 4, kind: input, shape index: {}]
  %s5 = inlined_call_operand.vmem [shape: f32[1,32], index: 5, kind: input, shape index: {}]
  %s6 = inlined_call_operand.<no memory space> [shape: f32[1,1], index: 6, kind: input, shape index: {}]
  %s7 = inlined_call_operand.hbm [shape: f32[1,1,256], index: 7, kind: output, shape index: {}]
  %s8 = sld [smem:[#allocation0]]
  $region38: #{tpu_custom_call.1} parent=0
    _
  %s10 = ssub.s32 1, %s8
  %s11 = scalar_select 0, %s10, %s8
  %v12 = vstv %s6
  %13 = vst [vmem:[#allocation2] sm:$0x1] %v12
  $region1: #{tpu_custom_call.1} parent=0
    #allocation3 [shape = 'u8[1024]{0}', space=vmem, size = 0x400, scoped, tag = 'output window, operand 0, single buffered']
    #allocation4 [shape = 's32[1]{0}', space=sflag, size = 0x4, scoped, tag = 'scoped memory for tpu_custom_call.1']
    %14 = vsyncpa [#allocation4], 0
    // Predicated region
    $region2: #{tpu_custom_call.1} parent=1 // pred_check
      _
    $region3: #{tpu_custom_call.1} parent=1 // pred_check_branch
      %16 = sbr.rel (0) target = $region5
    $region4: #{tpu_custom_call.1} parent=1 // pred_region
      _
    $region5: #{tpu_custom_call.1} parent=1 // pred_fallthru
      _
    // Predicated region
    $region6: #{tpu_custom_call.1} parent=1 // pred_check
      _
    $region7: #{tpu_custom_call.1} parent=1 // pred_check_branch
      %18 = sbr.rel (0) target = $region9
    $region8: #{tpu_custom_call.1} parent=1 // pred_region
      _
    $region9: #{tpu_custom_call.1} parent=1 // pred_fallthru
      _
    // Predicated region
    $region10: #{tpu_custom_call.1} parent=1 // pred_check
      _
    $region11: #{tpu_custom_call.1} parent=1 // pred_check_branch
      %20 = sbr.rel (0) target = $region13
    $region12: #{tpu_custom_call.1} parent=1 // pred_region
      _
    $region13: #{tpu_custom_call.1} parent=1 // pred_fallthru
      _
    // Predicated region
    $region14: #{tpu_custom_call.1} parent=1 // pred_check
      _
    $region15: #{tpu_custom_call.1} parent=1 // pred_check_branch
      %22 = sbr.rel (0) target = $region17
    $region16: #{tpu_custom_call.1} parent=1 // pred_region
      _
    $region17: #{tpu_custom_call.1} parent=1 // pred_fallthru
      _
    // Predicated region
    $region18: #{tpu_custom_call.1} parent=1 // pred_check
      _
    $region19: #{tpu_custom_call.1} parent=1 // pred_check_branch
      %24 = sbr.rel (0) target = $region21
    $region20: #{tpu_custom_call.1} parent=1 // pred_region
      _
    $region21: #{tpu_custom_call.1} parent=1 // pred_fallthru
      _
    // Predicated region
    $region22: #{tpu_custom_call.1} parent=1 // pred_check
      _
    $region23: #{tpu_custom_call.1} parent=1 // pred_check_branch
      %26 = sbr.rel (0) target = $region25
    $region24: #{tpu_custom_call.1} parent=1 // pred_region
      _
    $region25: #{tpu_custom_call.1} parent=1 // pred_fallthru
      _
    // Predicated region
    $region26: #{tpu_custom_call.1} parent=1 // pred_check
      _
    $region27: #{tpu_custom_call.1} parent=1 // pred_check_branch
      %28 = sbr.rel (0) target = $region29
    $region28: #{tpu_custom_call.1} parent=1 // pred_region
      _
    $region29: #{tpu_custom_call.1} parent=1 // pred_fallthru
      _
    %v30 = vld [vmem:[%s0] sm:$0xff]
    %v31 = vld [vmem:[%s0 + $0x8] sm:$0xff]
    %v32 = vld [vmem:[%s0 + $0x10] sm:$0xff]
    %v33 = vld [vmem:[%s0 + $0x18] sm:$0xff]
    %v34 = vld [vmem:[%s0 + $0x20] sm:$0xff]
    %v35 = vld [vmem:[%s0 + $0x28] sm:$0xff]
    %v36 = vld [vmem:[%s0 + $0x30] sm:$0xff]
    %v37 = vld [vmem:[%s0 + $0x38] sm:$0xff]
    %v38 = vld [vmem:[%s0 + $0x40] sm:$0xff]
    %v39 = vld [vmem:[%s0 + $0x48] sm:$0xff]
    %v40 = vld [vmem:[%s0 + $0x50] sm:$0xff]
    %v41 = vld [vmem:[%s0 + $0x58] sm:$0xff]
    %v42 = vld [vmem:[%s0 + $0x60] sm:$0xff]
    %v43 = vld [vmem:[%s0 + $0x68] sm:$0xff]
    %v44 = vld [vmem:[%s0 + $0x70] sm:$0xff]
    %v45 = vld [vmem:[%s0 + $0x78] sm:$0xff]
    %v46 = vld [vmem:[%s0 + $0x80] sm:$0xff]
    %v47 = vld [vmem:[%s0 + $0x88] sm:$0xff]
    %v48 = vld [vmem:[%s0 + $0x90] sm:$0xff]
    %v49 = vld [vmem:[%s0 + $0x98] sm:$0xff]
    %v50 = vld [vmem:[%s0 + $0xa0] sm:$0xff]
    %v51 = vld [vmem:[%s0 + $0xa8] sm:$0xff]
    %v52 = vld [vmem:[%s0 + $0xb0] sm:$0xff]
    %v53 = vld [vmem:[%s0 + $0xb8] sm:$0xff]
    %v54 = vld [vmem:[%s0 + $0xc0] sm:$0xff]
    %v55 = vld [vmem:[%s0 + $0xc8] sm:$0xff]
    %v56 = vld [vmem:[%s0 + $0xd0] sm:$0xff]
    %v57 = vld [vmem:[%s0 + $0xd8] sm:$0xff]
    %v58 = vld [vmem:[%s0 + $0xe0] sm:$0xff]
    %v59 = vld [vmem:[%s0 + $0xe8] sm:$0xff]
    %v60 = vld [vmem:[%s0 + $0xf0] sm:$0xff]
    %v61 = vld [vmem:[%s0 + $0xf8] sm:$0xff]
    %v62 = vpack.c.bf16 %v31, %v30
    %v63 = vpack.c.bf16 %v33, %v32
    %v64 = vpack.c.bf16 %v35, %v34
    %v65 = vpack.c.bf16 %v37, %v36
    %v66 = vpack.c.bf16 %v39, %v38
    %v67 = vpack.c.bf16 %v41, %v40
    %v68 = vpack.c.bf16 %v43, %v42
    %v69 = vpack.c.bf16 %v45, %v44
    %v70 = vpack.c.bf16 %v47, %v46
    %v71 = vpack.c.bf16 %v49, %v48
    %v72 = vpack.c.bf16 %v51, %v50
    %v73 = vpack.c.bf16 %v53, %v52
    %v74 = vpack.c.bf16 %v55, %v54
    %v75 = vpack.c.bf16 %v57, %v56
    %v76 = vpack.c.bf16 %v59, %v58
    %v77 = vpack.c.bf16 %v61, %v60
    %v78 = vld [vmem:[%s1] sm:$0xff]
    %v79 = vld [vmem:[%s1 + $0x8] sm:$0x3f]
    %v80 = vld [vmem:[%s2] sm:$0xff]
    %v82 = vlaneseq
    %v83 = vshrl.u32 %v82, 7
    %v84 = vsub.s32 0, %v83
    %v85 = vrot.slane %v80, %v84
    %v86 = vlaneseq
    %v87 = vshrl.u32 %v86, 7
    %v88 = vsub.s32 1, %v87
    %v89 = vrot.slane %v80, %v88
    %v90 = vlaneseq
    %v91 = vshrl.u32 %v90, 7
    %v92 = vsub.s32 2, %v91
    %v93 = vrot.slane %v80, %v92
    %v94 = vlaneseq
    %v95 = vshrl.u32 %v94, 7
    %v96 = vsub.s32 3, %v95
    %v97 = vrot.slane %v80, %v96
    %v98 = vlaneseq
    %v99 = vshrl.u32 %v98, 7
    %v100 = vsub.s32 4, %v99
    %v101 = vrot.slane %v80, %v100
    %v102 = vlaneseq
    %v103 = vshrl.u32 %v102, 7
    %v104 = vsub.s32 5, %v103
    %v105 = vrot.slane %v80, %v104
    %v106 = vlaneseq
    %v107 = vshrl.u32 %v106, 7
    %v108 = vsub.s32 6, %v107
    %v109 = vrot.slane %v80, %v108
    %v119 = vcombine.high %v78, %v78
    %v121 = vunpack.c.l.s4 1983009808
    %v122 = vunpack.c.0.s8 %v121
    %v123 = vlaneseq
    %v124 = vshrl.u32 %v123, 7
    %v125 = vsub.s32 %v122, %v124
    %v126 = vrot.slane %v78, %v125
    %v128 = vunpack.c.l.s4 1983009808
    %v129 = vunpack.c.0.s8 %v128
    %v130 = vlaneseq
    %v131 = vshrl.u32 %v130, 7
    %v132 = vsub.s32 %v129, %v131
    %v133 = vrot.slane %v119, %v132
    %v134 = vcombine.high %v126, %v126
    %v135 = vcombine.high %v133, %v133
    %v136 = vcombine.high %v79, %v79
    %v138 = vunpack.c.l.s4 1983009808
    %v139 = vunpack.c.0.s8 %v138
    %v140 = vlaneseq
    %v141 = vshrl.u32 %v140, 7
    %v142 = vsub.s32 %v139, %v141
    %v143 = vrot.slane %v79, %v142
    %v145 = vunpack.c.l.s4 1983009808
    %v146 = vunpack.c.0.s8 %v145
    %v147 = vlaneseq
    %v148 = vshrl.u32 %v147, 7
    %v149 = vsub.s32 %v146, %v148
    %v150 = vrot.slane %v136, %v149
    %v151 = vcombine.high %v143, %v143
    %vm152 = vcmask 31744
    %v154 = vsel %vm152, %v62, 0
    %v157 = vsel %vm152, %v63, 0
    %v160 = vsel %vm152, %v64, 0
    %v163 = vsel %vm152, %v65, 0
    %v166 = vsel %vm152, %v66, 0
    %v169 = vsel %vm152, %v67, 0
    %v172 = vsel %vm152, %v68, 0
    %v175 = vsel %vm152, %v69, 0
    %v178 = vsel %vm152, %v70, 0
    %v181 = vsel %vm152, %v71, 0
    %v184 = vsel %vm152, %v72, 0
    %v187 = vsel %vm152, %v73, 0
    %v190 = vsel %vm152, %v74, 0
    %v193 = vsel %vm152, %v75, 0
    %v196 = vsel %vm152, %v76, 0
    %v199 = vsel %vm152, %v77, 0
    %vm201 = vcmask 1041408
    %v203 = vsel %vm201, %v126, 0
    %v206 = vsel %vm201, %v134, 0
    %v209 = vsel %vm201, %v133, 0
    %v212 = vsel %vm201, %v135, 0
    %v215 = vsel %vm201, %v143, 0
    %v218 = vsel %vm201, %v151, 0
    %v221 = vsel %vm201, %v150, 0
    %223 = vmatprep.subr.bf16.mxu0 %v206
    %224 = vmatpush1.bf16.msra.mxu0 %v203
    %225 = vmatprep.subr.bf16.mxu0 0
    %226 = vmatpush1.bf16.msra.mxu0 0
    %227 = vmatprep.subr.bf16.mxu0 0
    %228 = vmatpush1.bf16.msra.mxu0 0
    %229 = vmatprep.subr.bf16.mxu0 0
    %230 = vmatpush1.bf16.msra.mxu0 0
    %231 = vmatprep.subr.bf16.mxu0 0
    %232 = vmatpush1.bf16.msra.mxu0 0
    %233 = vmatprep.subr.bf16.mxu0 0
    %234 = vmatpush1.bf16.msra.mxu0 0
    %235 = vmatprep.subr.bf16.mxu0 0
    %236 = vmatpush1.bf16.msra.mxu0 0
    %237 = vmatprep.subr.bf16.mxu0 0
    %238 = vmatpush1.bf16.msra.mxu0 0
    %239 = vmatprep.subr.bf16.mxu0 0
    %240 = vmatpush1.bf16.msra.mxu0 0
    %241 = vmatprep.subr.bf16.mxu0 0
    %242 = vmatpush1.bf16.msra.mxu0 0
    %243 = vmatprep.subr.bf16.mxu0 0
    %244 = vmatpush1.bf16.msra.mxu0 0
    %245 = vmatprep.subr.bf16.mxu0 0
    %246 = vmatpush1.bf16.msra.mxu0 0
    %247 = vmatprep.subr.bf16.mxu0 0
    %248 = vmatpush1.bf16.msra.mxu0 0
    %249 = vmatprep.subr.bf16.mxu0 0
    %250 = vmatpush1.bf16.msra.mxu0 0
    %251 = vmatprep.subr.bf16.mxu0 0
    %252 = vmatpush1.bf16.msra.mxu0 0
    %253 = vmatprep.subr.bf16.mxu0 0
    %254 = vmatpush1.bf16.msra.mxu0 0
    %255 = vmatprep.mubr.bf16.mxu0 0
    %256 = vmatmul.mubr.bf16.gmra.mrb[0].mxu0 %v154
    %v257 = vpop.f32.mrb[0].mxu0
    %v258 = vadd.f32 %v85, %v257
    %v259 = vpop.f32.mrb[0].mxu0
    %v260 = vadd.f32 %v89, %v259
    %v261 = vpop.f32.mrb[0].mxu0
    %v262 = vadd.f32 %v85, %v261
    %v263 = vpop.f32.mrb[0].mxu0
    %v264 = vadd.f32 %v89, %v263
    %265 = vmatprep.mubr.bf16.mxu0 0
    %266 = vmatmul.mubr.bf16.gmra.mrb[0].mxu0 %v157
    %v267 = vpop.f32.mrb[0].mxu0
    %v268 = vadd.f32 %v85, %v267
    %v269 = vpop.f32.mrb[0].mxu0
    %v270 = vadd.f32 %v89, %v269
    %v271 = vpop.f32.mrb[0].mxu0
    %v272 = vadd.f32 %v85, %v271
    %v273 = vpop.f32.mrb[0].mxu0
    %v274 = vadd.f32 %v89, %v273
    %275 = vmatprep.mubr.bf16.mxu0 0
    %276 = vmatmul.mubr.bf16.gmra.mrb[0].mxu0 %v160
    %v277 = vpop.f32.mrb[0].mxu0
    %v278 = vadd.f32 %v85, %v277
    %v279 = vpop.f32.mrb[0].mxu0
    %v280 = vadd.f32 %v89, %v279
    %v281 = vpop.f32.mrb[0].mxu0
    %v282 = vadd.f32 %v85, %v281
    %v283 = vpop.f32.mrb[0].mxu0
    %v284 = vadd.f32 %v89, %v283
    %285 = vmatprep.mubr.bf16.mxu0 0
    %286 = vmatmul.mubr.bf16.gmra.mrb[0].mxu0 %v163
    %v287 = vpop.f32.mrb[0].mxu0
    %v288 = vadd.f32 %v85, %v287
    %v289 = vpop.f32.mrb[0].mxu0
    %v290 = vadd.f32 %v89, %v289
    %v291 = vpop.f32.mrb[0].mxu0
    %v292 = vadd.f32 %v85, %v291
    %v293 = vpop.f32.mrb[0].mxu0
    %v294 = vadd.f32 %v89, %v293
    %295 = vmatprep.mubr.bf16.mxu0 0
    %296 = vmatmul.mubr.bf16.gmra.mrb[0].mxu0 %v166
    %v297 = vpop.f32.mrb[0].mxu0
    %v298 = vadd.f32 %v85, %v297
    %v299 = vpop.f32.mrb[0].mxu0
    %v300 = vadd.f32 %v89, %v299
    %v301 = vpop.f32.mrb[0].mxu0
    %v302 = vadd.f32 %v85, %v301
    %v303 = vpop.f32.mrb[0].mxu0
    %v304 = vadd.f32 %v89, %v303
    %305 = vmatprep.mubr.bf16.mxu0 0
    %306 = vmatmul.mubr.bf16.gmra.mrb[0].mxu0 %v169
    %v307 = vpop.f32.mrb[0].mxu0
    %v308 = vadd.f32 %v85, %v307
    %v309 = vpop.f32.mrb[0].mxu0
    %v310 = vadd.f32 %v89, %v309
    %v311 = vpop.f32.mrb[0].mxu0
    %v312 = vadd.f32 %v85, %v311
    %v313 = vpop.f32.mrb[0].mxu0
    %v314 = vadd.f32 %v89, %v313
    %315 = vmatprep.mubr.bf16.mxu0 0
    %316 = vmatmul.mubr.bf16.gmra.mrb[0].mxu0 %v172
    %v317 = vpop.f32.mrb[0].mxu0
    %v318 = vadd.f32 %v85, %v317
    %v319 = vpop.f32.mrb[0].mxu0
    %v320 = vadd.f32 %v89, %v319
    %v321 = vpop.f32.mrb[0].mxu0
    %v322 = vadd.f32 %v85, %v321
    %v323 = vpop.f32.mrb[0].mxu0
    %v324 = vadd.f32 %v89, %v323
    %325 = vmatprep.mubr.bf16.mxu0 0
    %326 = vmatmul.mubr.bf16.gmra.mrb[0].mxu0 %v175
    %v327 = vpop.f32.mrb[0].mxu0
    %v328 = vadd.f32 %v85, %v327
    %v329 = vpop.f32.mrb[0].mxu0
    %v330 = vadd.f32 %v89, %v329
    %v331 = vpop.f32.mrb[0].mxu0
    %v332 = vadd.f32 %v85, %v331
    %v333 = vpop.f32.mrb[0].mxu0
    %v334 = vadd.f32 %v89, %v333
    %335 = vmatprep.mubr.bf16.mxu0 0
    %336 = vmatmul.mubr.bf16.gmra.mrb[0].mxu0 %v178
    %v337 = vpop.f32.mrb[0].mxu0
    %v338 = vadd.f32 %v85, %v337
    %v339 = vpop.f32.mrb[0].mxu0
    %v340 = vadd.f32 %v89, %v339
    %v341 = vpop.f32.mrb[0].mxu0
    %v342 = vadd.f32 %v85, %v341
    %v343 = vpop.f32.mrb[0].mxu0
    %v344 = vadd.f32 %v89, %v343
    %345 = vmatprep.mubr.bf16.mxu0 0
    %346 = vmatmul.mubr.bf16.gmra.mrb[0].mxu0 %v181
    %v347 = vpop.f32.mrb[0].mxu0
    %v348 = vadd.f32 %v85, %v347
    %v349 = vpop.f32.mrb[0].mxu0
    %v350 = vadd.f32 %v89, %v349
    %v351 = vpop.f32.mrb[0].mxu0
    %v352 = vadd.f32 %v85, %v351
    %v353 = vpop.f32.mrb[0].mxu0
    %v354 = vadd.f32 %v89, %v353
    %355 = vmatprep.mubr.bf16.mxu0 0
    %356 = vmatmul.mubr.bf16.gmra.mrb[0].mxu0 %v184
    %v357 = vpop.f32.mrb[0].mxu0
    %v358 = vadd.f32 %v85, %v357
    %v359 = vpop.f32.mrb[0].mxu0
    %v360 = vadd.f32 %v89, %v359
    %v361 = vpop.f32.mrb[0].mxu0
    %v362 = vadd.f32 %v85, %v361
    %v363 = vpop.f32.mrb[0].mxu0
    %v364 = vadd.f32 %v89, %v363
    %365 = vmatprep.mubr.bf16.mxu0 0
    %366 = vmatmul.mubr.bf16.gmra.mrb[0].mxu0 %v187
    %v367 = vpop.f32.mrb[0].mxu0
    %v368 = vadd.f32 %v85, %v367
    %v369 = vpop.f32.mrb[0].mxu0
    %v370 = vadd.f32 %v89, %v369
    %v371 = vpop.f32.mrb[0].mxu0
    %v372 = vadd.f32 %v85, %v371
    %v373 = vpop.f32.mrb[0].mxu0
    %v374 = vadd.f32 %v89, %v373
    %375 = vmatprep.mubr.bf16.mxu0 0
    %376 = vmatmul.mubr.bf16.gmra.mrb[0].mxu0 %v190
    %v377 = vpop.f32.mrb[0].mxu0
    %v378 = vadd.f32 %v85, %v377
    %v379 = vpop.f32.mrb[0].mxu0
    %v380 = vadd.f32 %v89, %v379
    %v381 = vpop.f32.mrb[0].mxu0
    %v382 = vadd.f32 %v85, %v381
    %v383 = vpop.f32.mrb[0].mxu0
    %v384 = vadd.f32 %v89, %v383
    %385 = vmatprep.mubr.bf16.mxu0 0
    %386 = vmatmul.mubr.bf16.gmra.mrb[0].mxu0 %v193
    %v387 = vpop.f32.mrb[0].mxu0
    %v388 = vadd.f32 %v85, %v387
    %v389 = vpop.f32.mrb[0].mxu0
    %v390 = vadd.f32 %v89, %v389
    %v391 = vpop.f32.mrb[0].mxu0
    %v392 = vadd.f32 %v85, %v391
    %v393 = vpop.f32.mrb[0].mxu0
    %v394 = vadd.f32 %v89, %v393
    %395 = vmatprep.mubr.bf16.mxu0 0
    %396 = vmatmul.mubr.bf16.gmra.mrb[0].mxu0 %v196
    %v397 = vpop.f32.mrb[0].mxu0
    %v398 = vadd.f32 %v85, %v397
    %v399 = vpop.f32.mrb[0].mxu0
    %v400 = vadd.f32 %v89, %v399
    %v401 = vpop.f32.mrb[0].mxu0
    %v402 = vadd.f32 %v85, %v401
    %v403 = vpop.f32.mrb[0].mxu0
    %v404 = vadd.f32 %v89, %v403
    %405 = vmatprep.mubr.bf16.mxu0 0
    %406 = vmatmul.mubr.bf16.gmra.mrb[0].mxu0 %v199
    %v407 = vpop.f32.mrb[0].mxu0
    %v408 = vadd.f32 %v85, %v407
    %v409 = vpop.f32.mrb[0].mxu0
    %v410 = vadd.f32 %v89, %v409
    %v411 = vpop.f32.mrb[0].mxu0
    %v412 = vadd.f32 %v85, %v411
    %v413 = vpop.f32.mrb[0].mxu0
    %v414 = vadd.f32 %v89, %v413
    %415 = vdwg.mxu0
    %416 = vmatprep.subr.bf16.mxu0 %v212
    %417 = vmatpush1.bf16.msra.mxu0 %v209
    %418 = vmatprep.subr.bf16.mxu0 0
    %419 = vmatpush1.bf16.msra.mxu0 0
    %420 = vmatprep.subr.bf16.mxu0 0
    %421 = vmatpush1.bf16.msra.mxu0 0
    %422 = vmatprep.subr.bf16.mxu0 0
    %423 = vmatpush1.bf16.msra.mxu0 0
    %424 = vmatprep.subr.bf16.mxu0 0
    %425 = vmatpush1.bf16.msra.mxu0 0
    %426 = vmatprep.subr.bf16.mxu0 0
    %427 = vmatpush1.bf16.msra.mxu0 0
    %428 = vmatprep.subr.bf16.mxu0 0
    %429 = vmatpush1.bf16.msra.mxu0 0
    %430 = vmatprep.subr.bf16.mxu0 0
    %431 = vmatpush1.bf16.msra.mxu0 0
    %432 = vmatprep.subr.bf16.mxu0 0
    %433 = vmatpush1.bf16.msra.mxu0 0
    %434 = vmatprep.subr.bf16.mxu0 0
    %435 = vmatpush1.bf16.msra.mxu0 0
    %436 = vmatprep.subr.bf16.mxu0 0
    %437 = vmatpush1.bf16.msra.mxu0 0
    %438 = vmatprep.subr.bf16.mxu0 0
    %439 = vmatpush1.bf16.msra.mxu0 0
    %440 = vmatprep.subr.bf16.mxu0 0
    %441 = vmatpush1.bf16.msra.mxu0 0
    %442 = vmatprep.subr.bf16.mxu0 0
    %443 = vmatpush1.bf16.msra.mxu0 0
    %444 = vmatprep.subr.bf16.mxu0 0
    %445 = vmatpush1.bf16.msra.mxu0 0
    %446 = vmatprep.subr.bf16.mxu0 0
    %447 = vmatpush1.bf16.msra.mxu0 0
    %448 = vmatprep.mubr.bf16.mxu0 0
    %449 = vmatmul.mubr.bf16.gmra.mrb[0].mxu0 %v154
    %v450 = vpop.f32.mrb[0].mxu0
    %v451 = vadd.f32 %v93, %v450
    %v452 = vpop.f32.mrb[0].mxu0
    %v453 = vadd.f32 %v97, %v452
    %v454 = vpop.f32.mrb[0].mxu0
    %v455 = vadd.f32 %v93, %v454
    %v456 = vpop.f32.mrb[0].mxu0
    %v457 = vadd.f32 %v97, %v456
    %458 = vmatprep.mubr.bf16.mxu0 0
    %459 = vmatmul.mubr.bf16.gmra.mrb[0].mxu0 %v157
    %v460 = vpop.f32.mrb[0].mxu0
    %v461 = vadd.f32 %v93, %v460
    %v462 = vpop.f32.mrb[0].mxu0
    %v463 = vadd.f32 %v97, %v462
    %v464 = vpop.f32.mrb[0].mxu0
    %v465 = vadd.f32 %v93, %v464
    %v466 = vpop.f32.mrb[0].mxu0
    %v467 = vadd.f32 %v97, %v466
    %468 = vmatprep.mubr.bf16.mxu0 0
    %469 = vmatmul.mubr.bf16.gmra.mrb[0].mxu0 %v160
    %v470 = vpop.f32.mrb[0].mxu0
    %v471 = vadd.f32 %v93, %v470
    %v472 = vpop.f32.mrb[0].mxu0
    %v473 = vadd.f32 %v97, %v472
    %v474 = vpop.f32.mrb[0].mxu0
    %v475 = vadd.f32 %v93, %v474
    %v476 = vpop.f32.mrb[0].mxu0
    %v477 = vadd.f32 %v97, %v476
    %478 = vmatprep.mubr.bf16.mxu0 0
    %479 = vmatmul.mubr.bf16.gmra.mrb[0].mxu0 %v163
    %v480 = vpop.f32.mrb[0].mxu0
    %v481 = vadd.f32 %v93, %v480
    %v482 = vpop.f32.mrb[0].mxu0
    %v483 = vadd.f32 %v97, %v482
    %v484 = vpop.f32.mrb[0].mxu0
    %v485 = vadd.f32 %v93, %v484
    %v486 = vpop.f32.mrb[0].mxu0
    %v487 = vadd.f32 %v97, %v486
    %488 = vmatprep.mubr.bf16.mxu0 0
    %489 = vmatmul.mubr.bf16.gmra.mrb[0].mxu0 %v166
    %v490 = vpop.f32.mrb[0].mxu0
    %v491 = vadd.f32 %v93, %v490
    %v492 = vpop.f32.mrb[0].mxu0
    %v493 = vadd.f32 %v97, %v492
    %v494 = vpop.f32.mrb[0].mxu0
    %v495 = vadd.f32 %v93, %v494
    %v496 = vpop.f32.mrb[0].mxu0
    %v497 = vadd.f32 %v97, %v496
    %498 = vmatprep.mubr.bf16.mxu0 0
    %499 = vmatmul.mubr.bf16.gmra.mrb[0].mxu0 %v169
    %v500 = vpop.f32.mrb[0].mxu0
    %v501 = vadd.f32 %v93, %v500
    %v502 = vpop.f32.mrb[0].mxu0
    %v503 = vadd.f32 %v97, %v502
    %v504 = vpop.f32.mrb[0].mxu0
    %v505 = vadd.f32 %v93, %v504
    %v506 = vpop.f32.mrb[0].mxu0
    %v507 = vadd.f32 %v97, %v506
    %508 = vmatprep.mubr.bf16.mxu0 0
    %509 = vmatmul.mubr.bf16.gmra.mrb[0].mxu0 %v172
    %v510 = vpop.f32.mrb[0].mxu0
    %v511 = vadd.f32 %v93, %v510
    %v512 = vpop.f32.mrb[0].mxu0
    %v513 = vadd.f32 %v97, %v512
    %v514 = vpop.f32.mrb[0].mxu0
    %v515 = vadd.f32 %v93, %v514
    %v516 = vpop.f32.mrb[0].mxu0
    %v517 = vadd.f32 %v97, %v516
    %518 = vmatprep.mubr.bf16.mxu0 0
    %519 = vmatmul.mubr.bf16.gmra.mrb[0].mxu0 %v175
    %v520 = vpop.f32.mrb[0].mxu0
    %v521 = vadd.f32 %v93, %v520
    %v522 = vpop.f32.mrb[0].mxu0
    %v523 = vadd.f32 %v97, %v522
    %v524 = vpop.f32.mrb[0].mxu0
    %v525 = vadd.f32 %v93, %v524
    %v526 = vpop.f32.mrb[0].mxu0
    %v527 = vadd.f32 %v97, %v526
    %528 = vmatprep.mubr.bf16.mxu0 0
    %529 = vmatmul.mubr.bf16.gmra.mrb[0].mxu0 %v178
    %v530 = vpop.f32.mrb[0].mxu0
    %v531 = vadd.f32 %v93, %v530
    %v532 = vpop.f32.mrb[0].mxu0
    %v533 = vadd.f32 %v97, %v532
    %v534 = vpop.f32.mrb[0].mxu0
    %v535 = vadd.f32 %v93, %v534
    %v536 = vpop.f32.mrb[0].mxu0
    %v537 = vadd.f32 %v97, %v536
    %538 = vmatprep.mubr.bf16.mxu0 0
    %539 = vmatmul.mubr.bf16.gmra.mrb[0].mxu0 %v181
    %v540 = vpop.f32.mrb[0].mxu0
    %v541 = vadd.f32 %v93, %v540
    %v542 = vpop.f32.mrb[0].mxu0
    %v543 = vadd.f32 %v97, %v542
    %v544 = vpop.f32.mrb[0].mxu0
    %v545 = vadd.f32 %v93, %v544
    %v546 = vpop.f32.mrb[0].mxu0
    %v547 = vadd.f32 %v97, %v546
    %548 = vmatprep.mubr.bf16.mxu0 0
    %549 = vmatmul.mubr.bf16.gmra.mrb[0].mxu0 %v184
    %v550 = vpop.f32.mrb[0].mxu0
    %v551 = vadd.f32 %v93, %v550
    %v552 = vpop.f32.mrb[0].mxu0
    %v553 = vadd.f32 %v97, %v552
    %v554 = vpop.f32.mrb[0].mxu0
    %v555 = vadd.f32 %v93, %v554
    %v556 = vpop.f32.mrb[0].mxu0
    %v557 = vadd.f32 %v97, %v556
    %558 = vmatprep.mubr.bf16.mxu0 0
    %559 = vmatmul.mubr.bf16.gmra.mrb[0].mxu0 %v187
    %v560 = vpop.f32.mrb[0].mxu0
    %v561 = vadd.f32 %v93, %v560
    %v562 = vpop.f32.mrb[0].mxu0
    %v563 = vadd.f32 %v97, %v562
    %v564 = vpop.f32.mrb[0].mxu0
    %v565 = vadd.f32 %v93, %v564
    %v566 = vpop.f32.mrb[0].mxu0
    %v567 = vadd.f32 %v97, %v566
    %568 = vmatprep.mubr.bf16.mxu0 0
    %569 = vmatmul.mubr.bf16.gmra.mrb[0].mxu0 %v190
    %v570 = vpop.f32.mrb[0].mxu0
    %v571 = vadd.f32 %v93, %v570
    %v572 = vpop.f32.mrb[0].mxu0
    %v573 = vadd.f32 %v97, %v572
    %v574 = vpop.f32.mrb[0].mxu0
    %v575 = vadd.f32 %v93, %v574
    %v576 = vpop.f32.mrb[0].mxu0
    %v577 = vadd.f32 %v97, %v576
    %578 = vmatprep.mubr.bf16.mxu0 0
    %579 = vmatmul.mubr.bf16.gmra.mrb[0].mxu0 %v193
    %v580 = vpop.f32.mrb[0].mxu0
    %v581 = vadd.f32 %v93, %v580
    %v582 = vpop.f32.mrb[0].mxu0
    %v583 = vadd.f32 %v97, %v582
    %v584 = vpop.f32.mrb[0].mxu0
    %v585 = vadd.f32 %v93, %v584
    %v586 = vpop.f32.mrb[0].mxu0
    %v587 = vadd.f32 %v97, %v586
    %588 = vmatprep.mubr.bf16.mxu0 0
    %589 = vmatmul.mubr.bf16.gmra.mrb[0].mxu0 %v196
    %v590 = vpop.f32.mrb[0].mxu0
    %v591 = vadd.f32 %v93, %v590
    %v592 = vpop.f32.mrb[0].mxu0
    %v593 = vadd.f32 %v97, %v592
    %v594 = vpop.f32.mrb[0].mxu0
    %v595 = vadd.f32 %v93, %v594
    %v596 = vpop.f32.mrb[0].mxu0
    %v597 = vadd.f32 %v97, %v596
    %598 = vmatprep.mubr.bf16.mxu0 0
    %599 = vmatmul.mubr.bf16.gmra.mrb[0].mxu0 %v199
    %v600 = vpop.f32.mrb[0].mxu0
    %v601 = vadd.f32 %v93, %v600
    %v602 = vpop.f32.mrb[0].mxu0
    %v603 = vadd.f32 %v97, %v602
    %v604 = vpop.f32.mrb[0].mxu0
    %v605 = vadd.f32 %v93, %v604
    %v606 = vpop.f32.mrb[0].mxu0
    %v607 = vadd.f32 %v97, %v606
    %608 = vdwg.mxu0
    %609 = vmatprep.subr.bf16.mxu0 %v218
    %610 = vmatpush1.bf16.msra.mxu0 %v215
    %611 = vmatprep.subr.bf16.mxu0 0
    %612 = vmatpush1.bf16.msra.mxu0 0
    %613 = vmatprep.subr.bf16.mxu0 0
    %614 = vmatpush1.bf16.msra.mxu0 0
    %615 = vmatprep.subr.bf16.mxu0 0
    %616 = vmatpush1.bf16.msra.mxu0 0
    %617 = vmatprep.subr.bf16.mxu0 0
    %618 = vmatpush1.bf16.msra.mxu0 0
    %619 = vmatprep.subr.bf16.mxu0 0
    %620 = vmatpush1.bf16.msra.mxu0 0
    %621 = vmatprep.subr.bf16.mxu0 0
    %622 = vmatpush1.bf16.msra.mxu0 0
    %623 = vmatprep.subr.bf16.mxu0 0
    %624 = vmatpush1.bf16.msra.mxu0 0
    %625 = vmatprep.subr.bf16.mxu0 0
    %626 = vmatpush1.bf16.msra.mxu0 0
    %627 = vmatprep.subr.bf16.mxu0 0
    %628 = vmatpush1.bf16.msra.mxu0 0
    %629 = vmatprep.subr.bf16.mxu0 0
    %630 = vmatpush1.bf16.msra.mxu0 0
    %631 = vmatprep.subr.bf16.mxu0 0
    %632 = vmatpush1.bf16.msra.mxu0 0
    %633 = vmatprep.subr.bf16.mxu0 0
    %634 = vmatpush1.bf16.msra.mxu0 0
    %635 = vmatprep.subr.bf16.mxu0 0
    %636 = vmatpush1.bf16.msra.mxu0 0
    %637 = vmatprep.subr.bf16.mxu0 0
    %638 = vmatpush1.bf16.msra.mxu0 0
    %639 = vmatprep.subr.bf16.mxu0 0
    %640 = vmatpush1.bf16.msra.mxu0 0
    %641 = vmatprep.mubr.bf16.mxu0 0
    %642 = vmatmul.mubr.bf16.gmra.mrb[0].mxu0 %v154
    %v643 = vpop.f32.mrb[0].mxu0
    %v644 = vadd.f32 %v101, %v643
    %v645 = vpop.f32.mrb[0].mxu0
    %v646 = vadd.f32 %v105, %v645
    %v647 = vpop.f32.mrb[0].mxu0
    %v648 = vadd.f32 %v101, %v647
    %v649 = vpop.f32.mrb[0].mxu0
    %v650 = vadd.f32 %v105, %v649
    %651 = vmatprep.mubr.bf16.mxu0 0
    %652 = vmatmul.mubr.bf16.gmra.mrb[0].mxu0 %v157
    %v653 = vpop.f32.mrb[0].mxu0
    %v654 = vadd.f32 %v101, %v653
    %v655 = vpop.f32.mrb[0].mxu0
    %v656 = vadd.f32 %v105, %v655
    %v657 = vpop.f32.mrb[0].mxu0
    %v658 = vadd.f32 %v101, %v657
    %v659 = vpop.f32.mrb[0].mxu0
    %v660 = vadd.f32 %v105, %v659
    %661 = vmatprep.mubr.bf16.mxu0 0
    %662 = vmatmul.mubr.bf16.gmra.mrb[0].mxu0 %v160
    %v663 = vpop.f32.mrb[0].mxu0
    %v664 = vadd.f32 %v101, %v663
    %v665 = vpop.f32.mrb[0].mxu0
    %v666 = vadd.f32 %v105, %v665
    %v667 = vpop.f32.mrb[0].mxu0
    %v668 = vadd.f32 %v101, %v667
    %v669 = vpop.f32.mrb[0].mxu0
    %v670 = vadd.f32 %v105, %v669
    %671 = vmatprep.mubr.bf16.mxu0 0
    %672 = vmatmul.mubr.bf16.gmra.mrb[0].mxu0 %v163
    %v673 = vpop.f32.mrb[0].mxu0
    %v674 = vadd.f32 %v101, %v673
    %v675 = vpop.f32.mrb[0].mxu0
    %v676 = vadd.f32 %v105, %v675
    %v677 = vpop.f32.mrb[0].mxu0
    %v678 = vadd.f32 %v101, %v677
    %v679 = vpop.f32.mrb[0].mxu0
    %v680 = vadd.f32 %v105, %v679
    %681 = vmatprep.mubr.bf16.mxu0 0
    %682 = vmatmul.mubr.bf16.gmra.mrb[0].mxu0 %v166
    %v683 = vpop.f32.mrb[0].mxu0
    %v684 = vadd.f32 %v101, %v683
    %v685 = vpop.f32.mrb[0].mxu0
    %v686 = vadd.f32 %v105, %v685
    %v687 = vpop.f32.mrb[0].mxu0
    %v688 = vadd.f32 %v101, %v687
    %v689 = vpop.f32.mrb[0].mxu0
    %v690 = vadd.f32 %v105, %v689
    %691 = vmatprep.mubr.bf16.mxu0 0
    %692 = vmatmul.mubr.bf16.gmra.mrb[0].mxu0 %v169
    %v693 = vpop.f32.mrb[0].mxu0
    %v694 = vadd.f32 %v101, %v693
    %v695 = vpop.f32.mrb[0].mxu0
    %v696 = vadd.f32 %v105, %v695
    %v697 = vpop.f32.mrb[0].mxu0
    %v698 = vadd.f32 %v101, %v697
    %v699 = vpop.f32.mrb[0].mxu0
    %v700 = vadd.f32 %v105, %v699
    %701 = vmatprep.mubr.bf16.mxu0 0
    %702 = vmatmul.mubr.bf16.gmra.mrb[0].mxu0 %v172
    %v703 = vpop.f32.mrb[0].mxu0
    %v704 = vadd.f32 %v101, %v703
    %v705 = vpop.f32.mrb[0].mxu0
    %v706 = vadd.f32 %v105, %v705
    %v707 = vpop.f32.mrb[0].mxu0
    %v708 = vadd.f32 %v101, %v707
    %v709 = vpop.f32.mrb[0].mxu0
    %v710 = vadd.f32 %v105, %v709
    %711 = vmatprep.mubr.bf16.mxu0 0
    %712 = vmatmul.mubr.bf16.gmra.mrb[0].mxu0 %v175
    %v713 = vpop.f32.mrb[0].mxu0
    %v714 = vadd.f32 %v101, %v713
    %v715 = vpop.f32.mrb[0].mxu0
    %v716 = vadd.f32 %v105, %v715
    %v717 = vpop.f32.mrb[0].mxu0
    %v718 = vadd.f32 %v101, %v717
    %v719 = vpop.f32.mrb[0].mxu0
    %v720 = vadd.f32 %v105, %v719
    %721 = vmatprep.mubr.bf16.mxu0 0
    %722 = vmatmul.mubr.bf16.gmra.mrb[0].mxu0 %v178
    %v723 = vpop.f32.mrb[0].mxu0
    %v724 = vadd.f32 %v101, %v723
    %v725 = vpop.f32.mrb[0].mxu0
    %v726 = vadd.f32 %v105, %v725
    %v727 = vpop.f32.mrb[0].mxu0
    %v728 = vadd.f32 %v101, %v727
    %v729 = vpop.f32.mrb[0].mxu0
    %v730 = vadd.f32 %v105, %v729
    %731 = vmatprep.mubr.bf16.mxu0 0
    %732 = vmatmul.mubr.bf16.gmra.mrb[0].mxu0 %v181
    %v733 = vpop.f32.mrb[0].mxu0
    %v734 = vadd.f32 %v101, %v733
    %v735 = vpop.f32.mrb[0].mxu0
    %v736 = vadd.f32 %v105, %v735
    %v737 = vpop.f32.mrb[0].mxu0
    %v738 = vadd.f32 %v101, %v737
    %v739 = vpop.f32.mrb[0].mxu0
    %v740 = vadd.f32 %v105, %v739
    %741 = vmatprep.mubr.bf16.mxu0 0
    %742 = vmatmul.mubr.bf16.gmra.mrb[0].mxu0 %v184
    %v743 = vpop.f32.mrb[0].mxu0
    %v744 = vadd.f32 %v101, %v743
    %v745 = vpop.f32.mrb[0].mxu0
    %v746 = vadd.f32 %v105, %v745
    %v747 = vpop.f32.mrb[0].mxu0
    %v748 = vadd.f32 %v101, %v747
    %v749 = vpop.f32.mrb[0].mxu0
    %v750 = vadd.f32 %v105, %v749
    %751 = vmatprep.mubr.bf16.mxu0 0
    %752 = vmatmul.mubr.bf16.gmra.mrb[0].mxu0 %v187
    %v753 = vpop.f32.mrb[0].mxu0
    %v754 = vadd.f32 %v101, %v753
    %v755 = vpop.f32.mrb[0].mxu0
    %v756 = vadd.f32 %v105, %v755
    %v757 = vpop.f32.mrb[0].mxu0
    %v758 = vadd.f32 %v101, %v757
    %v759 = vpop.f32.mrb[0].mxu0
    %v760 = vadd.f32 %v105, %v759
    %761 = vmatprep.mubr.bf16.mxu0 0
    %762 = vmatmul.mubr.bf16.gmra.mrb[0].mxu0 %v190
    %v763 = vpop.f32.mrb[0].mxu0
    %v764 = vadd.f32 %v101, %v763
    %v765 = vpop.f32.mrb[0].mxu0
    %v766 = vadd.f32 %v105, %v765
    %v767 = vpop.f32.mrb[0].mxu0
    %v768 = vadd.f32 %v101, %v767
    %v769 = vpop.f32.mrb[0].mxu0
    %v770 = vadd.f32 %v105, %v769
    %771 = vmatprep.mubr.bf16.mxu0 0
    %772 = vmatmul.mubr.bf16.gmra.mrb[0].mxu0 %v193
    %v773 = vpop.f32.mrb[0].mxu0
    %v774 = vadd.f32 %v101, %v773
    %v775 = vpop.f32.mrb[0].mxu0
    %v776 = vadd.f32 %v105, %v775
    %v777 = vpop.f32.mrb[0].mxu0
    %v778 = vadd.f32 %v101, %v777
    %v779 = vpop.f32.mrb[0].mxu0
    %v780 = vadd.f32 %v105, %v779
    %781 = vmatprep.mubr.bf16.mxu0 0
    %782 = vmatmul.mubr.bf16.gmra.mrb[0].mxu0 %v196
    %v783 = vpop.f32.mrb[0].mxu0
    %v784 = vadd.f32 %v101, %v783
    %v785 = vpop.f32.mrb[0].mxu0
    %v786 = vadd.f32 %v105, %v785
    %v787 = vpop.f32.mrb[0].mxu0
    %v788 = vadd.f32 %v101, %v787
    %v789 = vpop.f32.mrb[0].mxu0
    %v790 = vadd.f32 %v105, %v789
    %791 = vmatprep.mubr.bf16.mxu0 0
    %792 = vmatmul.mubr.bf16.gmra.mrb[0].mxu0 %v199
    %v793 = vpop.f32.mrb[0].mxu0
    %v794 = vadd.f32 %v101, %v793
    %v795 = vpop.f32.mrb[0].mxu0
    %v796 = vadd.f32 %v105, %v795
    %v797 = vpop.f32.mrb[0].mxu0
    %v798 = vadd.f32 %v101, %v797
    %v799 = vpop.f32.mrb[0].mxu0
    %v800 = vadd.f32 %v105, %v799
    %801 = vdwg.mxu0
    %802 = vmatprep.subr.bf16.mxu0 0
    %803 = vmatpush1.bf16.msra.mxu0 %v221
    %804 = vmatprep.subr.bf16.mxu0 0
    %805 = vmatpush1.bf16.msra.mxu0 0
    %806 = vmatprep.subr.bf16.mxu0 0
    %807 = vmatpush1.bf16.msra.mxu0 0
    %808 = vmatprep.subr.bf16.mxu0 0
    %809 = vmatpush1.bf16.msra.mxu0 0
    %810 = vmatprep.subr.bf16.mxu0 0
    %811 = vmatpush1.bf16.msra.mxu0 0
    %812 = vmatprep.subr.bf16.mxu0 0
    %813 = vmatpush1.bf16.msra.mxu0 0
    %814 = vmatprep.subr.bf16.mxu0 0
    %815 = vmatpush1.bf16.msra.mxu0 0
    %816 = vmatprep.subr.bf16.mxu0 0
    %817 = vmatpush1.bf16.msra.mxu0 0
    %818 = vmatprep.subr.bf16.mxu0 0
    %819 = vmatpush1.bf16.msra.mxu0 0
    %820 = vmatprep.subr.bf16.mxu0 0
    %821 = vmatpush1.bf16.msra.mxu0 0
    %822 = vmatprep.subr.bf16.mxu0 0
    %823 = vmatpush1.bf16.msra.mxu0 0
    %824 = vmatprep.subr.bf16.mxu0 0
    %825 = vmatpush1.bf16.msra.mxu0 0
    %826 = vmatprep.subr.bf16.mxu0 0
    %827 = vmatpush1.bf16.msra.mxu0 0
    %828 = vmatprep.subr.bf16.mxu0 0
    %829 = vmatpush1.bf16.msra.mxu0 0
    %830 = vmatprep.subr.bf16.mxu0 0
    %831 = vmatpush1.bf16.msra.mxu0 0
    %832 = vmatprep.subr.bf16.mxu0 0
    %833 = vmatpush1.bf16.msra.mxu0 0
    %834 = vmatprep.mubr.bf16.mxu0 0
    %835 = vmatmul.mubr.bf16.gmra.mrb[0].mxu0 %v154
    %v836 = vpop.f32.mrb[0].mxu0
    %v837 = vadd.f32 %v109, %v836
    %v838 = vpop.f32.mrb[0].mxu0
    %v839 = vpop.f32.mrb[0].mxu0
    %v840 = vadd.f32 %v109, %v839
    %v841 = vpop.f32.mrb[0].mxu0
    %842 = vmatprep.mubr.bf16.mxu0 0
    %843 = vmatmul.mubr.bf16.gmra.mrb[0].mxu0 %v157
    %v844 = vpop.f32.mrb[0].mxu0
    %v845 = vadd.f32 %v109, %v844
    %v846 = vpop.f32.mrb[0].mxu0
    %v847 = vpop.f32.mrb[0].mxu0
    %v848 = vadd.f32 %v109, %v847
    %v849 = vpop.f32.mrb[0].mxu0
    %850 = vmatprep.mubr.bf16.mxu0 0
    %851 = vmatmul.mubr.bf16.gmra.mrb[0].mxu0 %v160
    %v852 = vpop.f32.mrb[0].mxu0
    %v853 = vadd.f32 %v109, %v852
    %v854 = vpop.f32.mrb[0].mxu0
    %v855 = vpop.f32.mrb[0].mxu0
    %v856 = vadd.f32 %v109, %v855
    %v857 = vpop.f32.mrb[0].mxu0
    %858 = vmatprep.mubr.bf16.mxu0 0
    %859 = vmatmul.mubr.bf16.gmra.mrb[0].mxu0 %v163
    %v860 = vpop.f32.mrb[0].mxu0
    %v861 = vadd.f32 %v109, %v860
    %v862 = vpop.f32.mrb[0].mxu0
    %v863 = vpop.f32.mrb[0].mxu0
    %v864 = vadd.f32 %v109, %v863
    %v865 = vpop.f32.mrb[0].mxu0
    %866 = vmatprep.mubr.bf16.mxu0 0
    %867 = vmatmul.mubr.bf16.gmra.mrb[0].mxu0 %v166
    %v868 = vpop.f32.mrb[0].mxu0
    %v869 = vadd.f32 %v109, %v868
    %v870 = vpop.f32.mrb[0].mxu0
    %v871 = vpop.f32.mrb[0].mxu0
    %v872 = vadd.f32 %v109, %v871
    %v873 = vpop.f32.mrb[0].mxu0
    %874 = vmatprep.mubr.bf16.mxu0 0
    %875 = vmatmul.mubr.bf16.gmra.mrb[0].mxu0 %v169
    %v876 = vpop.f32.mrb[0].mxu0
    %v877 = vadd.f32 %v109, %v876
    %v878 = vpop.f32.mrb[0].mxu0
    %v879 = vpop.f32.mrb[0].mxu0
    %v880 = vadd.f32 %v109, %v879
    %v881 = vpop.f32.mrb[0].mxu0
    %882 = vmatprep.mubr.bf16.mxu0 0
    %883 = vmatmul.mubr.bf16.gmra.mrb[0].mxu0 %v172
    %v884 = vpop.f32.mrb[0].mxu0
    %v885 = vadd.f32 %v109, %v884
    %v886 = vpop.f32.mrb[0].mxu0
    %v887 = vpop.f32.mrb[0].mxu0
    %v888 = vadd.f32 %v109, %v887
    %v889 = vpop.f32.mrb[0].mxu0
    %890 = vmatprep.mubr.bf16.mxu0 0
    %891 = vmatmul.mubr.bf16.gmra.mrb[0].mxu0 %v175
    %v892 = vpop.f32.mrb[0].mxu0
    %v893 = vadd.f32 %v109, %v892
    %v894 = vpop.f32.mrb[0].mxu0
    %v895 = vpop.f32.mrb[0].mxu0
    %v896 = vadd.f32 %v109, %v895
    %v897 = vpop.f32.mrb[0].mxu0
    %898 = vmatprep.mubr.bf16.mxu0 0
    %899 = vmatmul.mubr.bf16.gmra.mrb[0].mxu0 %v178
    %v900 = vpop.f32.mrb[0].mxu0
    %v901 = vadd.f32 %v109, %v900
    %v902 = vpop.f32.mrb[0].mxu0
    %v903 = vpop.f32.mrb[0].mxu0
    %v904 = vadd.f32 %v109, %v903
    %v905 = vpop.f32.mrb[0].mxu0
    %906 = vmatprep.mubr.bf16.mxu0 0
    %907 = vmatmul.mubr.bf16.gmra.mrb[0].mxu0 %v181
    %v908 = vpop.f32.mrb[0].mxu0
    %v909 = vadd.f32 %v109, %v908
    %v910 = vpop.f32.mrb[0].mxu0
    %v911 = vpop.f32.mrb[0].mxu0
    %v912 = vadd.f32 %v109, %v911
    %v913 = vpop.f32.mrb[0].mxu0
    %914 = vmatprep.mubr.bf16.mxu0 0
    %915 = vmatmul.mubr.bf16.gmra.mrb[0].mxu0 %v184
    %v916 = vpop.f32.mrb[0].mxu0
    %v917 = vadd.f32 %v109, %v916
    %v918 = vpop.f32.mrb[0].mxu0
    %v919 = vpop.f32.mrb[0].mxu0
    %v920 = vadd.f32 %v109, %v919
    %v921 = vpop.f32.mrb[0].mxu0
    %922 = vmatprep.mubr.bf16.mxu0 0
    %923 = vmatmul.mubr.bf16.gmra.mrb[0].mxu0 %v187
    %v924 = vpop.f32.mrb[0].mxu0
    %v925 = vadd.f32 %v109, %v924
    %v926 = vpop.f32.mrb[0].mxu0
    %v927 = vpop.f32.mrb[0].mxu0
    %v928 = vadd.f32 %v109, %v927
    %v929 = vpop.f32.mrb[0].mxu0
    %930 = vmatprep.mubr.bf16.mxu0 0
    %931 = vmatmul.mubr.bf16.gmra.mrb[0].mxu0 %v190
    %v932 = vpop.f32.mrb[0].mxu0
    %v933 = vadd.f32 %v109, %v932
    %v934 = vpop.f32.mrb[0].mxu0
    %v935 = vpop.f32.mrb[0].mxu0
    %v936 = vadd.f32 %v109, %v935
    %v937 = vpop.f32.mrb[0].mxu0
    %938 = vmatprep.mubr.bf16.mxu0 0
    %939 = vmatmul.mubr.bf16.gmra.mrb[0].mxu0 %v193
    %v940 = vpop.f32.mrb[0].mxu0
    %v941 = vadd.f32 %v109, %v940
    %v942 = vpop.f32.mrb[0].mxu0
    %v943 = vpop.f32.mrb[0].mxu0
    %v944 = vadd.f32 %v109, %v943
    %v945 = vpop.f32.mrb[0].mxu0
    %946 = vmatprep.mubr.bf16.mxu0 0
    %947 = vmatmul.mubr.bf16.gmra.mrb[0].mxu0 %v196
    %v948 = vpop.f32.mrb[0].mxu0
    %v949 = vadd.f32 %v109, %v948
    %v950 = vpop.f32.mrb[0].mxu0
    %v951 = vpop.f32.mrb[0].mxu0
    %v952 = vadd.f32 %v109, %v951
    %v953 = vpop.f32.mrb[0].mxu0
    %954 = vmatprep.mubr.bf16.mxu0 0
    %955 = vmatmul.mubr.bf16.gmra.mrb[0].mxu0 %v199
    %v956 = vpop.f32.mrb[0].mxu0
    %v957 = vadd.f32 %v109, %v956
    %v958 = vpop.f32.mrb[0].mxu0
    %v959 = vpop.f32.mrb[0].mxu0
    %v960 = vadd.f32 %v109, %v959
    %v961 = vpop.f32.mrb[0].mxu0
    %962 = vdwg.mxu0
    %v963 = vtanh.pop %v258
    %v964 = vtanh.pop %v262
    %v965 = vtanh.pop %v268
    %v966 = vtanh.pop %v272
    %v967 = vtanh.pop %v278
    %v968 = vtanh.pop %v282
    %v969 = vtanh.pop %v288
    %v970 = vtanh.pop %v292
    %v971 = vtanh.pop %v298
    %v972 = vtanh.pop %v302
    %v973 = vtanh.pop %v308
    %v974 = vtanh.pop %v312
    %v975 = vtanh.pop %v318
    %v976 = vtanh.pop %v322
    %v977 = vtanh.pop %v328
    %v978 = vtanh.pop %v332
    %v979 = vtanh.pop %v338
    %v980 = vtanh.pop %v342
    %v981 = vtanh.pop %v348
    %v982 = vtanh.pop %v352
    %v983 = vtanh.pop %v358
    %v984 = vtanh.pop %v362
    %v985 = vtanh.pop %v368
    %v986 = vtanh.pop %v372
    %v987 = vtanh.pop %v378
    %v988 = vtanh.pop %v382
    %v989 = vtanh.pop %v388
    %v990 = vtanh.pop %v392
    %v991 = vtanh.pop %v398
    %v992 = vtanh.pop %v402
    %v993 = vtanh.pop %v408
    %v994 = vtanh.pop %v412
    %v995 = vpack.c.bf16 %v964, %v963
    %v996 = vpack.c.bf16 %v966, %v965
    %v997 = vpack.c.bf16 %v968, %v967
    %v998 = vpack.c.bf16 %v970, %v969
    %v999 = vpack.c.bf16 %v972, %v971
    %v1000 = vpack.c.bf16 %v974, %v973
    %v1001 = vpack.c.bf16 %v976, %v975
    %v1002 = vpack.c.bf16 %v978, %v977
    %v1003 = vpack.c.bf16 %v980, %v979
    %v1004 = vpack.c.bf16 %v982, %v981
    %v1005 = vpack.c.bf16 %v984, %v983
    %v1006 = vpack.c.bf16 %v986, %v985
    %v1007 = vpack.c.bf16 %v988, %v987
    %v1008 = vpack.c.bf16 %v990, %v989
    %v1009 = vpack.c.bf16 %v992, %v991
    %v1010 = vpack.c.bf16 %v994, %v993
    %v1011 = vld [vmem:[%s3] sm:$0xf]
    %v1012 = vld [vmem:[%s3 + $0x4] sm:$0xf]
    %v1013 = vld [vmem:[%s3 + $0x8] sm:$0xf]
    %v1014 = vld [vmem:[%s3 + $0xc] sm:$0xf]
    %v1019 = vunpack.c.l.b16 %v1011
    %v1020 = vunpack.c.l.b16 %v1012
    %v1021 = vunpack.c.l.b16 %v1013
    %v1022 = vunpack.c.l.b16 %v1014
    %v1023 = vpack.c.b16 %v1020, %v1019
    %v1024 = vpack.c.b16 %v1022, %v1021
    %vm1027 = vcmask 261120
    %v1029 = vsel %vm1027, %v995, 0
    %v1032 = vsel %vm1027, %v996, 0
    %v1035 = vsel %vm1027, %v997, 0
    %v1038 = vsel %vm1027, %v998, 0
    %v1041 = vsel %vm1027, %v999, 0
    %v1044 = vsel %vm1027, %v1000, 0
    %v1047 = vsel %vm1027, %v1001, 0
    %v1050 = vsel %vm1027, %v1002, 0
    %v1053 = vsel %vm1027, %v1003, 0
    %v1056 = vsel %vm1027, %v1004, 0
    %v1059 = vsel %vm1027, %v1005, 0
    %v1062 = vsel %vm1027, %v1006, 0
    %v1065 = vsel %vm1027, %v1007, 0
    %v1068 = vsel %vm1027, %v1008, 0
    %v1071 = vsel %vm1027, %v1009, 0
    %v1074 = vsel %vm1027, %v1010, 0
    %1076 = vmatprep.subr.bf16.mxu0 0
    %1077 = vmatpush1.bf16.msra.mxu0 %v1023
    %1078 = vmatprep.subr.bf16.mxu0 0
    %1079 = vmatpush1.bf16.msra.mxu0 %v1024
    %1080 = vmatprep.subr.bf16.mxu0 0
    %1081 = vmatpush1.bf16.msra.mxu0 0
    %1082 = vmatprep.subr.bf16.mxu0 0
    %1083 = vmatpush1.bf16.msra.mxu0 0
    %1084 = vmatprep.subr.bf16.mxu0 0
    %1085 = vmatpush1.bf16.msra.mxu0 0
    %1086 = vmatprep.subr.bf16.mxu0 0
    %1087 = vmatpush1.bf16.msra.mxu0 0
    %1088 = vmatprep.subr.bf16.mxu0 0
    %1089 = vmatpush1.bf16.msra.mxu0 0
    %1090 = vmatprep.subr.bf16.mxu0 0
    %1091 = vmatpush1.bf16.msra.mxu0 0
    %1092 = vmatprep.subr.bf16.mxu0 0
    %1093 = vmatpush1.bf16.msra.mxu0 0
    %1094 = vmatprep.subr.bf16.mxu0 0
    %1095 = vmatpush1.bf16.msra.mxu0 0
    %1096 = vmatprep.subr.bf16.mxu0 0
    %1097 = vmatpush1.bf16.msra.mxu0 0
    %1098 = vmatprep.subr.bf16.mxu0 0
    %1099 = vmatpush1.bf16.msra.mxu0 0
    %1100 = vmatprep.subr.bf16.mxu0 0
    %1101 = vmatpush1.bf16.msra.mxu0 0
    %1102 = vmatprep.subr.bf16.mxu0 0
    %1103 = vmatpush1.bf16.msra.mxu0 0
    %1104 = vmatprep.subr.bf16.mxu0 0
    %1105 = vmatpush1.bf16.msra.mxu0 0
    %1106 = vmatprep.subr.bf16.mxu0 0
    %1107 = vmatpush1.bf16.msra.mxu0 0
    %1108 = vmatprep.mubr.bf16.mxu0 0
    %1109 = vmatmul.mubr.bf16.gmra.mrb[0].mxu0 %v1029
    %v1110 = vpop.f32.mrb[0].mxu0
    %v1111 = vadd.f32 0.0, %v1110
    %v1112 = vpop.f32.mrb[0].mxu0
    %v1113 = vpop.f32.mrb[0].mxu0
    %v1114 = vadd.f32 0.0, %v1113
    %v1115 = vpop.f32.mrb[0].mxu0
    %1116 = vmatprep.mubr.bf16.mxu0 0
    %1117 = vmatmul.mubr.bf16.gmra.mrb[0].mxu0 %v1032
    %v1118 = vpop.f32.mrb[0].mxu0
    %v1119 = vadd.f32 0.0, %v1118
    %v1120 = vpop.f32.mrb[0].mxu0
    %v1121 = vpop.f32.mrb[0].mxu0
    %v1122 = vadd.f32 0.0, %v1121
    %v1123 = vpop.f32.mrb[0].mxu0
    %1124 = vmatprep.mubr.bf16.mxu0 0
    %1125 = vmatmul.mubr.bf16.gmra.mrb[0].mxu0 %v1035
    %v1126 = vpop.f32.mrb[0].mxu0
    %v1127 = vadd.f32 0.0, %v1126
    %v1128 = vpop.f32.mrb[0].mxu0
    %v1129 = vpop.f32.mrb[0].mxu0
    %v1130 = vadd.f32 0.0, %v1129
    %v1131 = vpop.f32.mrb[0].mxu0
    %1132 = vmatprep.mubr.bf16.mxu0 0
    %1133 = vmatmul.mubr.bf16.gmra.mrb[0].mxu0 %v1038
    %v1134 = vpop.f32.mrb[0].mxu0
    %v1135 = vadd.f32 0.0, %v1134
    %v1136 = vpop.f32.mrb[0].mxu0
    %v1137 = vpop.f32.mrb[0].mxu0
    %v1138 = vadd.f32 0.0, %v1137
    %v1139 = vpop.f32.mrb[0].mxu0
    %1140 = vmatprep.mubr.bf16.mxu0 0
    %1141 = vmatmul.mubr.bf16.gmra.mrb[0].mxu0 %v1041
    %v1142 = vpop.f32.mrb[0].mxu0
    %v1143 = vadd.f32 0.0, %v1142
    %v1144 = vpop.f32.mrb[0].mxu0
    %v1145 = vpop.f32.mrb[0].mxu0
    %v1146 = vadd.f32 0.0, %v1145
    %v1147 = vpop.f32.mrb[0].mxu0
    %1148 = vmatprep.mubr.bf16.mxu0 0
    %1149 = vmatmul.mubr.bf16.gmra.mrb[0].mxu0 %v1044
    %v1150 = vpop.f32.mrb[0].mxu0
    %v1151 = vadd.f32 0.0, %v1150
    %v1152 = vpop.f32.mrb[0].mxu0
    %v1153 = vpop.f32.mrb[0].mxu0
    %v1154 = vadd.f32 0.0, %v1153
    %v1155 = vpop.f32.mrb[0].mxu0
    %1156 = vmatprep.mubr.bf16.mxu0 0
    %1157 = vmatmul.mubr.bf16.gmra.mrb[0].mxu0 %v1047
    %v1158 = vpop.f32.mrb[0].mxu0
    %v1159 = vadd.f32 0.0, %v1158
    %v1160 = vpop.f32.mrb[0].mxu0
    %v1161 = vpop.f32.mrb[0].mxu0
    %v1162 = vadd.f32 0.0, %v1161
    %v1163 = vpop.f32.mrb[0].mxu0
    %1164 = vmatprep.mubr.bf16.mxu0 0
    %1165 = vmatmul.mubr.bf16.gmra.mrb[0].mxu0 %v1050
    %v1166 = vpop.f32.mrb[0].mxu0
    %v1167 = vadd.f32 0.0, %v1166
    %v1168 = vpop.f32.mrb[0].mxu0
    %v1169 = vpop.f32.mrb[0].mxu0
    %v1170 = vadd.f32 0.0, %v1169
    %v1171 = vpop.f32.mrb[0].mxu0
    %1172 = vmatprep.mubr.bf16.mxu0 0
    %1173 = vmatmul.mubr.bf16.gmra.mrb[0].mxu0 %v1053
    %v1174 = vpop.f32.mrb[0].mxu0
    %v1175 = vadd.f32 0.0, %v1174
    %v1176 = vpop.f32.mrb[0].mxu0
    %v1177 = vpop.f32.mrb[0].mxu0
    %v1178 = vadd.f32 0.0, %v1177
    %v1179 = vpop.f32.mrb[0].mxu0
    %1180 = vmatprep.mubr.bf16.mxu0 0
    %1181 = vmatmul.mubr.bf16.gmra.mrb[0].mxu0 %v1056
    %v1182 = vpop.f32.mrb[0].mxu0
    %v1183 = vadd.f32 0.0, %v1182
    %v1184 = vpop.f32.mrb[0].mxu0
    %v1185 = vpop.f32.mrb[0].mxu0
    %v1186 = vadd.f32 0.0, %v1185
    %v1187 = vpop.f32.mrb[0].mxu0
    %1188 = vmatprep.mubr.bf16.mxu0 0
    %1189 = vmatmul.mubr.bf16.gmra.mrb[0].mxu0 %v1059
    %v1190 = vpop.f32.mrb[0].mxu0
    %v1191 = vadd.f32 0.0, %v1190
    %v1192 = vpop.f32.mrb[0].mxu0
    %v1193 = vpop.f32.mrb[0].mxu0
    %v1194 = vadd.f32 0.0, %v1193
    %v1195 = vpop.f32.mrb[0].mxu0
    %1196 = vmatprep.mubr.bf16.mxu0 0
    %1197 = vmatmul.mubr.bf16.gmra.mrb[0].mxu0 %v1062
    %v1198 = vpop.f32.mrb[0].mxu0
    %v1199 = vadd.f32 0.0, %v1198
    %v1200 = vpop.f32.mrb[0].mxu0
    %v1201 = vpop.f32.mrb[0].mxu0
    %v1202 = vadd.f32 0.0, %v1201
    %v1203 = vpop.f32.mrb[0].mxu0
    %1204 = vmatprep.mubr.bf16.mxu0 0
    %1205 = vmatmul.mubr.bf16.gmra.mrb[0].mxu0 %v1065
    %v1206 = vpop.f32.mrb[0].mxu0
    %v1207 = vadd.f32 0.0, %v1206
    %v1208 = vpop.f32.mrb[0].mxu0
    %v1209 = vpop.f32.mrb[0].mxu0
    %v1210 = vadd.f32 0.0, %v1209
    %v1211 = vpop.f32.mrb[0].mxu0
    %1212 = vmatprep.mubr.bf16.mxu0 0
    %1213 = vmatmul.mubr.bf16.gmra.mrb[0].mxu0 %v1068
    %v1214 = vpop.f32.mrb[0].mxu0
    %v1215 = vadd.f32 0.0, %v1214
    %v1216 = vpop.f32.mrb[0].mxu0
    %v1217 = vpop.f32.mrb[0].mxu0
    %v1218 = vadd.f32 0.0, %v1217
    %v1219 = vpop.f32.mrb[0].mxu0
    %1220 = vmatprep.mubr.bf16.mxu0 0
    %1221 = vmatmul.mubr.bf16.gmra.mrb[0].mxu0 %v1071
    %v1222 = vpop.f32.mrb[0].mxu0
    %v1223 = vadd.f32 0.0, %v1222
    %v1224 = vpop.f32.mrb[0].mxu0
    %v1225 = vpop.f32.mrb[0].mxu0
    %v1226 = vadd.f32 0.0, %v1225
    %v1227 = vpop.f32.mrb[0].mxu0
    %1228 = vmatprep.mubr.bf16.mxu0 0
    %1229 = vmatmul.mubr.bf16.gmra.mrb[0].mxu0 %v1074
    %v1230 = vpop.f32.mrb[0].mxu0
    %v1231 = vadd.f32 0.0, %v1230
    %v1232 = vpop.f32.mrb[0].mxu0
    %v1233 = vpop.f32.mrb[0].mxu0
    %v1234 = vadd.f32 0.0, %v1233
    %v1235 = vpop.f32.mrb[0].mxu0
    %1236 = vdwg.mxu0
    %v1237 = vadd.f32 %v260, %v1111
    %v1238 = vadd.f32 %v264, %v1114
    %v1239 = vadd.f32 %v270, %v1119
    %v1240 = vadd.f32 %v274, %v1122
    %v1241 = vadd.f32 %v280, %v1127
    %v1242 = vadd.f32 %v284, %v1130
    %v1243 = vadd.f32 %v290, %v1135
    %v1244 = vadd.f32 %v294, %v1138
    %v1245 = vadd.f32 %v300, %v1143
    %v1246 = vadd.f32 %v304, %v1146
    %v1247 = vadd.f32 %v310, %v1151
    %v1248 = vadd.f32 %v314, %v1154
    %v1249 = vadd.f32 %v320, %v1159
    %v1250 = vadd.f32 %v324, %v1162
    %v1251 = vadd.f32 %v330, %v1167
    %v1252 = vadd.f32 %v334, %v1170
    %v1253 = vadd.f32 %v340, %v1175
    %v1254 = vadd.f32 %v344, %v1178
    %v1255 = vadd.f32 %v350, %v1183
    %v1256 = vadd.f32 %v354, %v1186
    %v1257 = vadd.f32 %v360, %v1191
    %v1258 = vadd.f32 %v364, %v1194
    %v1259 = vadd.f32 %v370, %v1199
    %v1260 = vadd.f32 %v374, %v1202
    %v1261 = vadd.f32 %v380, %v1207
    %v1262 = vadd.f32 %v384, %v1210
    %v1263 = vadd.f32 %v390, %v1215
    %v1264 = vadd.f32 %v394, %v1218
    %v1265 = vadd.f32 %v400, %v1223
    %v1266 = vadd.f32 %v404, %v1226
    %v1267 = vadd.f32 %v410, %v1231
    %v1268 = vadd.f32 %v414, %v1234
    %v1269 = vtanh.pop %v1237
    %v1270 = vtanh.pop %v1238
    %v1271 = vtanh.pop %v1239
    %v1272 = vtanh.pop %v1240
    %v1273 = vtanh.pop %v1241
    %v1274 = vtanh.pop %v1242
    %v1275 = vtanh.pop %v1243
    %v1276 = vtanh.pop %v1244
    %v1277 = vtanh.pop %v1245
    %v1278 = vtanh.pop %v1246
    %v1279 = vtanh.pop %v1247
    %v1280 = vtanh.pop %v1248
    %v1281 = vtanh.pop %v1249
    %v1282 = vtanh.pop %v1250
    %v1283 = vtanh.pop %v1251
    %v1284 = vtanh.pop %v1252
    %v1285 = vtanh.pop %v1253
    %v1286 = vtanh.pop %v1254
    %v1287 = vtanh.pop %v1255
    %v1288 = vtanh.pop %v1256
    %v1289 = vtanh.pop %v1257
    %v1290 = vtanh.pop %v1258
    %v1291 = vtanh.pop %v1259
    %v1292 = vtanh.pop %v1260
    %v1293 = vtanh.pop %v1261
    %v1294 = vtanh.pop %v1262
    %v1295 = vtanh.pop %v1263
    %v1296 = vtanh.pop %v1264
    %v1297 = vtanh.pop %v1265
    %v1298 = vtanh.pop %v1266
    %v1299 = vtanh.pop %v1267
    %v1300 = vtanh.pop %v1268
    %1333 = vrot.lane.b32.xlu0 %v1269, 64
    %v1334 = vpop.permute.xlu0 %1333
    %1335 = vrot.lane.b32.xlu0 %v1270, 64
    %v1336 = vpop.permute.xlu0 %1335
    %1337 = vrot.lane.b32.xlu0 %v1271, 64
    %v1338 = vpop.permute.xlu0 %1337
    %1339 = vrot.lane.b32.xlu0 %v1272, 64
    %v1340 = vpop.permute.xlu0 %1339
    %1341 = vrot.lane.b32.xlu0 %v1273, 64
    %v1342 = vpop.permute.xlu0 %1341
    %1343 = vrot.lane.b32.xlu0 %v1274, 64
    %v1344 = vpop.permute.xlu0 %1343
    %1345 = vrot.lane.b32.xlu0 %v1275, 64
    %v1346 = vpop.permute.xlu0 %1345
    %1347 = vrot.lane.b32.xlu0 %v1276, 64
    %v1348 = vpop.permute.xlu0 %1347
    %1349 = vrot.lane.b32.xlu0 %v1277, 64
    %v1350 = vpop.permute.xlu0 %1349
    %1351 = vrot.lane.b32.xlu0 %v1278, 64
    %v1352 = vpop.permute.xlu0 %1351
    %1353 = vrot.lane.b32.xlu0 %v1279, 64
    %v1354 = vpop.permute.xlu0 %1353
    %1355 = vrot.lane.b32.xlu0 %v1280, 64
    %v1356 = vpop.permute.xlu0 %1355
    %1357 = vrot.lane.b32.xlu0 %v1281, 64
    %v1358 = vpop.permute.xlu0 %1357
    %1359 = vrot.lane.b32.xlu0 %v1282, 64
    %v1360 = vpop.permute.xlu0 %1359
    %1361 = vrot.lane.b32.xlu0 %v1283, 64
    %v1362 = vpop.permute.xlu0 %1361
    %1363 = vrot.lane.b32.xlu0 %v1284, 64
    %v1364 = vpop.permute.xlu0 %1363
    %1365 = vrot.lane.b32.xlu0 %v1285, 64
    %v1366 = vpop.permute.xlu0 %1365
    %1367 = vrot.lane.b32.xlu0 %v1286, 64
    %v1368 = vpop.permute.xlu0 %1367
    %1369 = vrot.lane.b32.xlu0 %v1287, 64
    %v1370 = vpop.permute.xlu0 %1369
    %1371 = vrot.lane.b32.xlu0 %v1288, 64
    %v1372 = vpop.permute.xlu0 %1371
    %1373 = vrot.lane.b32.xlu0 %v1289, 64
    %v1374 = vpop.permute.xlu0 %1373
    %1375 = vrot.lane.b32.xlu0 %v1290, 64
    %v1376 = vpop.permute.xlu0 %1375
    %1377 = vrot.lane.b32.xlu0 %v1291, 64
    %v1378 = vpop.permute.xlu0 %1377
    %1379 = vrot.lane.b32.xlu0 %v1292, 64
    %v1380 = vpop.permute.xlu0 %1379
    %1381 = vrot.lane.b32.xlu0 %v1293, 64
    %v1382 = vpop.permute.xlu0 %1381
    %1383 = vrot.lane.b32.xlu0 %v1294, 64
    %v1384 = vpop.permute.xlu0 %1383
    %1385 = vrot.lane.b32.xlu0 %v1295, 64
    %v1386 = vpop.permute.xlu0 %1385
    %1387 = vrot.lane.b32.xlu0 %v1296, 64
    %v1388 = vpop.permute.xlu0 %1387
    %1389 = vrot.lane.b32.xlu0 %v1297, 64
    %v1390 = vpop.permute.xlu0 %1389
    %1391 = vrot.lane.b32.xlu0 %v1298, 64
    %v1392 = vpop.permute.xlu0 %1391
    %1393 = vrot.lane.b32.xlu0 %v1299, 64
    %v1394 = vpop.permute.xlu0 %1393
    %1395 = vrot.lane.b32.xlu0 %v1300, 64
    %v1396 = vpop.permute.xlu0 %1395
    %v1429 = vmul.f32 %v963, %v1334
    %v1430 = vmul.f32 %v964, %v1336
    %v1431 = vmul.f32 %v965, %v1338
    %v1432 = vmul.f32 %v966, %v1340
    %v1433 = vmul.f32 %v967, %v1342
    %v1434 = vmul.f32 %v968, %v1344
    %v1435 = vmul.f32 %v969, %v1346
    %v1436 = vmul.f32 %v970, %v1348
    %v1437 = vmul.f32 %v971, %v1350
    %v1438 = vmul.f32 %v972, %v1352
    %v1439 = vmul.f32 %v973, %v1354
    %v1440 = vmul.f32 %v974, %v1356
    %v1441 = vmul.f32 %v975, %v1358
    %v1442 = vmul.f32 %v976, %v1360
    %v1443 = vmul.f32 %v977, %v1362
    %v1444 = vmul.f32 %v978, %v1364
    %v1445 = vmul.f32 %v979, %v1366
    %v1446 = vmul.f32 %v980, %v1368
    %v1447 = vmul.f32 %v981, %v1370
    %v1448 = vmul.f32 %v982, %v1372
    %v1449 = vmul.f32 %v983, %v1374
    %v1450 = vmul.f32 %v984, %v1376
    %v1451 = vmul.f32 %v985, %v1378
    %v1452 = vmul.f32 %v986, %v1380
    %v1453 = vmul.f32 %v987, %v1382
    %v1454 = vmul.f32 %v988, %v1384
    %v1455 = vmul.f32 %v989, %v1386
    %v1456 = vmul.f32 %v990, %v1388
    %v1457 = vmul.f32 %v991, %v1390
    %v1458 = vmul.f32 %v992, %v1392
    %v1459 = vmul.f32 %v993, %v1394
    %v1460 = vmul.f32 %v994, %v1396
    %v1461 = vpack.c.bf16 %v1430, %v1429
    %v1462 = vpack.c.bf16 %v1432, %v1431
    %v1463 = vpack.c.bf16 %v1434, %v1433
    %v1464 = vpack.c.bf16 %v1436, %v1435
    %v1465 = vpack.c.bf16 %v1438, %v1437
    %v1466 = vpack.c.bf16 %v1440, %v1439
    %v1467 = vpack.c.bf16 %v1442, %v1441
    %v1468 = vpack.c.bf16 %v1444, %v1443
    %v1469 = vpack.c.bf16 %v1446, %v1445
    %v1470 = vpack.c.bf16 %v1448, %v1447
    %v1471 = vpack.c.bf16 %v1450, %v1449
    %v1472 = vpack.c.bf16 %v1452, %v1451
    %v1473 = vpack.c.bf16 %v1454, %v1453
    %v1474 = vpack.c.bf16 %v1456, %v1455
    %v1475 = vpack.c.bf16 %v1458, %v1457
    %v1476 = vpack.c.bf16 %v1460, %v1459
    %v1477 = vld [vmem:[%s4] sm:$0xf]
    %v1478 = vld [vmem:[%s4 + $0x4] sm:$0xf]
    %v1479 = vld [vmem:[%s4 + $0x8] sm:$0xf]
    %v1480 = vld [vmem:[%s4 + $0xc] sm:$0xf]
    %v1485 = vunpack.c.l.b16 %v1477
    %v1486 = vunpack.c.l.b16 %v1478
    %v1487 = vunpack.c.l.b16 %v1479
    %v1488 = vunpack.c.l.b16 %v1480
    %v1489 = vpack.c.b16 %v1486, %v1485
    %v1490 = vpack.c.b16 %v1488, %v1487
    %v1494 = vsel %vm1027, %v1461, 0
    %v1497 = vsel %vm1027, %v1462, 0
    %v1500 = vsel %vm1027, %v1463, 0
    %v1503 = vsel %vm1027, %v1464, 0
    %v1506 = vsel %vm1027, %v1465, 0
    %v1509 = vsel %vm1027, %v1466, 0
    %v1512 = vsel %vm1027, %v1467, 0
    %v1515 = vsel %vm1027, %v1468, 0
    %v1518 = vsel %vm1027, %v1469, 0
    %v1521 = vsel %vm1027, %v1470, 0
    %v1524 = vsel %vm1027, %v1471, 0
    %v1527 = vsel %vm1027, %v1472, 0
    %v1530 = vsel %vm1027, %v1473, 0
    %v1533 = vsel %vm1027, %v1474, 0
    %v1536 = vsel %vm1027, %v1475, 0
    %v1539 = vsel %vm1027, %v1476, 0
    %1541 = vmatprep.subr.bf16.mxu0 0
    %1542 = vmatpush1.bf16.msra.mxu0 %v1489
    %1543 = vmatprep.subr.bf16.mxu0 0
    %1544 = vmatpush1.bf16.msra.mxu0 %v1490
    %1545 = vmatprep.subr.bf16.mxu0 0
    %1546 = vmatpush1.bf16.msra.mxu0 0
    %1547 = vmatprep.subr.bf16.mxu0 0
    %1548 = vmatpush1.bf16.msra.mxu0 0
    %1549 = vmatprep.subr.bf16.mxu0 0
    %1550 = vmatpush1.bf16.msra.mxu0 0
    %1551 = vmatprep.subr.bf16.mxu0 0
    %1552 = vmatpush1.bf16.msra.mxu0 0
    %1553 = vmatprep.subr.bf16.mxu0 0
    %1554 = vmatpush1.bf16.msra.mxu0 0
    %1555 = vmatprep.subr.bf16.mxu0 0
    %1556 = vmatpush1.bf16.msra.mxu0 0
    %1557 = vmatprep.subr.bf16.mxu0 0
    %1558 = vmatpush1.bf16.msra.mxu0 0
    %1559 = vmatprep.subr.bf16.mxu0 0
    %1560 = vmatpush1.bf16.msra.mxu0 0
    %1561 = vmatprep.subr.bf16.mxu0 0
    %1562 = vmatpush1.bf16.msra.mxu0 0
    %1563 = vmatprep.subr.bf16.mxu0 0
    %1564 = vmatpush1.bf16.msra.mxu0 0
    %1565 = vmatprep.subr.bf16.mxu0 0
    %1566 = vmatpush1.bf16.msra.mxu0 0
    %1567 = vmatprep.subr.bf16.mxu0 0
    %1568 = vmatpush1.bf16.msra.mxu0 0
    %1569 = vmatprep.subr.bf16.mxu0 0
    %1570 = vmatpush1.bf16.msra.mxu0 0
    %1571 = vmatprep.subr.bf16.mxu0 0
    %1572 = vmatpush1.bf16.msra.mxu0 0
    %1573 = vmatprep.mubr.bf16.mxu0 0
    %1574 = vmatmul.mubr.bf16.gmra.mrb[0].mxu0 %v1494
    %v1575 = vpop.f32.mrb[0].mxu0
    %v1576 = vadd.f32 0.0, %v1575
    %v1577 = vpop.f32.mrb[0].mxu0
    %v1578 = vpop.f32.mrb[0].mxu0
    %v1579 = vadd.f32 0.0, %v1578
    %v1580 = vpop.f32.mrb[0].mxu0
    %1581 = vmatprep.mubr.bf16.mxu0 0
    %1582 = vmatmul.mubr.bf16.gmra.mrb[0].mxu0 %v1497
    %v1583 = vpop.f32.mrb[0].mxu0
    %v1584 = vadd.f32 0.0, %v1583
    %v1585 = vpop.f32.mrb[0].mxu0
    %v1586 = vpop.f32.mrb[0].mxu0
    %v1587 = vadd.f32 0.0, %v1586
    %v1588 = vpop.f32.mrb[0].mxu0
    %1589 = vmatprep.mubr.bf16.mxu0 0
    %1590 = vmatmul.mubr.bf16.gmra.mrb[0].mxu0 %v1500
    %v1591 = vpop.f32.mrb[0].mxu0
    %v1592 = vadd.f32 0.0, %v1591
    %v1593 = vpop.f32.mrb[0].mxu0
    %v1594 = vpop.f32.mrb[0].mxu0
    %v1595 = vadd.f32 0.0, %v1594
    %v1596 = vpop.f32.mrb[0].mxu0
    %1597 = vmatprep.mubr.bf16.mxu0 0
    %1598 = vmatmul.mubr.bf16.gmra.mrb[0].mxu0 %v1503
    %v1599 = vpop.f32.mrb[0].mxu0
    %v1600 = vadd.f32 0.0, %v1599
    %v1601 = vpop.f32.mrb[0].mxu0
    %v1602 = vpop.f32.mrb[0].mxu0
    %v1603 = vadd.f32 0.0, %v1602
    %v1604 = vpop.f32.mrb[0].mxu0
    %1605 = vmatprep.mubr.bf16.mxu0 0
    %1606 = vmatmul.mubr.bf16.gmra.mrb[0].mxu0 %v1506
    %v1607 = vpop.f32.mrb[0].mxu0
    %v1608 = vadd.f32 0.0, %v1607
    %v1609 = vpop.f32.mrb[0].mxu0
    %v1610 = vpop.f32.mrb[0].mxu0
    %v1611 = vadd.f32 0.0, %v1610
    %v1612 = vpop.f32.mrb[0].mxu0
    %1613 = vmatprep.mubr.bf16.mxu0 0
    %1614 = vmatmul.mubr.bf16.gmra.mrb[0].mxu0 %v1509
    %v1615 = vpop.f32.mrb[0].mxu0
    %v1616 = vadd.f32 0.0, %v1615
    %v1617 = vpop.f32.mrb[0].mxu0
    %v1618 = vpop.f32.mrb[0].mxu0
    %v1619 = vadd.f32 0.0, %v1618
    %v1620 = vpop.f32.mrb[0].mxu0
    %1621 = vmatprep.mubr.bf16.mxu0 0
    %1622 = vmatmul.mubr.bf16.gmra.mrb[0].mxu0 %v1512
    %v1623 = vpop.f32.mrb[0].mxu0
    %v1624 = vadd.f32 0.0, %v1623
    %v1625 = vpop.f32.mrb[0].mxu0
    %v1626 = vpop.f32.mrb[0].mxu0
    %v1627 = vadd.f32 0.0, %v1626
    %v1628 = vpop.f32.mrb[0].mxu0
    %1629 = vmatprep.mubr.bf16.mxu0 0
    %1630 = vmatmul.mubr.bf16.gmra.mrb[0].mxu0 %v1515
    %v1631 = vpop.f32.mrb[0].mxu0
    %v1632 = vadd.f32 0.0, %v1631
    %v1633 = vpop.f32.mrb[0].mxu0
    %v1634 = vpop.f32.mrb[0].mxu0
    %v1635 = vadd.f32 0.0, %v1634
    %v1636 = vpop.f32.mrb[0].mxu0
    %1637 = vmatprep.mubr.bf16.mxu0 0
    %1638 = vmatmul.mubr.bf16.gmra.mrb[0].mxu0 %v1518
    %v1639 = vpop.f32.mrb[0].mxu0
    %v1640 = vadd.f32 0.0, %v1639
    %v1641 = vpop.f32.mrb[0].mxu0
    %v1642 = vpop.f32.mrb[0].mxu0
    %v1643 = vadd.f32 0.0, %v1642
    %v1644 = vpop.f32.mrb[0].mxu0
    %1645 = vmatprep.mubr.bf16.mxu0 0
    %1646 = vmatmul.mubr.bf16.gmra.mrb[0].mxu0 %v1521
    %v1647 = vpop.f32.mrb[0].mxu0
    %v1648 = vadd.f32 0.0, %v1647
    %v1649 = vpop.f32.mrb[0].mxu0
    %v1650 = vpop.f32.mrb[0].mxu0
    %v1651 = vadd.f32 0.0, %v1650
    %v1652 = vpop.f32.mrb[0].mxu0
    %1653 = vmatprep.mubr.bf16.mxu0 0
    %1654 = vmatmul.mubr.bf16.gmra.mrb[0].mxu0 %v1524
    %v1655 = vpop.f32.mrb[0].mxu0
    %v1656 = vadd.f32 0.0, %v1655
    %v1657 = vpop.f32.mrb[0].mxu0
    %v1658 = vpop.f32.mrb[0].mxu0
    %v1659 = vadd.f32 0.0, %v1658
    %v1660 = vpop.f32.mrb[0].mxu0
    %1661 = vmatprep.mubr.bf16.mxu0 0
    %1662 = vmatmul.mubr.bf16.gmra.mrb[0].mxu0 %v1527
    %v1663 = vpop.f32.mrb[0].mxu0
    %v1664 = vadd.f32 0.0, %v1663
    %v1665 = vpop.f32.mrb[0].mxu0
    %v1666 = vpop.f32.mrb[0].mxu0
    %v1667 = vadd.f32 0.0, %v1666
    %v1668 = vpop.f32.mrb[0].mxu0
    %1669 = vmatprep.mubr.bf16.mxu0 0
    %1670 = vmatmul.mubr.bf16.gmra.mrb[0].mxu0 %v1530
    %v1671 = vpop.f32.mrb[0].mxu0
    %v1672 = vadd.f32 0.0, %v1671
    %v1673 = vpop.f32.mrb[0].mxu0
    %v1674 = vpop.f32.mrb[0].mxu0
    %v1675 = vadd.f32 0.0, %v1674
    %v1676 = vpop.f32.mrb[0].mxu0
    %1677 = vmatprep.mubr.bf16.mxu0 0
    %1678 = vmatmul.mubr.bf16.gmra.mrb[0].mxu0 %v1533
    %v1679 = vpop.f32.mrb[0].mxu0
    %v1680 = vadd.f32 0.0, %v1679
    %v1681 = vpop.f32.mrb[0].mxu0
    %v1682 = vpop.f32.mrb[0].mxu0
    %v1683 = vadd.f32 0.0, %v1682
    %v1684 = vpop.f32.mrb[0].mxu0
    %1685 = vmatprep.mubr.bf16.mxu0 0
    %1686 = vmatmul.mubr.bf16.gmra.mrb[0].mxu0 %v1536
    %v1687 = vpop.f32.mrb[0].mxu0
    %v1688 = vadd.f32 0.0, %v1687
    %v1689 = vpop.f32.mrb[0].mxu0
    %v1690 = vpop.f32.mrb[0].mxu0
    %v1691 = vadd.f32 0.0, %v1690
    %v1692 = vpop.f32.mrb[0].mxu0
    %1693 = vmatprep.mubr.bf16.mxu0 0
    %1694 = vmatmul.mubr.bf16.gmra.mrb[0].mxu0 %v1539
    %v1695 = vpop.f32.mrb[0].mxu0
    %v1696 = vadd.f32 0.0, %v1695
    %v1697 = vpop.f32.mrb[0].mxu0
    %v1698 = vpop.f32.mrb[0].mxu0
    %v1699 = vadd.f32 0.0, %v1698
    %v1700 = vpop.f32.mrb[0].mxu0
    %1701 = vdwg.mxu0
    %v1702 = vadd.f32 %v451, %v1576
    %v1703 = vadd.f32 %v455, %v1579
    %v1704 = vadd.f32 %v461, %v1584
    %v1705 = vadd.f32 %v465, %v1587
    %v1706 = vadd.f32 %v471, %v1592
    %v1707 = vadd.f32 %v475, %v1595
    %v1708 = vadd.f32 %v481, %v1600
    %v1709 = vadd.f32 %v485, %v1603
    %v1710 = vadd.f32 %v491, %v1608
    %v1711 = vadd.f32 %v495, %v1611
    %v1712 = vadd.f32 %v501, %v1616
    %v1713 = vadd.f32 %v505, %v1619
    %v1714 = vadd.f32 %v511, %v1624
    %v1715 = vadd.f32 %v515, %v1627
    %v1716 = vadd.f32 %v521, %v1632
    %v1717 = vadd.f32 %v525, %v1635
    %v1718 = vadd.f32 %v531, %v1640
    %v1719 = vadd.f32 %v535, %v1643
    %v1720 = vadd.f32 %v541, %v1648
    %v1721 = vadd.f32 %v545, %v1651
    %v1722 = vadd.f32 %v551, %v1656
    %v1723 = vadd.f32 %v555, %v1659
    %v1724 = vadd.f32 %v561, %v1664
    %v1725 = vadd.f32 %v565, %v1667
    %v1726 = vadd.f32 %v571, %v1672
    %v1727 = vadd.f32 %v575, %v1675
    %v1728 = vadd.f32 %v581, %v1680
    %v1729 = vadd.f32 %v585, %v1683
    %v1730 = vadd.f32 %v591, %v1688
    %v1731 = vadd.f32 %v595, %v1691
    %v1732 = vadd.f32 %v601, %v1696
    %v1733 = vadd.f32 %v605, %v1699
    %v1734 = vtanh.pop %v1702
    %v1735 = vtanh.pop %v1703
    %v1736 = vtanh.pop %v1704
    %v1737 = vtanh.pop %v1705
    %v1738 = vtanh.pop %v1706
    %v1739 = vtanh.pop %v1707
    %v1740 = vtanh.pop %v1708
    %v1741 = vtanh.pop %v1709
    %v1742 = vtanh.pop %v1710
    %v1743 = vtanh.pop %v1711
    %v1744 = vtanh.pop %v1712
    %v1745 = vtanh.pop %v1713
    %v1746 = vtanh.pop %v1714
    %v1747 = vtanh.pop %v1715
    %v1748 = vtanh.pop %v1716
    %v1749 = vtanh.pop %v1717
    %v1750 = vtanh.pop %v1718
    %v1751 = vtanh.pop %v1719
    %v1752 = vtanh.pop %v1720
    %v1753 = vtanh.pop %v1721
    %v1754 = vtanh.pop %v1722
    %v1755 = vtanh.pop %v1723
    %v1756 = vtanh.pop %v1724
    %v1757 = vtanh.pop %v1725
    %v1758 = vtanh.pop %v1726
    %v1759 = vtanh.pop %v1727
    %v1760 = vtanh.pop %v1728
    %v1761 = vtanh.pop %v1729
    %v1762 = vtanh.pop %v1730
    %v1763 = vtanh.pop %v1731
    %v1764 = vtanh.pop %v1732
    %v1765 = vtanh.pop %v1733
    %v1766 = vsub.f32 1.0, %v1269
    %v1767 = vsub.f32 1.0, %v1270
    %v1768 = vsub.f32 1.0, %v1271
    %v1769 = vsub.f32 1.0, %v1272
    %v1770 = vsub.f32 1.0, %v1273
    %v1771 = vsub.f32 1.0, %v1274
    %v1772 = vsub.f32 1.0, %v1275
    %v1773 = vsub.f32 1.0, %v1276
    %v1774 = vsub.f32 1.0, %v1277
    %v1775 = vsub.f32 1.0, %v1278
    %v1776 = vsub.f32 1.0, %v1279
    %v1777 = vsub.f32 1.0, %v1280
    %v1778 = vsub.f32 1.0, %v1281
    %v1779 = vsub.f32 1.0, %v1282
    %v1780 = vsub.f32 1.0, %v1283
    %v1781 = vsub.f32 1.0, %v1284
    %v1782 = vsub.f32 1.0, %v1285
    %v1783 = vsub.f32 1.0, %v1286
    %v1784 = vsub.f32 1.0, %v1287
    %v1785 = vsub.f32 1.0, %v1288
    %v1786 = vsub.f32 1.0, %v1289
    %v1787 = vsub.f32 1.0, %v1290
    %v1788 = vsub.f32 1.0, %v1291
    %v1789 = vsub.f32 1.0, %v1292
    %v1790 = vsub.f32 1.0, %v1293
    %v1791 = vsub.f32 1.0, %v1294
    %v1792 = vsub.f32 1.0, %v1295
    %v1793 = vsub.f32 1.0, %v1296
    %v1794 = vsub.f32 1.0, %v1297
    %v1795 = vsub.f32 1.0, %v1298
    %v1796 = vsub.f32 1.0, %v1299
    %v1797 = vsub.f32 1.0, %v1300
    %1830 = vrot.lane.b32.xlu0 %v1734, 32
    %v1831 = vpop.permute.xlu0 %1830
    %1832 = vrot.lane.b32.xlu0 %v1735, 32
    %v1833 = vpop.permute.xlu0 %1832
    %1834 = vrot.lane.b32.xlu0 %v1736, 32
    %v1835 = vpop.permute.xlu0 %1834
    %1836 = vrot.lane.b32.xlu0 %v1737, 32
    %v1837 = vpop.permute.xlu0 %1836
    %1838 = vrot.lane.b32.xlu0 %v1738, 32
    %v1839 = vpop.permute.xlu0 %1838
    %1840 = vrot.lane.b32.xlu0 %v1739, 32
    %v1841 = vpop.permute.xlu0 %1840
    %1842 = vrot.lane.b32.xlu0 %v1740, 32
    %v1843 = vpop.permute.xlu0 %1842
    %1844 = vrot.lane.b32.xlu0 %v1741, 32
    %v1845 = vpop.permute.xlu0 %1844
    %1846 = vrot.lane.b32.xlu0 %v1742, 32
    %v1847 = vpop.permute.xlu0 %1846
    %1848 = vrot.lane.b32.xlu0 %v1743, 32
    %v1849 = vpop.permute.xlu0 %1848
    %1850 = vrot.lane.b32.xlu0 %v1744, 32
    %v1851 = vpop.permute.xlu0 %1850
    %1852 = vrot.lane.b32.xlu0 %v1745, 32
    %v1853 = vpop.permute.xlu0 %1852
    %1854 = vrot.lane.b32.xlu0 %v1746, 32
    %v1855 = vpop.permute.xlu0 %1854
    %1856 = vrot.lane.b32.xlu0 %v1747, 32
    %v1857 = vpop.permute.xlu0 %1856
    %1858 = vrot.lane.b32.xlu0 %v1748, 32
    %v1859 = vpop.permute.xlu0 %1858
    %1860 = vrot.lane.b32.xlu0 %v1749, 32
    %v1861 = vpop.permute.xlu0 %1860
    %1862 = vrot.lane.b32.xlu0 %v1750, 32
    %v1863 = vpop.permute.xlu0 %1862
    %1864 = vrot.lane.b32.xlu0 %v1751, 32
    %v1865 = vpop.permute.xlu0 %1864
    %1866 = vrot.lane.b32.xlu0 %v1752, 32
    %v1867 = vpop.permute.xlu0 %1866
    %1868 = vrot.lane.b32.xlu0 %v1753, 32
    %v1869 = vpop.permute.xlu0 %1868
    %1870 = vrot.lane.b32.xlu0 %v1754, 32
    %v1871 = vpop.permute.xlu0 %1870
    %1872 = vrot.lane.b32.xlu0 %v1755, 32
    %v1873 = vpop.permute.xlu0 %1872
    %1874 = vrot.lane.b32.xlu0 %v1756, 32
    %v1875 = vpop.permute.xlu0 %1874
    %1876 = vrot.lane.b32.xlu0 %v1757, 32
    %v1877 = vpop.permute.xlu0 %1876
    %1878 = vrot.lane.b32.xlu0 %v1758, 32
    %v1879 = vpop.permute.xlu0 %1878
    %1880 = vrot.lane.b32.xlu0 %v1759, 32
    %v1881 = vpop.permute.xlu0 %1880
    %1882 = vrot.lane.b32.xlu0 %v1760, 32
    %v1883 = vpop.permute.xlu0 %1882
    %1884 = vrot.lane.b32.xlu0 %v1761, 32
    %v1885 = vpop.permute.xlu0 %1884
    %1886 = vrot.lane.b32.xlu0 %v1762, 32
    %v1887 = vpop.permute.xlu0 %1886
    %1888 = vrot.lane.b32.xlu0 %v1763, 32
    %v1889 = vpop.permute.xlu0 %1888
    %1890 = vrot.lane.b32.xlu0 %v1764, 32
    %v1891 = vpop.permute.xlu0 %1890
    %1892 = vrot.lane.b32.xlu0 %v1765, 32
    %v1893 = vpop.permute.xlu0 %1892
    %v1926 = vmul.f32 %v1766, %v1831
    %v1927 = vmul.f32 %v1767, %v1833
    %v1928 = vmul.f32 %v1768, %v1835
    %v1929 = vmul.f32 %v1769, %v1837
    %v1930 = vmul.f32 %v1770, %v1839
    %v1931 = vmul.f32 %v1771, %v1841
    %v1932 = vmul.f32 %v1772, %v1843
    %v1933 = vmul.f32 %v1773, %v1845
    %v1934 = vmul.f32 %v1774, %v1847
    %v1935 = vmul.f32 %v1775, %v1849
    %v1936 = vmul.f32 %v1776, %v1851
    %v1937 = vmul.f32 %v1777, %v1853
    %v1938 = vmul.f32 %v1778, %v1855
    %v1939 = vmul.f32 %v1779, %v1857
    %v1940 = vmul.f32 %v1780, %v1859
    %v1941 = vmul.f32 %v1781, %v1861
    %v1942 = vmul.f32 %v1782, %v1863
    %v1943 = vmul.f32 %v1783, %v1865
    %v1944 = vmul.f32 %v1784, %v1867
    %v1945 = vmul.f32 %v1785, %v1869
    %v1946 = vmul.f32 %v1786, %v1871
    %v1947 = vmul.f32 %v1787, %v1873
    %v1948 = vmul.f32 %v1788, %v1875
    %v1949 = vmul.f32 %v1789, %v1877
    %v1950 = vmul.f32 %v1790, %v1879
    %v1951 = vmul.f32 %v1791, %v1881
    %v1952 = vmul.f32 %v1792, %v1883
    %v1953 = vmul.f32 %v1793, %v1885
    %v1954 = vmul.f32 %v1794, %v1887
    %v1955 = vmul.f32 %v1795, %v1889
    %v1956 = vmul.f32 %v1796, %v1891
    %v1957 = vmul.f32 %v1797, %v1893
    %v1958 = vmul.f32 %v1269, %v963
    %v1959 = vmul.f32 %v1270, %v964
    %v1960 = vmul.f32 %v1271, %v965
    %v1961 = vmul.f32 %v1272, %v966
    %v1962 = vmul.f32 %v1273, %v967
    %v1963 = vmul.f32 %v1274, %v968
    %v1964 = vmul.f32 %v1275, %v969
    %v1965 = vmul.f32 %v1276, %v970
    %v1966 = vmul.f32 %v1277, %v971
    %v1967 = vmul.f32 %v1278, %v972
    %v1968 = vmul.f32 %v1279, %v973
    %v1969 = vmul.f32 %v1280, %v974
    %v1970 = vmul.f32 %v1281, %v975
    %v1971 = vmul.f32 %v1282, %v976
    %v1972 = vmul.f32 %v1283, %v977
    %v1973 = vmul.f32 %v1284, %v978
    %v1974 = vmul.f32 %v1285, %v979
    %v1975 = vmul.f32 %v1286, %v980
    %v1976 = vmul.f32 %v1287, %v981
    %v1977 = vmul.f32 %v1288, %v982
    %v1978 = vmul.f32 %v1289, %v983
    %v1979 = vmul.f32 %v1290, %v984
    %v1980 = vmul.f32 %v1291, %v985
    %v1981 = vmul.f32 %v1292, %v986
    %v1982 = vmul.f32 %v1293, %v987
    %v1983 = vmul.f32 %v1294, %v988
    %v1984 = vmul.f32 %v1295, %v989
    %v1985 = vmul.f32 %v1296, %v990
    %v1986 = vmul.f32 %v1297, %v991
    %v1987 = vmul.f32 %v1298, %v992
    %v1988 = vmul.f32 %v1299, %v993
    %v1989 = vmul.f32 %v1300, %v994
    %2022 = vrot.lane.b32.xlu0 %v1958, 32
    %v2023 = vpop.permute.xlu0 %2022
    %2024 = vrot.lane.b32.xlu0 %v1959, 32
    %v2025 = vpop.permute.xlu0 %2024
    %2026 = vrot.lane.b32.xlu0 %v1960, 32
    %v2027 = vpop.permute.xlu0 %2026
    %2028 = vrot.lane.b32.xlu0 %v1961, 32
    %v2029 = vpop.permute.xlu0 %2028
    %2030 = vrot.lane.b32.xlu0 %v1962, 32
    %v2031 = vpop.permute.xlu0 %2030
    %2032 = vrot.lane.b32.xlu0 %v1963, 32
    %v2033 = vpop.permute.xlu0 %2032
    %2034 = vrot.lane.b32.xlu0 %v1964, 32
    %v2035 = vpop.permute.xlu0 %2034
    %2036 = vrot.lane.b32.xlu0 %v1965, 32
    %v2037 = vpop.permute.xlu0 %2036
    %2038 = vrot.lane.b32.xlu0 %v1966, 32
    %v2039 = vpop.permute.xlu0 %2038
    %2040 = vrot.lane.b32.xlu0 %v1967, 32
    %v2041 = vpop.permute.xlu0 %2040
    %2042 = vrot.lane.b32.xlu0 %v1968, 32
    %v2043 = vpop.permute.xlu0 %2042
    %2044 = vrot.lane.b32.xlu0 %v1969, 32
    %v2045 = vpop.permute.xlu0 %2044
    %2046 = vrot.lane.b32.xlu0 %v1970, 32
    %v2047 = vpop.permute.xlu0 %2046
    %2048 = vrot.lane.b32.xlu0 %v1971, 32
    %v2049 = vpop.permute.xlu0 %2048
    %2050 = vrot.lane.b32.xlu0 %v1972, 32
    %v2051 = vpop.permute.xlu0 %2050
    %2052 = vrot.lane.b32.xlu0 %v1973, 32
    %v2053 = vpop.permute.xlu0 %2052
    %2054 = vrot.lane.b32.xlu0 %v1974, 32
    %v2055 = vpop.permute.xlu0 %2054
    %2056 = vrot.lane.b32.xlu0 %v1975, 32
    %v2057 = vpop.permute.xlu0 %2056
    %2058 = vrot.lane.b32.xlu0 %v1976, 32
    %v2059 = vpop.permute.xlu0 %2058
    %2060 = vrot.lane.b32.xlu0 %v1977, 32
    %v2061 = vpop.permute.xlu0 %2060
    %2062 = vrot.lane.b32.xlu0 %v1978, 32
    %v2063 = vpop.permute.xlu0 %2062
    %2064 = vrot.lane.b32.xlu0 %v1979, 32
    %v2065 = vpop.permute.xlu0 %2064
    %2066 = vrot.lane.b32.xlu0 %v1980, 32
    %v2067 = vpop.permute.xlu0 %2066
    %2068 = vrot.lane.b32.xlu0 %v1981, 32
    %v2069 = vpop.permute.xlu0 %2068
    %2070 = vrot.lane.b32.xlu0 %v1982, 32
    %v2071 = vpop.permute.xlu0 %2070
    %2072 = vrot.lane.b32.xlu0 %v1983, 32
    %v2073 = vpop.permute.xlu0 %2072
    %2074 = vrot.lane.b32.xlu0 %v1984, 32
    %v2075 = vpop.permute.xlu0 %2074
    %2076 = vrot.lane.b32.xlu0 %v1985, 32
    %v2077 = vpop.permute.xlu0 %2076
    %2078 = vrot.lane.b32.xlu0 %v1986, 32
    %v2079 = vpop.permute.xlu0 %2078
    %2080 = vrot.lane.b32.xlu0 %v1987, 32
    %v2081 = vpop.permute.xlu0 %2080
    %2082 = vrot.lane.b32.xlu0 %v1988, 32
    %v2083 = vpop.permute.xlu0 %2082
    %2084 = vrot.lane.b32.xlu0 %v1989, 32
    %v2085 = vpop.permute.xlu0 %2084
    %v2118 = vadd.f32 %v1926, %v2023
    %v2119 = vadd.f32 %v1927, %v2025
    %v2120 = vadd.f32 %v1928, %v2027
    %v2121 = vadd.f32 %v1929, %v2029
    %v2122 = vadd.f32 %v1930, %v2031
    %v2123 = vadd.f32 %v1931, %v2033
    %v2124 = vadd.f32 %v1932, %v2035
    %v2125 = vadd.f32 %v1933, %v2037
    %v2126 = vadd.f32 %v1934, %v2039
    %v2127 = vadd.f32 %v1935, %v2041
    %v2128 = vadd.f32 %v1936, %v2043
    %v2129 = vadd.f32 %v1937, %v2045
    %v2130 = vadd.f32 %v1938, %v2047
    %v2131 = vadd.f32 %v1939, %v2049
    %v2132 = vadd.f32 %v1940, %v2051
    %v2133 = vadd.f32 %v1941, %v2053
    %v2134 = vadd.f32 %v1942, %v2055
    %v2135 = vadd.f32 %v1943, %v2057
    %v2136 = vadd.f32 %v1944, %v2059
    %v2137 = vadd.f32 %v1945, %v2061
    %v2138 = vadd.f32 %v1946, %v2063
    %v2139 = vadd.f32 %v1947, %v2065
    %v2140 = vadd.f32 %v1948, %v2067
    %v2141 = vadd.f32 %v1949, %v2069
    %v2142 = vadd.f32 %v1950, %v2071
    %v2143 = vadd.f32 %v1951, %v2073
    %v2144 = vadd.f32 %v1952, %v2075
    %v2145 = vadd.f32 %v1953, %v2077
    %v2146 = vadd.f32 %v1954, %v2079
    %v2147 = vadd.f32 %v1955, %v2081
    %v2148 = vadd.f32 %v1956, %v2083
    %v2149 = vadd.f32 %v1957, %v2085
    %v2150 = vpack.c.bf16 %v2119, %v2118
    %v2151 = vpack.c.bf16 %v2121, %v2120
    %v2152 = vpack.c.bf16 %v2123, %v2122
    %v2153 = vpack.c.bf16 %v2125, %v2124
    %v2154 = vpack.c.bf16 %v2127, %v2126
    %v2155 = vpack.c.bf16 %v2129, %v2128
    %v2156 = vpack.c.bf16 %v2131, %v2130
    %v2157 = vpack.c.bf16 %v2133, %v2132
    %v2158 = vpack.c.bf16 %v2135, %v2134
    %v2159 = vpack.c.bf16 %v2137, %v2136
    %v2160 = vpack.c.bf16 %v2139, %v2138
    %v2161 = vpack.c.bf16 %v2141, %v2140
    %v2162 = vpack.c.bf16 %v2143, %v2142
    %v2163 = vpack.c.bf16 %v2145, %v2144
    %v2164 = vpack.c.bf16 %v2147, %v2146
    %v2165 = vpack.c.bf16 %v2149, %v2148
    %s2166 = scalar_lea.vmem %s3, 16
    %v2167 = vld [vmem:[%s2166] sm:$0xf]
    %v2168 = vld [vmem:[%s2166 + $0x4] sm:$0xf]
    %v2169 = vld [vmem:[%s2166 + $0x8] sm:$0xf]
    %v2170 = vld [vmem:[%s2166 + $0xc] sm:$0xf]
    %2187 = vrot.lane.b32.xlu0 %v2150, 96
    %v2188 = vpop.permute.xlu0 %2187
    %2189 = vrot.lane.b32.xlu0 %v2151, 96
    %v2190 = vpop.permute.xlu0 %2189
    %2191 = vrot.lane.b32.xlu0 %v2152, 96
    %v2192 = vpop.permute.xlu0 %2191
    %2193 = vrot.lane.b32.xlu0 %v2153, 96
    %v2194 = vpop.permute.xlu0 %2193
    %2195 = vrot.lane.b32.xlu0 %v2154, 96
    %v2196 = vpop.permute.xlu0 %2195
    %2197 = vrot.lane.b32.xlu0 %v2155, 96
    %v2198 = vpop.permute.xlu0 %2197
    %2199 = vrot.lane.b32.xlu0 %v2156, 96
    %v2200 = vpop.permute.xlu0 %2199
    %2201 = vrot.lane.b32.xlu0 %v2157, 96
    %v2202 = vpop.permute.xlu0 %2201
    %2203 = vrot.lane.b32.xlu0 %v2158, 96
    %v2204 = vpop.permute.xlu0 %2203
    %2205 = vrot.lane.b32.xlu0 %v2159, 96
    %v2206 = vpop.permute.xlu0 %2205
    %2207 = vrot.lane.b32.xlu0 %v2160, 96
    %v2208 = vpop.permute.xlu0 %2207
    %2209 = vrot.lane.b32.xlu0 %v2161, 96
    %v2210 = vpop.permute.xlu0 %2209
    %2211 = vrot.lane.b32.xlu0 %v2162, 96
    %v2212 = vpop.permute.xlu0 %2211
    %2213 = vrot.lane.b32.xlu0 %v2163, 96
    %v2214 = vpop.permute.xlu0 %2213
    %2215 = vrot.lane.b32.xlu0 %v2164, 96
    %v2216 = vpop.permute.xlu0 %2215
    %2217 = vrot.lane.b32.xlu0 %v2165, 96
    %v2218 = vpop.permute.xlu0 %2217
    %v2223 = vunpack.c.l.b16 %v2167
    %v2224 = vunpack.c.l.b16 %v2168
    %v2225 = vunpack.c.l.b16 %v2169
    %v2226 = vunpack.c.l.b16 %v2170
    %v2227 = vpack.c.b16 %v2224, %v2223
    %v2228 = vpack.c.b16 %v2226, %v2225
    %v2232 = vsel %vm1027, %v2188, 0
    %v2235 = vsel %vm1027, %v2190, 0
    %v2238 = vsel %vm1027, %v2192, 0
    %v2241 = vsel %vm1027, %v2194, 0
    %v2244 = vsel %vm1027, %v2196, 0
    %v2247 = vsel %vm1027, %v2198, 0
    %v2250 = vsel %vm1027, %v2200, 0
    %v2253 = vsel %vm1027, %v2202, 0
    %v2256 = vsel %vm1027, %v2204, 0
    %v2259 = vsel %vm1027, %v2206, 0
    %v2262 = vsel %vm1027, %v2208, 0
    %v2265 = vsel %vm1027, %v2210, 0
    %v2268 = vsel %vm1027, %v2212, 0
    %v2271 = vsel %vm1027, %v2214, 0
    %v2274 = vsel %vm1027, %v2216, 0
    %v2277 = vsel %vm1027, %v2218, 0
    %2279 = vmatprep.subr.bf16.mxu0 0
    %2280 = vmatpush1.bf16.msra.mxu0 %v2227
    %2281 = vmatprep.subr.bf16.mxu0 0
    %2282 = vmatpush1.bf16.msra.mxu0 %v2228
    %2283 = vmatprep.subr.bf16.mxu0 0
    %2284 = vmatpush1.bf16.msra.mxu0 0
    %2285 = vmatprep.subr.bf16.mxu0 0
    %2286 = vmatpush1.bf16.msra.mxu0 0
    %2287 = vmatprep.subr.bf16.mxu0 0
    %2288 = vmatpush1.bf16.msra.mxu0 0
    %2289 = vmatprep.subr.bf16.mxu0 0
    %2290 = vmatpush1.bf16.msra.mxu0 0
    %2291 = vmatprep.subr.bf16.mxu0 0
    %2292 = vmatpush1.bf16.msra.mxu0 0
    %2293 = vmatprep.subr.bf16.mxu0 0
    %2294 = vmatpush1.bf16.msra.mxu0 0
    %2295 = vmatprep.subr.bf16.mxu0 0
    %2296 = vmatpush1.bf16.msra.mxu0 0
    %2297 = vmatprep.subr.bf16.mxu0 0
    %2298 = vmatpush1.bf16.msra.mxu0 0
    %2299 = vmatprep.subr.bf16.mxu0 0
    %2300 = vmatpush1.bf16.msra.mxu0 0
    %2301 = vmatprep.subr.bf16.mxu0 0
    %2302 = vmatpush1.bf16.msra.mxu0 0
    %2303 = vmatprep.subr.bf16.mxu0 0
    %2304 = vmatpush1.bf16.msra.mxu0 0
    %2305 = vmatprep.subr.bf16.mxu0 0
    %2306 = vmatpush1.bf16.msra.mxu0 0
    %2307 = vmatprep.subr.bf16.mxu0 0
    %2308 = vmatpush1.bf16.msra.mxu0 0
    %2309 = vmatprep.subr.bf16.mxu0 0
    %2310 = vmatpush1.bf16.msra.mxu0 0
    %2311 = vmatprep.mubr.bf16.mxu0 0
    %2312 = vmatmul.mubr.bf16.gmra.mrb[0].mxu0 %v2232
    %v2313 = vpop.f32.mrb[0].mxu0
    %v2314 = vadd.f32 0.0, %v2313
    %v2315 = vpop.f32.mrb[0].mxu0
    %v2316 = vpop.f32.mrb[0].mxu0
    %v2317 = vadd.f32 0.0, %v2316
    %v2318 = vpop.f32.mrb[0].mxu0
    %2319 = vmatprep.mubr.bf16.mxu0 0
    %2320 = vmatmul.mubr.bf16.gmra.mrb[0].mxu0 %v2235
    %v2321 = vpop.f32.mrb[0].mxu0
    %v2322 = vadd.f32 0.0, %v2321
    %v2323 = vpop.f32.mrb[0].mxu0
    %v2324 = vpop.f32.mrb[0].mxu0
    %v2325 = vadd.f32 0.0, %v2324
    %v2326 = vpop.f32.mrb[0].mxu0
    %2327 = vmatprep.mubr.bf16.mxu0 0
    %2328 = vmatmul.mubr.bf16.gmra.mrb[0].mxu0 %v2238
    %v2329 = vpop.f32.mrb[0].mxu0
    %v2330 = vadd.f32 0.0, %v2329
    %v2331 = vpop.f32.mrb[0].mxu0
    %v2332 = vpop.f32.mrb[0].mxu0
    %v2333 = vadd.f32 0.0, %v2332
    %v2334 = vpop.f32.mrb[0].mxu0
    %2335 = vmatprep.mubr.bf16.mxu0 0
    %2336 = vmatmul.mubr.bf16.gmra.mrb[0].mxu0 %v2241
    %v2337 = vpop.f32.mrb[0].mxu0
    %v2338 = vadd.f32 0.0, %v2337
    %v2339 = vpop.f32.mrb[0].mxu0
    %v2340 = vpop.f32.mrb[0].mxu0
    %v2341 = vadd.f32 0.0, %v2340
    %v2342 = vpop.f32.mrb[0].mxu0
    %2343 = vmatprep.mubr.bf16.mxu0 0
    %2344 = vmatmul.mubr.bf16.gmra.mrb[0].mxu0 %v2244
    %v2345 = vpop.f32.mrb[0].mxu0
    %v2346 = vadd.f32 0.0, %v2345
    %v2347 = vpop.f32.mrb[0].mxu0
    %v2348 = vpop.f32.mrb[0].mxu0
    %v2349 = vadd.f32 0.0, %v2348
    %v2350 = vpop.f32.mrb[0].mxu0
    %2351 = vmatprep.mubr.bf16.mxu0 0
    %2352 = vmatmul.mubr.bf16.gmra.mrb[0].mxu0 %v2247
    %v2353 = vpop.f32.mrb[0].mxu0
    %v2354 = vadd.f32 0.0, %v2353
    %v2355 = vpop.f32.mrb[0].mxu0
    %v2356 = vpop.f32.mrb[0].mxu0
    %v2357 = vadd.f32 0.0, %v2356
    %v2358 = vpop.f32.mrb[0].mxu0
    %2359 = vmatprep.mubr.bf16.mxu0 0
    %2360 = vmatmul.mubr.bf16.gmra.mrb[0].mxu0 %v2250
    %v2361 = vpop.f32.mrb[0].mxu0
    %v2362 = vadd.f32 0.0, %v2361
    %v2363 = vpop.f32.mrb[0].mxu0
    %v2364 = vpop.f32.mrb[0].mxu0
    %v2365 = vadd.f32 0.0, %v2364
    %v2366 = vpop.f32.mrb[0].mxu0
    %2367 = vmatprep.mubr.bf16.mxu0 0
    %2368 = vmatmul.mubr.bf16.gmra.mrb[0].mxu0 %v2253
    %v2369 = vpop.f32.mrb[0].mxu0
    %v2370 = vadd.f32 0.0, %v2369
    %v2371 = vpop.f32.mrb[0].mxu0
    %v2372 = vpop.f32.mrb[0].mxu0
    %v2373 = vadd.f32 0.0, %v2372
    %v2374 = vpop.f32.mrb[0].mxu0
    %2375 = vmatprep.mubr.bf16.mxu0 0
    %2376 = vmatmul.mubr.bf16.gmra.mrb[0].mxu0 %v2256
    %v2377 = vpop.f32.mrb[0].mxu0
    %v2378 = vadd.f32 0.0, %v2377
    %v2379 = vpop.f32.mrb[0].mxu0
    %v2380 = vpop.f32.mrb[0].mxu0
    %v2381 = vadd.f32 0.0, %v2380
    %v2382 = vpop.f32.mrb[0].mxu0
    %2383 = vmatprep.mubr.bf16.mxu0 0
    %2384 = vmatmul.mubr.bf16.gmra.mrb[0].mxu0 %v2259
    %v2385 = vpop.f32.mrb[0].mxu0
    %v2386 = vadd.f32 0.0, %v2385
    %v2387 = vpop.f32.mrb[0].mxu0
    %v2388 = vpop.f32.mrb[0].mxu0
    %v2389 = vadd.f32 0.0, %v2388
    %v2390 = vpop.f32.mrb[0].mxu0
    %2391 = vmatprep.mubr.bf16.mxu0 0
    %2392 = vmatmul.mubr.bf16.gmra.mrb[0].mxu0 %v2262
    %v2393 = vpop.f32.mrb[0].mxu0
    %v2394 = vadd.f32 0.0, %v2393
    %v2395 = vpop.f32.mrb[0].mxu0
    %v2396 = vpop.f32.mrb[0].mxu0
    %v2397 = vadd.f32 0.0, %v2396
    %v2398 = vpop.f32.mrb[0].mxu0
    %2399 = vmatprep.mubr.bf16.mxu0 0
    %2400 = vmatmul.mubr.bf16.gmra.mrb[0].mxu0 %v2265
    %v2401 = vpop.f32.mrb[0].mxu0
    %v2402 = vadd.f32 0.0, %v2401
    %v2403 = vpop.f32.mrb[0].mxu0
    %v2404 = vpop.f32.mrb[0].mxu0
    %v2405 = vadd.f32 0.0, %v2404
    %v2406 = vpop.f32.mrb[0].mxu0
    %2407 = vmatprep.mubr.bf16.mxu0 0
    %2408 = vmatmul.mubr.bf16.gmra.mrb[0].mxu0 %v2268
    %v2409 = vpop.f32.mrb[0].mxu0
    %v2410 = vadd.f32 0.0, %v2409
    %v2411 = vpop.f32.mrb[0].mxu0
    %v2412 = vpop.f32.mrb[0].mxu0
    %v2413 = vadd.f32 0.0, %v2412
    %v2414 = vpop.f32.mrb[0].mxu0
    %2415 = vmatprep.mubr.bf16.mxu0 0
    %2416 = vmatmul.mubr.bf16.gmra.mrb[0].mxu0 %v2271
    %v2417 = vpop.f32.mrb[0].mxu0
    %v2418 = vadd.f32 0.0, %v2417
    %v2419 = vpop.f32.mrb[0].mxu0
    %v2420 = vpop.f32.mrb[0].mxu0
    %v2421 = vadd.f32 0.0, %v2420
    %v2422 = vpop.f32.mrb[0].mxu0
    %2423 = vmatprep.mubr.bf16.mxu0 0
    %2424 = vmatmul.mubr.bf16.gmra.mrb[0].mxu0 %v2274
    %v2425 = vpop.f32.mrb[0].mxu0
    %v2426 = vadd.f32 0.0, %v2425
    %v2427 = vpop.f32.mrb[0].mxu0
    %v2428 = vpop.f32.mrb[0].mxu0
    %v2429 = vadd.f32 0.0, %v2428
    %v2430 = vpop.f32.mrb[0].mxu0
    %2431 = vmatprep.mubr.bf16.mxu0 0
    %2432 = vmatmul.mubr.bf16.gmra.mrb[0].mxu0 %v2277
    %v2433 = vpop.f32.mrb[0].mxu0
    %v2434 = vadd.f32 0.0, %v2433
    %v2435 = vpop.f32.mrb[0].mxu0
    %v2436 = vpop.f32.mrb[0].mxu0
    %v2437 = vadd.f32 0.0, %v2436
    %v2438 = vpop.f32.mrb[0].mxu0
    %2439 = vdwg.mxu0
    %v2440 = vadd.f32 %v453, %v2314
    %v2441 = vadd.f32 %v457, %v2317
    %v2442 = vadd.f32 %v463, %v2322
    %v2443 = vadd.f32 %v467, %v2325
    %v2444 = vadd.f32 %v473, %v2330
    %v2445 = vadd.f32 %v477, %v2333
    %v2446 = vadd.f32 %v483, %v2338
    %v2447 = vadd.f32 %v487, %v2341
    %v2448 = vadd.f32 %v493, %v2346
    %v2449 = vadd.f32 %v497, %v2349
    %v2450 = vadd.f32 %v503, %v2354
    %v2451 = vadd.f32 %v507, %v2357
    %v2452 = vadd.f32 %v513, %v2362
    %v2453 = vadd.f32 %v517, %v2365
    %v2454 = vadd.f32 %v523, %v2370
    %v2455 = vadd.f32 %v527, %v2373
    %v2456 = vadd.f32 %v533, %v2378
    %v2457 = vadd.f32 %v537, %v2381
    %v2458 = vadd.f32 %v543, %v2386
    %v2459 = vadd.f32 %v547, %v2389
    %v2460 = vadd.f32 %v553, %v2394
    %v2461 = vadd.f32 %v557, %v2397
    %v2462 = vadd.f32 %v563, %v2402
    %v2463 = vadd.f32 %v567, %v2405
    %v2464 = vadd.f32 %v573, %v2410
    %v2465 = vadd.f32 %v577, %v2413
    %v2466 = vadd.f32 %v583, %v2418
    %v2467 = vadd.f32 %v587, %v2421
    %v2468 = vadd.f32 %v593, %v2426
    %v2469 = vadd.f32 %v597, %v2429
    %v2470 = vadd.f32 %v603, %v2434
    %v2471 = vadd.f32 %v607, %v2437
    %v2472 = vtanh.pop %v2440
    %v2473 = vtanh.pop %v2441
    %v2474 = vtanh.pop %v2442
    %v2475 = vtanh.pop %v2443
    %v2476 = vtanh.pop %v2444
    %v2477 = vtanh.pop %v2445
    %v2478 = vtanh.pop %v2446
    %v2479 = vtanh.pop %v2447
    %v2480 = vtanh.pop %v2448
    %v2481 = vtanh.pop %v2449
    %v2482 = vtanh.pop %v2450
    %v2483 = vtanh.pop %v2451
    %v2484 = vtanh.pop %v2452
    %v2485 = vtanh.pop %v2453
    %v2486 = vtanh.pop %v2454
    %v2487 = vtanh.pop %v2455
    %v2488 = vtanh.pop %v2456
    %v2489 = vtanh.pop %v2457
    %v2490 = vtanh.pop %v2458
    %v2491 = vtanh.pop %v2459
    %v2492 = vtanh.pop %v2460
    %v2493 = vtanh.pop %v2461
    %v2494 = vtanh.pop %v2462
    %v2495 = vtanh.pop %v2463
    %v2496 = vtanh.pop %v2464
    %v2497 = vtanh.pop %v2465
    %v2498 = vtanh.pop %v2466
    %v2499 = vtanh.pop %v2467
    %v2500 = vtanh.pop %v2468
    %v2501 = vtanh.pop %v2469
    %v2502 = vtanh.pop %v2470
    %v2503 = vtanh.pop %v2471
    %2536 = vrot.lane.b32.xlu0 %v2472, 96
    %v2537 = vpop.permute.xlu0 %2536
    %2538 = vrot.lane.b32.xlu0 %v2473, 96
    %v2539 = vpop.permute.xlu0 %2538
    %2540 = vrot.lane.b32.xlu0 %v2474, 96
    %v2541 = vpop.permute.xlu0 %2540
    %2542 = vrot.lane.b32.xlu0 %v2475, 96
    %v2543 = vpop.permute.xlu0 %2542
    %2544 = vrot.lane.b32.xlu0 %v2476, 96
    %v2545 = vpop.permute.xlu0 %2544
    %2546 = vrot.lane.b32.xlu0 %v2477, 96
    %v2547 = vpop.permute.xlu0 %2546
    %2548 = vrot.lane.b32.xlu0 %v2478, 96
    %v2549 = vpop.permute.xlu0 %2548
    %2550 = vrot.lane.b32.xlu0 %v2479, 96
    %v2551 = vpop.permute.xlu0 %2550
    %2552 = vrot.lane.b32.xlu0 %v2480, 96
    %v2553 = vpop.permute.xlu0 %2552
    %2554 = vrot.lane.b32.xlu0 %v2481, 96
    %v2555 = vpop.permute.xlu0 %2554
    %2556 = vrot.lane.b32.xlu0 %v2482, 96
    %v2557 = vpop.permute.xlu0 %2556
    %2558 = vrot.lane.b32.xlu0 %v2483, 96
    %v2559 = vpop.permute.xlu0 %2558
    %2560 = vrot.lane.b32.xlu0 %v2484, 96
    %v2561 = vpop.permute.xlu0 %2560
    %2562 = vrot.lane.b32.xlu0 %v2485, 96
    %v2563 = vpop.permute.xlu0 %2562
    %2564 = vrot.lane.b32.xlu0 %v2486, 96
    %v2565 = vpop.permute.xlu0 %2564
    %2566 = vrot.lane.b32.xlu0 %v2487, 96
    %v2567 = vpop.permute.xlu0 %2566
    %2568 = vrot.lane.b32.xlu0 %v2488, 96
    %v2569 = vpop.permute.xlu0 %2568
    %2570 = vrot.lane.b32.xlu0 %v2489, 96
    %v2571 = vpop.permute.xlu0 %2570
    %2572 = vrot.lane.b32.xlu0 %v2490, 96
    %v2573 = vpop.permute.xlu0 %2572
    %2574 = vrot.lane.b32.xlu0 %v2491, 96
    %v2575 = vpop.permute.xlu0 %2574
    %2576 = vrot.lane.b32.xlu0 %v2492, 96
    %v2577 = vpop.permute.xlu0 %2576
    %2578 = vrot.lane.b32.xlu0 %v2493, 96
    %v2579 = vpop.permute.xlu0 %2578
    %2580 = vrot.lane.b32.xlu0 %v2494, 96
    %v2581 = vpop.permute.xlu0 %2580
    %2582 = vrot.lane.b32.xlu0 %v2495, 96
    %v2583 = vpop.permute.xlu0 %2582
    %2584 = vrot.lane.b32.xlu0 %v2496, 96
    %v2585 = vpop.permute.xlu0 %2584
    %2586 = vrot.lane.b32.xlu0 %v2497, 96
    %v2587 = vpop.permute.xlu0 %2586
    %2588 = vrot.lane.b32.xlu0 %v2498, 96
    %v2589 = vpop.permute.xlu0 %2588
    %2590 = vrot.lane.b32.xlu0 %v2499, 96
    %v2591 = vpop.permute.xlu0 %2590
    %2592 = vrot.lane.b32.xlu0 %v2500, 96
    %v2593 = vpop.permute.xlu0 %2592
    %2594 = vrot.lane.b32.xlu0 %v2501, 96
    %v2595 = vpop.permute.xlu0 %2594
    %2596 = vrot.lane.b32.xlu0 %v2502, 96
    %v2597 = vpop.permute.xlu0 %2596
    %2598 = vrot.lane.b32.xlu0 %v2503, 96
    %v2599 = vpop.permute.xlu0 %2598
    %v2632 = vmul.f32 %v2118, %v2537
    %v2633 = vmul.f32 %v2119, %v2539
    %v2634 = vmul.f32 %v2120, %v2541
    %v2635 = vmul.f32 %v2121, %v2543
    %v2636 = vmul.f32 %v2122, %v2545
    %v2637 = vmul.f32 %v2123, %v2547
    %v2638 = vmul.f32 %v2124, %v2549
    %v2639 = vmul.f32 %v2125, %v2551
    %v2640 = vmul.f32 %v2126, %v2553
    %v2641 = vmul.f32 %v2127, %v2555
    %v2642 = vmul.f32 %v2128, %v2557
    %v2643 = vmul.f32 %v2129, %v2559
    %v2644 = vmul.f32 %v2130, %v2561
    %v2645 = vmul.f32 %v2131, %v2563
    %v2646 = vmul.f32 %v2132, %v2565
    %v2647 = vmul.f32 %v2133, %v2567
    %v2648 = vmul.f32 %v2134, %v2569
    %v2649 = vmul.f32 %v2135, %v2571
    %v2650 = vmul.f32 %v2136, %v2573
    %v2651 = vmul.f32 %v2137, %v2575
    %v2652 = vmul.f32 %v2138, %v2577
    %v2653 = vmul.f32 %v2139, %v2579
    %v2654 = vmul.f32 %v2140, %v2581
    %v2655 = vmul.f32 %v2141, %v2583
    %v2656 = vmul.f32 %v2142, %v2585
    %v2657 = vmul.f32 %v2143, %v2587
    %v2658 = vmul.f32 %v2144, %v2589
    %v2659 = vmul.f32 %v2145, %v2591
    %v2660 = vmul.f32 %v2146, %v2593
    %v2661 = vmul.f32 %v2147, %v2595
    %v2662 = vmul.f32 %v2148, %v2597
    %v2663 = vmul.f32 %v2149, %v2599
    %v2664 = vpack.c.bf16 %v2633, %v2632
    %v2665 = vpack.c.bf16 %v2635, %v2634
    %v2666 = vpack.c.bf16 %v2637, %v2636
    %v2667 = vpack.c.bf16 %v2639, %v2638
    %v2668 = vpack.c.bf16 %v2641, %v2640
    %v2669 = vpack.c.bf16 %v2643, %v2642
    %v2670 = vpack.c.bf16 %v2645, %v2644
    %v2671 = vpack.c.bf16 %v2647, %v2646
    %v2672 = vpack.c.bf16 %v2649, %v2648
    %v2673 = vpack.c.bf16 %v2651, %v2650
    %v2674 = vpack.c.bf16 %v2653, %v2652
    %v2675 = vpack.c.bf16 %v2655, %v2654
    %v2676 = vpack.c.bf16 %v2657, %v2656
    %v2677 = vpack.c.bf16 %v2659, %v2658
    %v2678 = vpack.c.bf16 %v2661, %v2660
    %v2679 = vpack.c.bf16 %v2663, %v2662
    %s2680 = scalar_lea.vmem %s4, 16
    %v2681 = vld [vmem:[%s2680] sm:$0xf]
    %v2682 = vld [vmem:[%s2680 + $0x4] sm:$0xf]
    %v2683 = vld [vmem:[%s2680 + $0x8] sm:$0xf]
    %v2684 = vld [vmem:[%s2680 + $0xc] sm:$0xf]
    %2701 = vrot.lane.b32.xlu0 %v2664, 96
    %v2702 = vpop.permute.xlu0 %2701
    %2703 = vrot.lane.b32.xlu0 %v2665, 96
    %v2704 = vpop.permute.xlu0 %2703
    %2705 = vrot.lane.b32.xlu0 %v2666, 96
    %v2706 = vpop.permute.xlu0 %2705
    %2707 = vrot.lane.b32.xlu0 %v2667, 96
    %v2708 = vpop.permute.xlu0 %2707
    %2709 = vrot.lane.b32.xlu0 %v2668, 96
    %v2710 = vpop.permute.xlu0 %2709
    %2711 = vrot.lane.b32.xlu0 %v2669, 96
    %v2712 = vpop.permute.xlu0 %2711
    %2713 = vrot.lane.b32.xlu0 %v2670, 96
    %v2714 = vpop.permute.xlu0 %2713
    %2715 = vrot.lane.b32.xlu0 %v2671, 96
    %v2716 = vpop.permute.xlu0 %2715
    %2717 = vrot.lane.b32.xlu0 %v2672, 96
    %v2718 = vpop.permute.xlu0 %2717
    %2719 = vrot.lane.b32.xlu0 %v2673, 96
    %v2720 = vpop.permute.xlu0 %2719
    %2721 = vrot.lane.b32.xlu0 %v2674, 96
    %v2722 = vpop.permute.xlu0 %2721
    %2723 = vrot.lane.b32.xlu0 %v2675, 96
    %v2724 = vpop.permute.xlu0 %2723
    %2725 = vrot.lane.b32.xlu0 %v2676, 96
    %v2726 = vpop.permute.xlu0 %2725
    %2727 = vrot.lane.b32.xlu0 %v2677, 96
    %v2728 = vpop.permute.xlu0 %2727
    %2729 = vrot.lane.b32.xlu0 %v2678, 96
    %v2730 = vpop.permute.xlu0 %2729
    %2731 = vrot.lane.b32.xlu0 %v2679, 96
    %v2732 = vpop.permute.xlu0 %2731
    %v2737 = vunpack.c.l.b16 %v2681
    %v2738 = vunpack.c.l.b16 %v2682
    %v2739 = vunpack.c.l.b16 %v2683
    %v2740 = vunpack.c.l.b16 %v2684
    %v2741 = vpack.c.b16 %v2738, %v2737
    %v2742 = vpack.c.b16 %v2740, %v2739
    %v2746 = vsel %vm1027, %v2702, 0
    %v2749 = vsel %vm1027, %v2704, 0
    %v2752 = vsel %vm1027, %v2706, 0
    %v2755 = vsel %vm1027, %v2708, 0
    %v2758 = vsel %vm1027, %v2710, 0
    %v2761 = vsel %vm1027, %v2712, 0
    %v2764 = vsel %vm1027, %v2714, 0
    %v2767 = vsel %vm1027, %v2716, 0
    %v2770 = vsel %vm1027, %v2718, 0
    %v2773 = vsel %vm1027, %v2720, 0
    %v2776 = vsel %vm1027, %v2722, 0
    %v2779 = vsel %vm1027, %v2724, 0
    %v2782 = vsel %vm1027, %v2726, 0
    %v2785 = vsel %vm1027, %v2728, 0
    %v2788 = vsel %vm1027, %v2730, 0
    %v2791 = vsel %vm1027, %v2732, 0
    %2793 = vmatprep.subr.bf16.mxu0 0
    %2794 = vmatpush1.bf16.msra.mxu0 %v2741
    %2795 = vmatprep.subr.bf16.mxu0 0
    %2796 = vmatpush1.bf16.msra.mxu0 %v2742
    %2797 = vmatprep.subr.bf16.mxu0 0
    %2798 = vmatpush1.bf16.msra.mxu0 0
    %2799 = vmatprep.subr.bf16.mxu0 0
    %2800 = vmatpush1.bf16.msra.mxu0 0
    %2801 = vmatprep.subr.bf16.mxu0 0
    %2802 = vmatpush1.bf16.msra.mxu0 0
    %2803 = vmatprep.subr.bf16.mxu0 0
    %2804 = vmatpush1.bf16.msra.mxu0 0
    %2805 = vmatprep.subr.bf16.mxu0 0
    %2806 = vmatpush1.bf16.msra.mxu0 0
    %2807 = vmatprep.subr.bf16.mxu0 0
    %2808 = vmatpush1.bf16.msra.mxu0 0
    %2809 = vmatprep.subr.bf16.mxu0 0
    %2810 = vmatpush1.bf16.msra.mxu0 0
    %2811 = vmatprep.subr.bf16.mxu0 0
    %2812 = vmatpush1.bf16.msra.mxu0 0
    %2813 = vmatprep.subr.bf16.mxu0 0
    %2814 = vmatpush1.bf16.msra.mxu0 0
    %2815 = vmatprep.subr.bf16.mxu0 0
    %2816 = vmatpush1.bf16.msra.mxu0 0
    %2817 = vmatprep.subr.bf16.mxu0 0
    %2818 = vmatpush1.bf16.msra.mxu0 0
    %2819 = vmatprep.subr.bf16.mxu0 0
    %2820 = vmatpush1.bf16.msra.mxu0 0
    %2821 = vmatprep.subr.bf16.mxu0 0
    %2822 = vmatpush1.bf16.msra.mxu0 0
    %2823 = vmatprep.subr.bf16.mxu0 0
    %2824 = vmatpush1.bf16.msra.mxu0 0
    %2825 = vmatprep.mubr.bf16.mxu0 0
    %2826 = vmatmul.mubr.bf16.gmra.mrb[0].mxu0 %v2746
    %v2827 = vpop.f32.mrb[0].mxu0
    %v2828 = vadd.f32 0.0, %v2827
    %v2829 = vpop.f32.mrb[0].mxu0
    %v2830 = vpop.f32.mrb[0].mxu0
    %v2831 = vadd.f32 0.0, %v2830
    %v2832 = vpop.f32.mrb[0].mxu0
    %2833 = vmatprep.mubr.bf16.mxu0 0
    %2834 = vmatmul.mubr.bf16.gmra.mrb[0].mxu0 %v2749
    %v2835 = vpop.f32.mrb[0].mxu0
    %v2836 = vadd.f32 0.0, %v2835
    %v2837 = vpop.f32.mrb[0].mxu0
    %v2838 = vpop.f32.mrb[0].mxu0
    %v2839 = vadd.f32 0.0, %v2838
    %v2840 = vpop.f32.mrb[0].mxu0
    %2841 = vmatprep.mubr.bf16.mxu0 0
    %2842 = vmatmul.mubr.bf16.gmra.mrb[0].mxu0 %v2752
    %v2843 = vpop.f32.mrb[0].mxu0
    %v2844 = vadd.f32 0.0, %v2843
    %v2845 = vpop.f32.mrb[0].mxu0
    %v2846 = vpop.f32.mrb[0].mxu0
    %v2847 = vadd.f32 0.0, %v2846
    %v2848 = vpop.f32.mrb[0].mxu0
    %2849 = vmatprep.mubr.bf16.mxu0 0
    %2850 = vmatmul.mubr.bf16.gmra.mrb[0].mxu0 %v2755
    %v2851 = vpop.f32.mrb[0].mxu0
    %v2852 = vadd.f32 0.0, %v2851
    %v2853 = vpop.f32.mrb[0].mxu0
    %v2854 = vpop.f32.mrb[0].mxu0
    %v2855 = vadd.f32 0.0, %v2854
    %v2856 = vpop.f32.mrb[0].mxu0
    %2857 = vmatprep.mubr.bf16.mxu0 0
    %2858 = vmatmul.mubr.bf16.gmra.mrb[0].mxu0 %v2758
    %v2859 = vpop.f32.mrb[0].mxu0
    %v2860 = vadd.f32 0.0, %v2859
    %v2861 = vpop.f32.mrb[0].mxu0
    %v2862 = vpop.f32.mrb[0].mxu0
    %v2863 = vadd.f32 0.0, %v2862
    %v2864 = vpop.f32.mrb[0].mxu0
    %2865 = vmatprep.mubr.bf16.mxu0 0
    %2866 = vmatmul.mubr.bf16.gmra.mrb[0].mxu0 %v2761
    %v2867 = vpop.f32.mrb[0].mxu0
    %v2868 = vadd.f32 0.0, %v2867
    %v2869 = vpop.f32.mrb[0].mxu0
    %v2870 = vpop.f32.mrb[0].mxu0
    %v2871 = vadd.f32 0.0, %v2870
    %v2872 = vpop.f32.mrb[0].mxu0
    %2873 = vmatprep.mubr.bf16.mxu0 0
    %2874 = vmatmul.mubr.bf16.gmra.mrb[0].mxu0 %v2764
    %v2875 = vpop.f32.mrb[0].mxu0
    %v2876 = vadd.f32 0.0, %v2875
    %v2877 = vpop.f32.mrb[0].mxu0
    %v2878 = vpop.f32.mrb[0].mxu0
    %v2879 = vadd.f32 0.0, %v2878
    %v2880 = vpop.f32.mrb[0].mxu0
    %2881 = vmatprep.mubr.bf16.mxu0 0
    %2882 = vmatmul.mubr.bf16.gmra.mrb[0].mxu0 %v2767
    %v2883 = vpop.f32.mrb[0].mxu0
    %v2884 = vadd.f32 0.0, %v2883
    %v2885 = vpop.f32.mrb[0].mxu0
    %v2886 = vpop.f32.mrb[0].mxu0
    %v2887 = vadd.f32 0.0, %v2886
    %v2888 = vpop.f32.mrb[0].mxu0
    %2889 = vmatprep.mubr.bf16.mxu0 0
    %2890 = vmatmul.mubr.bf16.gmra.mrb[0].mxu0 %v2770
    %v2891 = vpop.f32.mrb[0].mxu0
    %v2892 = vadd.f32 0.0, %v2891
    %v2893 = vpop.f32.mrb[0].mxu0
    %v2894 = vpop.f32.mrb[0].mxu0
    %v2895 = vadd.f32 0.0, %v2894
    %v2896 = vpop.f32.mrb[0].mxu0
    %2897 = vmatprep.mubr.bf16.mxu0 0
    %2898 = vmatmul.mubr.bf16.gmra.mrb[0].mxu0 %v2773
    %v2899 = vpop.f32.mrb[0].mxu0
    %v2900 = vadd.f32 0.0, %v2899
    %v2901 = vpop.f32.mrb[0].mxu0
    %v2902 = vpop.f32.mrb[0].mxu0
    %v2903 = vadd.f32 0.0, %v2902
    %v2904 = vpop.f32.mrb[0].mxu0
    %2905 = vmatprep.mubr.bf16.mxu0 0
    %2906 = vmatmul.mubr.bf16.gmra.mrb[0].mxu0 %v2776
    %v2907 = vpop.f32.mrb[0].mxu0
    %v2908 = vadd.f32 0.0, %v2907
    %v2909 = vpop.f32.mrb[0].mxu0
    %v2910 = vpop.f32.mrb[0].mxu0
    %v2911 = vadd.f32 0.0, %v2910
    %v2912 = vpop.f32.mrb[0].mxu0
    %2913 = vmatprep.mubr.bf16.mxu0 0
    %2914 = vmatmul.mubr.bf16.gmra.mrb[0].mxu0 %v2779
    %v2915 = vpop.f32.mrb[0].mxu0
    %v2916 = vadd.f32 0.0, %v2915
    %v2917 = vpop.f32.mrb[0].mxu0
    %v2918 = vpop.f32.mrb[0].mxu0
    %v2919 = vadd.f32 0.0, %v2918
    %v2920 = vpop.f32.mrb[0].mxu0
    %2921 = vmatprep.mubr.bf16.mxu0 0
    %2922 = vmatmul.mubr.bf16.gmra.mrb[0].mxu0 %v2782
    %v2923 = vpop.f32.mrb[0].mxu0
    %v2924 = vadd.f32 0.0, %v2923
    %v2925 = vpop.f32.mrb[0].mxu0
    %v2926 = vpop.f32.mrb[0].mxu0
    %v2927 = vadd.f32 0.0, %v2926
    %v2928 = vpop.f32.mrb[0].mxu0
    %2929 = vmatprep.mubr.bf16.mxu0 0
    %2930 = vmatmul.mubr.bf16.gmra.mrb[0].mxu0 %v2785
    %v2931 = vpop.f32.mrb[0].mxu0
    %v2932 = vadd.f32 0.0, %v2931
    %v2933 = vpop.f32.mrb[0].mxu0
    %v2934 = vpop.f32.mrb[0].mxu0
    %v2935 = vadd.f32 0.0, %v2934
    %v2936 = vpop.f32.mrb[0].mxu0
    %2937 = vmatprep.mubr.bf16.mxu0 0
    %2938 = vmatmul.mubr.bf16.gmra.mrb[0].mxu0 %v2788
    %v2939 = vpop.f32.mrb[0].mxu0
    %v2940 = vadd.f32 0.0, %v2939
    %v2941 = vpop.f32.mrb[0].mxu0
    %v2942 = vpop.f32.mrb[0].mxu0
    %v2943 = vadd.f32 0.0, %v2942
    %v2944 = vpop.f32.mrb[0].mxu0
    %2945 = vmatprep.mubr.bf16.mxu0 0
    %2946 = vmatmul.mubr.bf16.gmra.mrb[0].mxu0 %v2791
    %v2947 = vpop.f32.mrb[0].mxu0
    %v2948 = vadd.f32 0.0, %v2947
    %v2949 = vpop.f32.mrb[0].mxu0
    %v2950 = vpop.f32.mrb[0].mxu0
    %v2951 = vadd.f32 0.0, %v2950
    %v2952 = vpop.f32.mrb[0].mxu0
    %2953 = vdwg.mxu0
    %v2954 = vadd.f32 %v644, %v2828
    %v2955 = vadd.f32 %v648, %v2831
    %v2956 = vadd.f32 %v654, %v2836
    %v2957 = vadd.f32 %v658, %v2839
    %v2958 = vadd.f32 %v664, %v2844
    %v2959 = vadd.f32 %v668, %v2847
    %v2960 = vadd.f32 %v674, %v2852
    %v2961 = vadd.f32 %v678, %v2855
    %v2962 = vadd.f32 %v684, %v2860
    %v2963 = vadd.f32 %v688, %v2863
    %v2964 = vadd.f32 %v694, %v2868
    %v2965 = vadd.f32 %v698, %v2871
    %v2966 = vadd.f32 %v704, %v2876
    %v2967 = vadd.f32 %v708, %v2879
    %v2968 = vadd.f32 %v714, %v2884
    %v2969 = vadd.f32 %v718, %v2887
    %v2970 = vadd.f32 %v724, %v2892
    %v2971 = vadd.f32 %v728, %v2895
    %v2972 = vadd.f32 %v734, %v2900
    %v2973 = vadd.f32 %v738, %v2903
    %v2974 = vadd.f32 %v744, %v2908
    %v2975 = vadd.f32 %v748, %v2911
    %v2976 = vadd.f32 %v754, %v2916
    %v2977 = vadd.f32 %v758, %v2919
    %v2978 = vadd.f32 %v764, %v2924
    %v2979 = vadd.f32 %v768, %v2927
    %v2980 = vadd.f32 %v774, %v2932
    %v2981 = vadd.f32 %v778, %v2935
    %v2982 = vadd.f32 %v784, %v2940
    %v2983 = vadd.f32 %v788, %v2943
    %v2984 = vadd.f32 %v794, %v2948
    %v2985 = vadd.f32 %v798, %v2951
    %v2986 = vtanh.pop %v2954
    %v2987 = vtanh.pop %v2955
    %v2988 = vtanh.pop %v2956
    %v2989 = vtanh.pop %v2957
    %v2990 = vtanh.pop %v2958
    %v2991 = vtanh.pop %v2959
    %v2992 = vtanh.pop %v2960
    %v2993 = vtanh.pop %v2961
    %v2994 = vtanh.pop %v2962
    %v2995 = vtanh.pop %v2963
    %v2996 = vtanh.pop %v2964
    %v2997 = vtanh.pop %v2965
    %v2998 = vtanh.pop %v2966
    %v2999 = vtanh.pop %v2967
    %v3000 = vtanh.pop %v2968
    %v3001 = vtanh.pop %v2969
    %v3002 = vtanh.pop %v2970
    %v3003 = vtanh.pop %v2971
    %v3004 = vtanh.pop %v2972
    %v3005 = vtanh.pop %v2973
    %v3006 = vtanh.pop %v2974
    %v3007 = vtanh.pop %v2975
    %v3008 = vtanh.pop %v2976
    %v3009 = vtanh.pop %v2977
    %v3010 = vtanh.pop %v2978
    %v3011 = vtanh.pop %v2979
    %v3012 = vtanh.pop %v2980
    %v3013 = vtanh.pop %v2981
    %v3014 = vtanh.pop %v2982
    %v3015 = vtanh.pop %v2983
    %v3016 = vtanh.pop %v2984
    %v3017 = vtanh.pop %v2985
    %v3018 = vsub.f32 1.0, %v2472
    %v3019 = vsub.f32 1.0, %v2473
    %v3020 = vsub.f32 1.0, %v2474
    %v3021 = vsub.f32 1.0, %v2475
    %v3022 = vsub.f32 1.0, %v2476
    %v3023 = vsub.f32 1.0, %v2477
    %v3024 = vsub.f32 1.0, %v2478
    %v3025 = vsub.f32 1.0, %v2479
    %v3026 = vsub.f32 1.0, %v2480
    %v3027 = vsub.f32 1.0, %v2481
    %v3028 = vsub.f32 1.0, %v2482
    %v3029 = vsub.f32 1.0, %v2483
    %v3030 = vsub.f32 1.0, %v2484
    %v3031 = vsub.f32 1.0, %v2485
    %v3032 = vsub.f32 1.0, %v2486
    %v3033 = vsub.f32 1.0, %v2487
    %v3034 = vsub.f32 1.0, %v2488
    %v3035 = vsub.f32 1.0, %v2489
    %v3036 = vsub.f32 1.0, %v2490
    %v3037 = vsub.f32 1.0, %v2491
    %v3038 = vsub.f32 1.0, %v2492
    %v3039 = vsub.f32 1.0, %v2493
    %v3040 = vsub.f32 1.0, %v2494
    %v3041 = vsub.f32 1.0, %v2495
    %v3042 = vsub.f32 1.0, %v2496
    %v3043 = vsub.f32 1.0, %v2497
    %v3044 = vsub.f32 1.0, %v2498
    %v3045 = vsub.f32 1.0, %v2499
    %v3046 = vsub.f32 1.0, %v2500
    %v3047 = vsub.f32 1.0, %v2501
    %v3048 = vsub.f32 1.0, %v2502
    %v3049 = vsub.f32 1.0, %v2503
    %3082 = vrot.lane.b32.xlu0 %v2986, 32
    %v3083 = vpop.permute.xlu0 %3082
    %3084 = vrot.lane.b32.xlu0 %v2987, 32
    %v3085 = vpop.permute.xlu0 %3084
    %3086 = vrot.lane.b32.xlu0 %v2988, 32
    %v3087 = vpop.permute.xlu0 %3086
    %3088 = vrot.lane.b32.xlu0 %v2989, 32
    %v3089 = vpop.permute.xlu0 %3088
    %3090 = vrot.lane.b32.xlu0 %v2990, 32
    %v3091 = vpop.permute.xlu0 %3090
    %3092 = vrot.lane.b32.xlu0 %v2991, 32
    %v3093 = vpop.permute.xlu0 %3092
    %3094 = vrot.lane.b32.xlu0 %v2992, 32
    %v3095 = vpop.permute.xlu0 %3094
    %3096 = vrot.lane.b32.xlu0 %v2993, 32
    %v3097 = vpop.permute.xlu0 %3096
    %3098 = vrot.lane.b32.xlu0 %v2994, 32
    %v3099 = vpop.permute.xlu0 %3098
    %3100 = vrot.lane.b32.xlu0 %v2995, 32
    %v3101 = vpop.permute.xlu0 %3100
    %3102 = vrot.lane.b32.xlu0 %v2996, 32
    %v3103 = vpop.permute.xlu0 %3102
    %3104 = vrot.lane.b32.xlu0 %v2997, 32
    %v3105 = vpop.permute.xlu0 %3104
    %3106 = vrot.lane.b32.xlu0 %v2998, 32
    %v3107 = vpop.permute.xlu0 %3106
    %3108 = vrot.lane.b32.xlu0 %v2999, 32
    %v3109 = vpop.permute.xlu0 %3108
    %3110 = vrot.lane.b32.xlu0 %v3000, 32
    %v3111 = vpop.permute.xlu0 %3110
    %3112 = vrot.lane.b32.xlu0 %v3001, 32
    %v3113 = vpop.permute.xlu0 %3112
    %3114 = vrot.lane.b32.xlu0 %v3002, 32
    %v3115 = vpop.permute.xlu0 %3114
    %3116 = vrot.lane.b32.xlu0 %v3003, 32
    %v3117 = vpop.permute.xlu0 %3116
    %3118 = vrot.lane.b32.xlu0 %v3004, 32
    %v3119 = vpop.permute.xlu0 %3118
    %3120 = vrot.lane.b32.xlu0 %v3005, 32
    %v3121 = vpop.permute.xlu0 %3120
    %3122 = vrot.lane.b32.xlu0 %v3006, 32
    %v3123 = vpop.permute.xlu0 %3122
    %3124 = vrot.lane.b32.xlu0 %v3007, 32
    %v3125 = vpop.permute.xlu0 %3124
    %3126 = vrot.lane.b32.xlu0 %v3008, 32
    %v3127 = vpop.permute.xlu0 %3126
    %3128 = vrot.lane.b32.xlu0 %v3009, 32
    %v3129 = vpop.permute.xlu0 %3128
    %3130 = vrot.lane.b32.xlu0 %v3010, 32
    %v3131 = vpop.permute.xlu0 %3130
    %3132 = vrot.lane.b32.xlu0 %v3011, 32
    %v3133 = vpop.permute.xlu0 %3132
    %3134 = vrot.lane.b32.xlu0 %v3012, 32
    %v3135 = vpop.permute.xlu0 %3134
    %3136 = vrot.lane.b32.xlu0 %v3013, 32
    %v3137 = vpop.permute.xlu0 %3136
    %3138 = vrot.lane.b32.xlu0 %v3014, 32
    %v3139 = vpop.permute.xlu0 %3138
    %3140 = vrot.lane.b32.xlu0 %v3015, 32
    %v3141 = vpop.permute.xlu0 %3140
    %3142 = vrot.lane.b32.xlu0 %v3016, 32
    %v3143 = vpop.permute.xlu0 %3142
    %3144 = vrot.lane.b32.xlu0 %v3017, 32
    %v3145 = vpop.permute.xlu0 %3144
    %v3178 = vmul.f32 %v3018, %v3083
    %v3179 = vmul.f32 %v3019, %v3085
    %v3180 = vmul.f32 %v3020, %v3087
    %v3181 = vmul.f32 %v3021, %v3089
    %v3182 = vmul.f32 %v3022, %v3091
    %v3183 = vmul.f32 %v3023, %v3093
    %v3184 = vmul.f32 %v3024, %v3095
    %v3185 = vmul.f32 %v3025, %v3097
    %v3186 = vmul.f32 %v3026, %v3099
    %v3187 = vmul.f32 %v3027, %v3101
    %v3188 = vmul.f32 %v3028, %v3103
    %v3189 = vmul.f32 %v3029, %v3105
    %v3190 = vmul.f32 %v3030, %v3107
    %v3191 = vmul.f32 %v3031, %v3109
    %v3192 = vmul.f32 %v3032, %v3111
    %v3193 = vmul.f32 %v3033, %v3113
    %v3194 = vmul.f32 %v3034, %v3115
    %v3195 = vmul.f32 %v3035, %v3117
    %v3196 = vmul.f32 %v3036, %v3119
    %v3197 = vmul.f32 %v3037, %v3121
    %v3198 = vmul.f32 %v3038, %v3123
    %v3199 = vmul.f32 %v3039, %v3125
    %v3200 = vmul.f32 %v3040, %v3127
    %v3201 = vmul.f32 %v3041, %v3129
    %v3202 = vmul.f32 %v3042, %v3131
    %v3203 = vmul.f32 %v3043, %v3133
    %v3204 = vmul.f32 %v3044, %v3135
    %v3205 = vmul.f32 %v3045, %v3137
    %v3206 = vmul.f32 %v3046, %v3139
    %v3207 = vmul.f32 %v3047, %v3141
    %v3208 = vmul.f32 %v3048, %v3143
    %v3209 = vmul.f32 %v3049, %v3145
    %3242 = vrot.lane.b32.xlu0 %v2118, 96
    %v3243 = vpop.permute.xlu0 %3242
    %3244 = vrot.lane.b32.xlu0 %v2119, 96
    %v3245 = vpop.permute.xlu0 %3244
    %3246 = vrot.lane.b32.xlu0 %v2120, 96
    %v3247 = vpop.permute.xlu0 %3246
    %3248 = vrot.lane.b32.xlu0 %v2121, 96
    %v3249 = vpop.permute.xlu0 %3248
    %3250 = vrot.lane.b32.xlu0 %v2122, 96
    %v3251 = vpop.permute.xlu0 %3250
    %3252 = vrot.lane.b32.xlu0 %v2123, 96
    %v3253 = vpop.permute.xlu0 %3252
    %3254 = vrot.lane.b32.xlu0 %v2124, 96
    %v3255 = vpop.permute.xlu0 %3254
    %3256 = vrot.lane.b32.xlu0 %v2125, 96
    %v3257 = vpop.permute.xlu0 %3256
    %3258 = vrot.lane.b32.xlu0 %v2126, 96
    %v3259 = vpop.permute.xlu0 %3258
    %3260 = vrot.lane.b32.xlu0 %v2127, 96
    %v3261 = vpop.permute.xlu0 %3260
    %3262 = vrot.lane.b32.xlu0 %v2128, 96
    %v3263 = vpop.permute.xlu0 %3262
    %3264 = vrot.lane.b32.xlu0 %v2129, 96
    %v3265 = vpop.permute.xlu0 %3264
    %3266 = vrot.lane.b32.xlu0 %v2130, 96
    %v3267 = vpop.permute.xlu0 %3266
    %3268 = vrot.lane.b32.xlu0 %v2131, 96
    %v3269 = vpop.permute.xlu0 %3268
    %3270 = vrot.lane.b32.xlu0 %v2132, 96
    %v3271 = vpop.permute.xlu0 %3270
    %3272 = vrot.lane.b32.xlu0 %v2133, 96
    %v3273 = vpop.permute.xlu0 %3272
    %3274 = vrot.lane.b32.xlu0 %v2134, 96
    %v3275 = vpop.permute.xlu0 %3274
    %3276 = vrot.lane.b32.xlu0 %v2135, 96
    %v3277 = vpop.permute.xlu0 %3276
    %3278 = vrot.lane.b32.xlu0 %v2136, 96
    %v3279 = vpop.permute.xlu0 %3278
    %3280 = vrot.lane.b32.xlu0 %v2137, 96
    %v3281 = vpop.permute.xlu0 %3280
    %3282 = vrot.lane.b32.xlu0 %v2138, 96
    %v3283 = vpop.permute.xlu0 %3282
    %3284 = vrot.lane.b32.xlu0 %v2139, 96
    %v3285 = vpop.permute.xlu0 %3284
    %3286 = vrot.lane.b32.xlu0 %v2140, 96
    %v3287 = vpop.permute.xlu0 %3286
    %3288 = vrot.lane.b32.xlu0 %v2141, 96
    %v3289 = vpop.permute.xlu0 %3288
    %3290 = vrot.lane.b32.xlu0 %v2142, 96
    %v3291 = vpop.permute.xlu0 %3290
    %3292 = vrot.lane.b32.xlu0 %v2143, 96
    %v3293 = vpop.permute.xlu0 %3292
    %3294 = vrot.lane.b32.xlu0 %v2144, 96
    %v3295 = vpop.permute.xlu0 %3294
    %3296 = vrot.lane.b32.xlu0 %v2145, 96
    %v3297 = vpop.permute.xlu0 %3296
    %3298 = vrot.lane.b32.xlu0 %v2146, 96
    %v3299 = vpop.permute.xlu0 %3298
    %3300 = vrot.lane.b32.xlu0 %v2147, 96
    %v3301 = vpop.permute.xlu0 %3300
    %3302 = vrot.lane.b32.xlu0 %v2148, 96
    %v3303 = vpop.permute.xlu0 %3302
    %3304 = vrot.lane.b32.xlu0 %v2149, 96
    %v3305 = vpop.permute.xlu0 %3304
    %v3338 = vmul.f32 %v2472, %v3243
    %v3339 = vmul.f32 %v2473, %v3245
    %v3340 = vmul.f32 %v2474, %v3247
    %v3341 = vmul.f32 %v2475, %v3249
    %v3342 = vmul.f32 %v2476, %v3251
    %v3343 = vmul.f32 %v2477, %v3253
    %v3344 = vmul.f32 %v2478, %v3255
    %v3345 = vmul.f32 %v2479, %v3257
    %v3346 = vmul.f32 %v2480, %v3259
    %v3347 = vmul.f32 %v2481, %v3261
    %v3348 = vmul.f32 %v2482, %v3263
    %v3349 = vmul.f32 %v2483, %v3265
    %v3350 = vmul.f32 %v2484, %v3267
    %v3351 = vmul.f32 %v2485, %v3269
    %v3352 = vmul.f32 %v2486, %v3271
    %v3353 = vmul.f32 %v2487, %v3273
    %v3354 = vmul.f32 %v2488, %v3275
    %v3355 = vmul.f32 %v2489, %v3277
    %v3356 = vmul.f32 %v2490, %v3279
    %v3357 = vmul.f32 %v2491, %v3281
    %v3358 = vmul.f32 %v2492, %v3283
    %v3359 = vmul.f32 %v2493, %v3285
    %v3360 = vmul.f32 %v2494, %v3287
    %v3361 = vmul.f32 %v2495, %v3289
    %v3362 = vmul.f32 %v2496, %v3291
    %v3363 = vmul.f32 %v2497, %v3293
    %v3364 = vmul.f32 %v2498, %v3295
    %v3365 = vmul.f32 %v2499, %v3297
    %v3366 = vmul.f32 %v2500, %v3299
    %v3367 = vmul.f32 %v2501, %v3301
    %v3368 = vmul.f32 %v2502, %v3303
    %v3369 = vmul.f32 %v2503, %v3305
    %3402 = vrot.lane.b32.xlu0 %v3338, 32
    %v3403 = vpop.permute.xlu0 %3402
    %3404 = vrot.lane.b32.xlu0 %v3339, 32
    %v3405 = vpop.permute.xlu0 %3404
    %3406 = vrot.lane.b32.xlu0 %v3340, 32
    %v3407 = vpop.permute.xlu0 %3406
    %3408 = vrot.lane.b32.xlu0 %v3341, 32
    %v3409 = vpop.permute.xlu0 %3408
    %3410 = vrot.lane.b32.xlu0 %v3342, 32
    %v3411 = vpop.permute.xlu0 %3410
    %3412 = vrot.lane.b32.xlu0 %v3343, 32
    %v3413 = vpop.permute.xlu0 %3412
    %3414 = vrot.lane.b32.xlu0 %v3344, 32
    %v3415 = vpop.permute.xlu0 %3414
    %3416 = vrot.lane.b32.xlu0 %v3345, 32
    %v3417 = vpop.permute.xlu0 %3416
    %3418 = vrot.lane.b32.xlu0 %v3346, 32
    %v3419 = vpop.permute.xlu0 %3418
    %3420 = vrot.lane.b32.xlu0 %v3347, 32
    %v3421 = vpop.permute.xlu0 %3420
    %3422 = vrot.lane.b32.xlu0 %v3348, 32
    %v3423 = vpop.permute.xlu0 %3422
    %3424 = vrot.lane.b32.xlu0 %v3349, 32
    %v3425 = vpop.permute.xlu0 %3424
    %3426 = vrot.lane.b32.xlu0 %v3350, 32
    %v3427 = vpop.permute.xlu0 %3426
    %3428 = vrot.lane.b32.xlu0 %v3351, 32
    %v3429 = vpop.permute.xlu0 %3428
    %3430 = vrot.lane.b32.xlu0 %v3352, 32
    %v3431 = vpop.permute.xlu0 %3430
    %3432 = vrot.lane.b32.xlu0 %v3353, 32
    %v3433 = vpop.permute.xlu0 %3432
    %3434 = vrot.lane.b32.xlu0 %v3354, 32
    %v3435 = vpop.permute.xlu0 %3434
    %3436 = vrot.lane.b32.xlu0 %v3355, 32
    %v3437 = vpop.permute.xlu0 %3436
    %3438 = vrot.lane.b32.xlu0 %v3356, 32
    %v3439 = vpop.permute.xlu0 %3438
    %3440 = vrot.lane.b32.xlu0 %v3357, 32
    %v3441 = vpop.permute.xlu0 %3440
    %3442 = vrot.lane.b32.xlu0 %v3358, 32
    %v3443 = vpop.permute.xlu0 %3442
    %3444 = vrot.lane.b32.xlu0 %v3359, 32
    %v3445 = vpop.permute.xlu0 %3444
    %3446 = vrot.lane.b32.xlu0 %v3360, 32
    %v3447 = vpop.permute.xlu0 %3446
    %3448 = vrot.lane.b32.xlu0 %v3361, 32
    %v3449 = vpop.permute.xlu0 %3448
    %3450 = vrot.lane.b32.xlu0 %v3362, 32
    %v3451 = vpop.permute.xlu0 %3450
    %3452 = vrot.lane.b32.xlu0 %v3363, 32
    %v3453 = vpop.permute.xlu0 %3452
    %3454 = vrot.lane.b32.xlu0 %v3364, 32
    %v3455 = vpop.permute.xlu0 %3454
    %3456 = vrot.lane.b32.xlu0 %v3365, 32
    %v3457 = vpop.permute.xlu0 %3456
    %3458 = vrot.lane.b32.xlu0 %v3366, 32
    %v3459 = vpop.permute.xlu0 %3458
    %3460 = vrot.lane.b32.xlu0 %v3367, 32
    %v3461 = vpop.permute.xlu0 %3460
    %3462 = vrot.lane.b32.xlu0 %v3368, 32
    %v3463 = vpop.permute.xlu0 %3462
    %3464 = vrot.lane.b32.xlu0 %v3369, 32
    %v3465 = vpop.permute.xlu0 %3464
    %v3498 = vadd.f32 %v3178, %v3403
    %v3499 = vadd.f32 %v3179, %v3405
    %v3500 = vadd.f32 %v3180, %v3407
    %v3501 = vadd.f32 %v3181, %v3409
    %v3502 = vadd.f32 %v3182, %v3411
    %v3503 = vadd.f32 %v3183, %v3413
    %v3504 = vadd.f32 %v3184, %v3415
    %v3505 = vadd.f32 %v3185, %v3417
    %v3506 = vadd.f32 %v3186, %v3419
    %v3507 = vadd.f32 %v3187, %v3421
    %v3508 = vadd.f32 %v3188, %v3423
    %v3509 = vadd.f32 %v3189, %v3425
    %v3510 = vadd.f32 %v3190, %v3427
    %v3511 = vadd.f32 %v3191, %v3429
    %v3512 = vadd.f32 %v3192, %v3431
    %v3513 = vadd.f32 %v3193, %v3433
    %v3514 = vadd.f32 %v3194, %v3435
    %v3515 = vadd.f32 %v3195, %v3437
    %v3516 = vadd.f32 %v3196, %v3439
    %v3517 = vadd.f32 %v3197, %v3441
    %v3518 = vadd.f32 %v3198, %v3443
    %v3519 = vadd.f32 %v3199, %v3445
    %v3520 = vadd.f32 %v3200, %v3447
    %v3521 = vadd.f32 %v3201, %v3449
    %v3522 = vadd.f32 %v3202, %v3451
    %v3523 = vadd.f32 %v3203, %v3453
    %v3524 = vadd.f32 %v3204, %v3455
    %v3525 = vadd.f32 %v3205, %v3457
    %v3526 = vadd.f32 %v3206, %v3459
    %v3527 = vadd.f32 %v3207, %v3461
    %v3528 = vadd.f32 %v3208, %v3463
    %v3529 = vadd.f32 %v3209, %v3465
    %v3530 = vpack.c.bf16 %v3499, %v3498
    %v3531 = vpack.c.bf16 %v3501, %v3500
    %v3532 = vpack.c.bf16 %v3503, %v3502
    %v3533 = vpack.c.bf16 %v3505, %v3504
    %v3534 = vpack.c.bf16 %v3507, %v3506
    %v3535 = vpack.c.bf16 %v3509, %v3508
    %v3536 = vpack.c.bf16 %v3511, %v3510
    %v3537 = vpack.c.bf16 %v3513, %v3512
    %v3538 = vpack.c.bf16 %v3515, %v3514
    %v3539 = vpack.c.bf16 %v3517, %v3516
    %v3540 = vpack.c.bf16 %v3519, %v3518
    %v3541 = vpack.c.bf16 %v3521, %v3520
    %v3542 = vpack.c.bf16 %v3523, %v3522
    %v3543 = vpack.c.bf16 %v3525, %v3524
    %v3544 = vpack.c.bf16 %v3527, %v3526
    %v3545 = vpack.c.bf16 %v3529, %v3528
    %s3546 = scalar_lea.vmem %s3, 32
    %v3547 = vld [vmem:[%s3546] sm:$0xf]
    %v3548 = vld [vmem:[%s3546 + $0x4] sm:$0xf]
    %v3549 = vld [vmem:[%s3546 + $0x8] sm:$0xf]
    %v3550 = vld [vmem:[%s3546 + $0xc] sm:$0xf]
    %3567 = vrot.lane.b32.xlu0 %v3530, 96
    %v3568 = vpop.permute.xlu0 %3567
    %3569 = vrot.lane.b32.xlu0 %v3531, 96
    %v3570 = vpop.permute.xlu0 %3569
    %3571 = vrot.lane.b32.xlu0 %v3532, 96
    %v3572 = vpop.permute.xlu0 %3571
    %3573 = vrot.lane.b32.xlu0 %v3533, 96
    %v3574 = vpop.permute.xlu0 %3573
    %3575 = vrot.lane.b32.xlu0 %v3534, 96
    %v3576 = vpop.permute.xlu0 %3575
    %3577 = vrot.lane.b32.xlu0 %v3535, 96
    %v3578 = vpop.permute.xlu0 %3577
    %3579 = vrot.lane.b32.xlu0 %v3536, 96
    %v3580 = vpop.permute.xlu0 %3579
    %3581 = vrot.lane.b32.xlu0 %v3537, 96
    %v3582 = vpop.permute.xlu0 %3581
    %3583 = vrot.lane.b32.xlu0 %v3538, 96
    %v3584 = vpop.permute.xlu0 %3583
    %3585 = vrot.lane.b32.xlu0 %v3539, 96
    %v3586 = vpop.permute.xlu0 %3585
    %3587 = vrot.lane.b32.xlu0 %v3540, 96
    %v3588 = vpop.permute.xlu0 %3587
    %3589 = vrot.lane.b32.xlu0 %v3541, 96
    %v3590 = vpop.permute.xlu0 %3589
    %3591 = vrot.lane.b32.xlu0 %v3542, 96
    %v3592 = vpop.permute.xlu0 %3591
    %3593 = vrot.lane.b32.xlu0 %v3543, 96
    %v3594 = vpop.permute.xlu0 %3593
    %3595 = vrot.lane.b32.xlu0 %v3544, 96
    %v3596 = vpop.permute.xlu0 %3595
    %3597 = vrot.lane.b32.xlu0 %v3545, 96
    %v3598 = vpop.permute.xlu0 %3597
    %v3603 = vunpack.c.l.b16 %v3547
    %v3604 = vunpack.c.l.b16 %v3548
    %v3605 = vunpack.c.l.b16 %v3549
    %v3606 = vunpack.c.l.b16 %v3550
    %v3607 = vpack.c.b16 %v3604, %v3603
    %v3608 = vpack.c.b16 %v3606, %v3605
    %v3612 = vsel %vm1027, %v3568, 0
    %v3615 = vsel %vm1027, %v3570, 0
    %v3618 = vsel %vm1027, %v3572, 0
    %v3621 = vsel %vm1027, %v3574, 0
    %v3624 = vsel %vm1027, %v3576, 0
    %v3627 = vsel %vm1027, %v3578, 0
    %v3630 = vsel %vm1027, %v3580, 0
    %v3633 = vsel %vm1027, %v3582, 0
    %v3636 = vsel %vm1027, %v3584, 0
    %v3639 = vsel %vm1027, %v3586, 0
    %v3642 = vsel %vm1027, %v3588, 0
    %v3645 = vsel %vm1027, %v3590, 0
    %v3648 = vsel %vm1027, %v3592, 0
    %v3651 = vsel %vm1027, %v3594, 0
    %v3654 = vsel %vm1027, %v3596, 0
    %v3657 = vsel %vm1027, %v3598, 0
    %3659 = vmatprep.subr.bf16.mxu0 0
    %3660 = vmatpush1.bf16.msra.mxu0 %v3607
    %3661 = vmatprep.subr.bf16.mxu0 0
    %3662 = vmatpush1.bf16.msra.mxu0 %v3608
    %3663 = vmatprep.subr.bf16.mxu0 0
    %3664 = vmatpush1.bf16.msra.mxu0 0
    %3665 = vmatprep.subr.bf16.mxu0 0
    %3666 = vmatpush1.bf16.msra.mxu0 0
    %3667 = vmatprep.subr.bf16.mxu0 0
    %3668 = vmatpush1.bf16.msra.mxu0 0
    %3669 = vmatprep.subr.bf16.mxu0 0
    %3670 = vmatpush1.bf16.msra.mxu0 0
    %3671 = vmatprep.subr.bf16.mxu0 0
    %3672 = vmatpush1.bf16.msra.mxu0 0
    %3673 = vmatprep.subr.bf16.mxu0 0
    %3674 = vmatpush1.bf16.msra.mxu0 0
    %3675 = vmatprep.subr.bf16.mxu0 0
    %3676 = vmatpush1.bf16.msra.mxu0 0
    %3677 = vmatprep.subr.bf16.mxu0 0
    %3678 = vmatpush1.bf16.msra.mxu0 0
    %3679 = vmatprep.subr.bf16.mxu0 0
    %3680 = vmatpush1.bf16.msra.mxu0 0
    %3681 = vmatprep.subr.bf16.mxu0 0
    %3682 = vmatpush1.bf16.msra.mxu0 0
    %3683 = vmatprep.subr.bf16.mxu0 0
    %3684 = vmatpush1.bf16.msra.mxu0 0
    %3685 = vmatprep.subr.bf16.mxu0 0
    %3686 = vmatpush1.bf16.msra.mxu0 0
    %3687 = vmatprep.subr.bf16.mxu0 0
    %3688 = vmatpush1.bf16.msra.mxu0 0
    %3689 = vmatprep.subr.bf16.mxu0 0
    %3690 = vmatpush1.bf16.msra.mxu0 0
    %3691 = vmatprep.mubr.bf16.mxu0 0
    %3692 = vmatmul.mubr.bf16.gmra.mrb[0].mxu0 %v3612
    %v3693 = vpop.f32.mrb[0].mxu0
    %v3694 = vadd.f32 0.0, %v3693
    %v3695 = vpop.f32.mrb[0].mxu0
    %v3696 = vpop.f32.mrb[0].mxu0
    %v3697 = vadd.f32 0.0, %v3696
    %v3698 = vpop.f32.mrb[0].mxu0
    %3699 = vmatprep.mubr.bf16.mxu0 0
    %3700 = vmatmul.mubr.bf16.gmra.mrb[0].mxu0 %v3615
    %v3701 = vpop.f32.mrb[0].mxu0
    %v3702 = vadd.f32 0.0, %v3701
    %v3703 = vpop.f32.mrb[0].mxu0
    %v3704 = vpop.f32.mrb[0].mxu0
    %v3705 = vadd.f32 0.0, %v3704
    %v3706 = vpop.f32.mrb[0].mxu0
    %3707 = vmatprep.mubr.bf16.mxu0 0
    %3708 = vmatmul.mubr.bf16.gmra.mrb[0].mxu0 %v3618
    %v3709 = vpop.f32.mrb[0].mxu0
    %v3710 = vadd.f32 0.0, %v3709
    %v3711 = vpop.f32.mrb[0].mxu0
    %v3712 = vpop.f32.mrb[0].mxu0
    %v3713 = vadd.f32 0.0, %v3712
    %v3714 = vpop.f32.mrb[0].mxu0
    %3715 = vmatprep.mubr.bf16.mxu0 0
    %3716 = vmatmul.mubr.bf16.gmra.mrb[0].mxu0 %v3621
    %v3717 = vpop.f32.mrb[0].mxu0
    %v3718 = vadd.f32 0.0, %v3717
    %v3719 = vpop.f32.mrb[0].mxu0
    %v3720 = vpop.f32.mrb[0].mxu0
    %v3721 = vadd.f32 0.0, %v3720
    %v3722 = vpop.f32.mrb[0].mxu0
    %3723 = vmatprep.mubr.bf16.mxu0 0
    %3724 = vmatmul.mubr.bf16.gmra.mrb[0].mxu0 %v3624
    %v3725 = vpop.f32.mrb[0].mxu0
    %v3726 = vadd.f32 0.0, %v3725
    %v3727 = vpop.f32.mrb[0].mxu0
    %v3728 = vpop.f32.mrb[0].mxu0
    %v3729 = vadd.f32 0.0, %v3728
    %v3730 = vpop.f32.mrb[0].mxu0
    %3731 = vmatprep.mubr.bf16.mxu0 0
    %3732 = vmatmul.mubr.bf16.gmra.mrb[0].mxu0 %v3627
    %v3733 = vpop.f32.mrb[0].mxu0
    %v3734 = vadd.f32 0.0, %v3733
    %v3735 = vpop.f32.mrb[0].mxu0
    %v3736 = vpop.f32.mrb[0].mxu0
    %v3737 = vadd.f32 0.0, %v3736
    %v3738 = vpop.f32.mrb[0].mxu0
    %3739 = vmatprep.mubr.bf16.mxu0 0
    %3740 = vmatmul.mubr.bf16.gmra.mrb[0].mxu0 %v3630
    %v3741 = vpop.f32.mrb[0].mxu0
    %v3742 = vadd.f32 0.0, %v3741
    %v3743 = vpop.f32.mrb[0].mxu0
    %v3744 = vpop.f32.mrb[0].mxu0
    %v3745 = vadd.f32 0.0, %v3744
    %v3746 = vpop.f32.mrb[0].mxu0
    %3747 = vmatprep.mubr.bf16.mxu0 0
    %3748 = vmatmul.mubr.bf16.gmra.mrb[0].mxu0 %v3633
    %v3749 = vpop.f32.mrb[0].mxu0
    %v3750 = vadd.f32 0.0, %v3749
    %v3751 = vpop.f32.mrb[0].mxu0
    %v3752 = vpop.f32.mrb[0].mxu0
    %v3753 = vadd.f32 0.0, %v3752
    %v3754 = vpop.f32.mrb[0].mxu0
    %3755 = vmatprep.mubr.bf16.mxu0 0
    %3756 = vmatmul.mubr.bf16.gmra.mrb[0].mxu0 %v3636
    %v3757 = vpop.f32.mrb[0].mxu0
    %v3758 = vadd.f32 0.0, %v3757
    %v3759 = vpop.f32.mrb[0].mxu0
    %v3760 = vpop.f32.mrb[0].mxu0
    %v3761 = vadd.f32 0.0, %v3760
    %v3762 = vpop.f32.mrb[0].mxu0
    %3763 = vmatprep.mubr.bf16.mxu0 0
    %3764 = vmatmul.mubr.bf16.gmra.mrb[0].mxu0 %v3639
    %v3765 = vpop.f32.mrb[0].mxu0
    %v3766 = vadd.f32 0.0, %v3765
    %v3767 = vpop.f32.mrb[0].mxu0
    %v3768 = vpop.f32.mrb[0].mxu0
    %v3769 = vadd.f32 0.0, %v3768
    %v3770 = vpop.f32.mrb[0].mxu0
    %3771 = vmatprep.mubr.bf16.mxu0 0
    %3772 = vmatmul.mubr.bf16.gmra.mrb[0].mxu0 %v3642
    %v3773 = vpop.f32.mrb[0].mxu0
    %v3774 = vadd.f32 0.0, %v3773
    %v3775 = vpop.f32.mrb[0].mxu0
    %v3776 = vpop.f32.mrb[0].mxu0
    %v3777 = vadd.f32 0.0, %v3776
    %v3778 = vpop.f32.mrb[0].mxu0
    %3779 = vmatprep.mubr.bf16.mxu0 0
    %3780 = vmatmul.mubr.bf16.gmra.mrb[0].mxu0 %v3645
    %v3781 = vpop.f32.mrb[0].mxu0
    %v3782 = vadd.f32 0.0, %v3781
    %v3783 = vpop.f32.mrb[0].mxu0
    %v3784 = vpop.f32.mrb[0].mxu0
    %v3785 = vadd.f32 0.0, %v3784
    %v3786 = vpop.f32.mrb[0].mxu0
    %3787 = vmatprep.mubr.bf16.mxu0 0
    %3788 = vmatmul.mubr.bf16.gmra.mrb[0].mxu0 %v3648
    %v3789 = vpop.f32.mrb[0].mxu0
    %v3790 = vadd.f32 0.0, %v3789
    %v3791 = vpop.f32.mrb[0].mxu0
    %v3792 = vpop.f32.mrb[0].mxu0
    %v3793 = vadd.f32 0.0, %v3792
    %v3794 = vpop.f32.mrb[0].mxu0
    %3795 = vmatprep.mubr.bf16.mxu0 0
    %3796 = vmatmul.mubr.bf16.gmra.mrb[0].mxu0 %v3651
    %v3797 = vpop.f32.mrb[0].mxu0
    %v3798 = vadd.f32 0.0, %v3797
    %v3799 = vpop.f32.mrb[0].mxu0
    %v3800 = vpop.f32.mrb[0].mxu0
    %v3801 = vadd.f32 0.0, %v3800
    %v3802 = vpop.f32.mrb[0].mxu0
    %3803 = vmatprep.mubr.bf16.mxu0 0
    %3804 = vmatmul.mubr.bf16.gmra.mrb[0].mxu0 %v3654
    %v3805 = vpop.f32.mrb[0].mxu0
    %v3806 = vadd.f32 0.0, %v3805
    %v3807 = vpop.f32.mrb[0].mxu0
    %v3808 = vpop.f32.mrb[0].mxu0
    %v3809 = vadd.f32 0.0, %v3808
    %v3810 = vpop.f32.mrb[0].mxu0
    %3811 = vmatprep.mubr.bf16.mxu0 0
    %3812 = vmatmul.mubr.bf16.gmra.mrb[0].mxu0 %v3657
    %v3813 = vpop.f32.mrb[0].mxu0
    %v3814 = vadd.f32 0.0, %v3813
    %v3815 = vpop.f32.mrb[0].mxu0
    %v3816 = vpop.f32.mrb[0].mxu0
    %v3817 = vadd.f32 0.0, %v3816
    %v3818 = vpop.f32.mrb[0].mxu0
    %3819 = vdwg.mxu0
    %v3820 = vadd.f32 %v646, %v3694
    %v3821 = vadd.f32 %v650, %v3697
    %v3822 = vadd.f32 %v656, %v3702
    %v3823 = vadd.f32 %v660, %v3705
    %v3824 = vadd.f32 %v666, %v3710
    %v3825 = vadd.f32 %v670, %v3713
    %v3826 = vadd.f32 %v676, %v3718
    %v3827 = vadd.f32 %v680, %v3721
    %v3828 = vadd.f32 %v686, %v3726
    %v3829 = vadd.f32 %v690, %v3729
    %v3830 = vadd.f32 %v696, %v3734
    %v3831 = vadd.f32 %v700, %v3737
    %v3832 = vadd.f32 %v706, %v3742
    %v3833 = vadd.f32 %v710, %v3745
    %v3834 = vadd.f32 %v716, %v3750
    %v3835 = vadd.f32 %v720, %v3753
    %v3836 = vadd.f32 %v726, %v3758
    %v3837 = vadd.f32 %v730, %v3761
    %v3838 = vadd.f32 %v736, %v3766
    %v3839 = vadd.f32 %v740, %v3769
    %v3840 = vadd.f32 %v746, %v3774
    %v3841 = vadd.f32 %v750, %v3777
    %v3842 = vadd.f32 %v756, %v3782
    %v3843 = vadd.f32 %v760, %v3785
    %v3844 = vadd.f32 %v766, %v3790
    %v3845 = vadd.f32 %v770, %v3793
    %v3846 = vadd.f32 %v776, %v3798
    %v3847 = vadd.f32 %v780, %v3801
    %v3848 = vadd.f32 %v786, %v3806
    %v3849 = vadd.f32 %v790, %v3809
    %v3850 = vadd.f32 %v796, %v3814
    %v3851 = vadd.f32 %v800, %v3817
    %v3852 = vtanh.pop %v3820
    %v3853 = vtanh.pop %v3821
    %v3854 = vtanh.pop %v3822
    %v3855 = vtanh.pop %v3823
    %v3856 = vtanh.pop %v3824
    %v3857 = vtanh.pop %v3825
    %v3858 = vtanh.pop %v3826
    %v3859 = vtanh.pop %v3827
    %v3860 = vtanh.pop %v3828
    %v3861 = vtanh.pop %v3829
    %v3862 = vtanh.pop %v3830
    %v3863 = vtanh.pop %v3831
    %v3864 = vtanh.pop %v3832
    %v3865 = vtanh.pop %v3833
    %v3866 = vtanh.pop %v3834
    %v3867 = vtanh.pop %v3835
    %v3868 = vtanh.pop %v3836
    %v3869 = vtanh.pop %v3837
    %v3870 = vtanh.pop %v3838
    %v3871 = vtanh.pop %v3839
    %v3872 = vtanh.pop %v3840
    %v3873 = vtanh.pop %v3841
    %v3874 = vtanh.pop %v3842
    %v3875 = vtanh.pop %v3843
    %v3876 = vtanh.pop %v3844
    %v3877 = vtanh.pop %v3845
    %v3878 = vtanh.pop %v3846
    %v3879 = vtanh.pop %v3847
    %v3880 = vtanh.pop %v3848
    %v3881 = vtanh.pop %v3849
    %v3882 = vtanh.pop %v3850
    %v3883 = vtanh.pop %v3851
    %3916 = vrot.lane.b32.xlu0 %v3852, 96
    %v3917 = vpop.permute.xlu0 %3916
    %3918 = vrot.lane.b32.xlu0 %v3853, 96
    %v3919 = vpop.permute.xlu0 %3918
    %3920 = vrot.lane.b32.xlu0 %v3854, 96
    %v3921 = vpop.permute.xlu0 %3920
    %3922 = vrot.lane.b32.xlu0 %v3855, 96
    %v3923 = vpop.permute.xlu0 %3922
    %3924 = vrot.lane.b32.xlu0 %v3856, 96
    %v3925 = vpop.permute.xlu0 %3924
    %3926 = vrot.lane.b32.xlu0 %v3857, 96
    %v3927 = vpop.permute.xlu0 %3926
    %3928 = vrot.lane.b32.xlu0 %v3858, 96
    %v3929 = vpop.permute.xlu0 %3928
    %3930 = vrot.lane.b32.xlu0 %v3859, 96
    %v3931 = vpop.permute.xlu0 %3930
    %3932 = vrot.lane.b32.xlu0 %v3860, 96
    %v3933 = vpop.permute.xlu0 %3932
    %3934 = vrot.lane.b32.xlu0 %v3861, 96
    %v3935 = vpop.permute.xlu0 %3934
    %3936 = vrot.lane.b32.xlu0 %v3862, 96
    %v3937 = vpop.permute.xlu0 %3936
    %3938 = vrot.lane.b32.xlu0 %v3863, 96
    %v3939 = vpop.permute.xlu0 %3938
    %3940 = vrot.lane.b32.xlu0 %v3864, 96
    %v3941 = vpop.permute.xlu0 %3940
    %3942 = vrot.lane.b32.xlu0 %v3865, 96
    %v3943 = vpop.permute.xlu0 %3942
    %3944 = vrot.lane.b32.xlu0 %v3866, 96
    %v3945 = vpop.permute.xlu0 %3944
    %3946 = vrot.lane.b32.xlu0 %v3867, 96
    %v3947 = vpop.permute.xlu0 %3946
    %3948 = vrot.lane.b32.xlu0 %v3868, 96
    %v3949 = vpop.permute.xlu0 %3948
    %3950 = vrot.lane.b32.xlu0 %v3869, 96
    %v3951 = vpop.permute.xlu0 %3950
    %3952 = vrot.lane.b32.xlu0 %v3870, 96
    %v3953 = vpop.permute.xlu0 %3952
    %3954 = vrot.lane.b32.xlu0 %v3871, 96
    %v3955 = vpop.permute.xlu0 %3954
    %3956 = vrot.lane.b32.xlu0 %v3872, 96
    %v3957 = vpop.permute.xlu0 %3956
    %3958 = vrot.lane.b32.xlu0 %v3873, 96
    %v3959 = vpop.permute.xlu0 %3958
    %3960 = vrot.lane.b32.xlu0 %v3874, 96
    %v3961 = vpop.permute.xlu0 %3960
    %3962 = vrot.lane.b32.xlu0 %v3875, 96
    %v3963 = vpop.permute.xlu0 %3962
    %3964 = vrot.lane.b32.xlu0 %v3876, 96
    %v3965 = vpop.permute.xlu0 %3964
    %3966 = vrot.lane.b32.xlu0 %v3877, 96
    %v3967 = vpop.permute.xlu0 %3966
    %3968 = vrot.lane.b32.xlu0 %v3878, 96
    %v3969 = vpop.permute.xlu0 %3968
    %3970 = vrot.lane.b32.xlu0 %v3879, 96
    %v3971 = vpop.permute.xlu0 %3970
    %3972 = vrot.lane.b32.xlu0 %v3880, 96
    %v3973 = vpop.permute.xlu0 %3972
    %3974 = vrot.lane.b32.xlu0 %v3881, 96
    %v3975 = vpop.permute.xlu0 %3974
    %3976 = vrot.lane.b32.xlu0 %v3882, 96
    %v3977 = vpop.permute.xlu0 %3976
    %3978 = vrot.lane.b32.xlu0 %v3883, 96
    %v3979 = vpop.permute.xlu0 %3978
    %v4012 = vmul.f32 %v3498, %v3917
    %v4013 = vmul.f32 %v3499, %v3919
    %v4014 = vmul.f32 %v3500, %v3921
    %v4015 = vmul.f32 %v3501, %v3923
    %v4016 = vmul.f32 %v3502, %v3925
    %v4017 = vmul.f32 %v3503, %v3927
    %v4018 = vmul.f32 %v3504, %v3929
    %v4019 = vmul.f32 %v3505, %v3931
    %v4020 = vmul.f32 %v3506, %v3933
    %v4021 = vmul.f32 %v3507, %v3935
    %v4022 = vmul.f32 %v3508, %v3937
    %v4023 = vmul.f32 %v3509, %v3939
    %v4024 = vmul.f32 %v3510, %v3941
    %v4025 = vmul.f32 %v3511, %v3943
    %v4026 = vmul.f32 %v3512, %v3945
    %v4027 = vmul.f32 %v3513, %v3947
    %v4028 = vmul.f32 %v3514, %v3949
    %v4029 = vmul.f32 %v3515, %v3951
    %v4030 = vmul.f32 %v3516, %v3953
    %v4031 = vmul.f32 %v3517, %v3955
    %v4032 = vmul.f32 %v3518, %v3957
    %v4033 = vmul.f32 %v3519, %v3959
    %v4034 = vmul.f32 %v3520, %v3961
    %v4035 = vmul.f32 %v3521, %v3963
    %v4036 = vmul.f32 %v3522, %v3965
    %v4037 = vmul.f32 %v3523, %v3967
    %v4038 = vmul.f32 %v3524, %v3969
    %v4039 = vmul.f32 %v3525, %v3971
    %v4040 = vmul.f32 %v3526, %v3973
    %v4041 = vmul.f32 %v3527, %v3975
    %v4042 = vmul.f32 %v3528, %v3977
    %v4043 = vmul.f32 %v3529, %v3979
    %v4044 = vpack.c.bf16 %v4013, %v4012
    %v4045 = vpack.c.bf16 %v4015, %v4014
    %v4046 = vpack.c.bf16 %v4017, %v4016
    %v4047 = vpack.c.bf16 %v4019, %v4018
    %v4048 = vpack.c.bf16 %v4021, %v4020
    %v4049 = vpack.c.bf16 %v4023, %v4022
    %v4050 = vpack.c.bf16 %v4025, %v4024
    %v4051 = vpack.c.bf16 %v4027, %v4026
    %v4052 = vpack.c.bf16 %v4029, %v4028
    %v4053 = vpack.c.bf16 %v4031, %v4030
    %v4054 = vpack.c.bf16 %v4033, %v4032
    %v4055 = vpack.c.bf16 %v4035, %v4034
    %v4056 = vpack.c.bf16 %v4037, %v4036
    %v4057 = vpack.c.bf16 %v4039, %v4038
    %v4058 = vpack.c.bf16 %v4041, %v4040
    %v4059 = vpack.c.bf16 %v4043, %v4042
    %s4060 = scalar_lea.vmem %s4, 32
    %v4061 = vld [vmem:[%s4060] sm:$0xf]
    %v4062 = vld [vmem:[%s4060 + $0x4] sm:$0xf]
    %v4063 = vld [vmem:[%s4060 + $0x8] sm:$0xf]
    %v4064 = vld [vmem:[%s4060 + $0xc] sm:$0xf]
    %4081 = vrot.lane.b32.xlu0 %v4044, 96
    %v4082 = vpop.permute.xlu0 %4081
    %4083 = vrot.lane.b32.xlu0 %v4045, 96
    %v4084 = vpop.permute.xlu0 %4083
    %4085 = vrot.lane.b32.xlu0 %v4046, 96
    %v4086 = vpop.permute.xlu0 %4085
    %4087 = vrot.lane.b32.xlu0 %v4047, 96
    %v4088 = vpop.permute.xlu0 %4087
    %4089 = vrot.lane.b32.xlu0 %v4048, 96
    %v4090 = vpop.permute.xlu0 %4089
    %4091 = vrot.lane.b32.xlu0 %v4049, 96
    %v4092 = vpop.permute.xlu0 %4091
    %4093 = vrot.lane.b32.xlu0 %v4050, 96
    %v4094 = vpop.permute.xlu0 %4093
    %4095 = vrot.lane.b32.xlu0 %v4051, 96
    %v4096 = vpop.permute.xlu0 %4095
    %4097 = vrot.lane.b32.xlu0 %v4052, 96
    %v4098 = vpop.permute.xlu0 %4097
    %4099 = vrot.lane.b32.xlu0 %v4053, 96
    %v4100 = vpop.permute.xlu0 %4099
    %4101 = vrot.lane.b32.xlu0 %v4054, 96
    %v4102 = vpop.permute.xlu0 %4101
    %4103 = vrot.lane.b32.xlu0 %v4055, 96
    %v4104 = vpop.permute.xlu0 %4103
    %4105 = vrot.lane.b32.xlu0 %v4056, 96
    %v4106 = vpop.permute.xlu0 %4105
    %4107 = vrot.lane.b32.xlu0 %v4057, 96
    %v4108 = vpop.permute.xlu0 %4107
    %4109 = vrot.lane.b32.xlu0 %v4058, 96
    %v4110 = vpop.permute.xlu0 %4109
    %4111 = vrot.lane.b32.xlu0 %v4059, 96
    %v4112 = vpop.permute.xlu0 %4111
    %v4117 = vunpack.c.l.b16 %v4061
    %v4118 = vunpack.c.l.b16 %v4062
    %v4119 = vunpack.c.l.b16 %v4063
    %v4120 = vunpack.c.l.b16 %v4064
    %v4121 = vpack.c.b16 %v4118, %v4117
    %v4122 = vpack.c.b16 %v4120, %v4119
    %v4126 = vsel %vm1027, %v4082, 0
    %v4129 = vsel %vm1027, %v4084, 0
    %v4132 = vsel %vm1027, %v4086, 0
    %v4135 = vsel %vm1027, %v4088, 0
    %v4138 = vsel %vm1027, %v4090, 0
    %v4141 = vsel %vm1027, %v4092, 0
    %v4144 = vsel %vm1027, %v4094, 0
    %v4147 = vsel %vm1027, %v4096, 0
    %v4150 = vsel %vm1027, %v4098, 0
    %v4153 = vsel %vm1027, %v4100, 0
    %v4156 = vsel %vm1027, %v4102, 0
    %v4159 = vsel %vm1027, %v4104, 0
    %v4162 = vsel %vm1027, %v4106, 0
    %v4165 = vsel %vm1027, %v4108, 0
    %v4168 = vsel %vm1027, %v4110, 0
    %v4171 = vsel %vm1027, %v4112, 0
    %4173 = vmatprep.subr.bf16.mxu0 0
    %4174 = vmatpush1.bf16.msra.mxu0 %v4121
    %4175 = vmatprep.subr.bf16.mxu0 0
    %4176 = vmatpush1.bf16.msra.mxu0 %v4122
    %4177 = vmatprep.subr.bf16.mxu0 0
    %4178 = vmatpush1.bf16.msra.mxu0 0
    %4179 = vmatprep.subr.bf16.mxu0 0
    %4180 = vmatpush1.bf16.msra.mxu0 0
    %4181 = vmatprep.subr.bf16.mxu0 0
    %4182 = vmatpush1.bf16.msra.mxu0 0
    %4183 = vmatprep.subr.bf16.mxu0 0
    %4184 = vmatpush1.bf16.msra.mxu0 0
    %4185 = vmatprep.subr.bf16.mxu0 0
    %4186 = vmatpush1.bf16.msra.mxu0 0
    %4187 = vmatprep.subr.bf16.mxu0 0
    %4188 = vmatpush1.bf16.msra.mxu0 0
    %4189 = vmatprep.subr.bf16.mxu0 0
    %4190 = vmatpush1.bf16.msra.mxu0 0
    %4191 = vmatprep.subr.bf16.mxu0 0
    %4192 = vmatpush1.bf16.msra.mxu0 0
    %4193 = vmatprep.subr.bf16.mxu0 0
    %4194 = vmatpush1.bf16.msra.mxu0 0
    %4195 = vmatprep.subr.bf16.mxu0 0
    %4196 = vmatpush1.bf16.msra.mxu0 0
    %4197 = vmatprep.subr.bf16.mxu0 0
    %4198 = vmatpush1.bf16.msra.mxu0 0
    %4199 = vmatprep.subr.bf16.mxu0 0
    %4200 = vmatpush1.bf16.msra.mxu0 0
    %4201 = vmatprep.subr.bf16.mxu0 0
    %4202 = vmatpush1.bf16.msra.mxu0 0
    %4203 = vmatprep.subr.bf16.mxu0 0
    %4204 = vmatpush1.bf16.msra.mxu0 0
    %4205 = vmatprep.mubr.bf16.mxu0 0
    %4206 = vmatmul.mubr.bf16.gmra.mrb[0].mxu0 %v4126
    %v4207 = vpop.f32.mrb[0].mxu0
    %v4208 = vadd.f32 0.0, %v4207
    %v4209 = vpop.f32.mrb[0].mxu0
    %v4210 = vpop.f32.mrb[0].mxu0
    %v4211 = vadd.f32 0.0, %v4210
    %v4212 = vpop.f32.mrb[0].mxu0
    %4213 = vmatprep.mubr.bf16.mxu0 0
    %4214 = vmatmul.mubr.bf16.gmra.mrb[0].mxu0 %v4129
    %v4215 = vpop.f32.mrb[0].mxu0
    %v4216 = vadd.f32 0.0, %v4215
    %v4217 = vpop.f32.mrb[0].mxu0
    %v4218 = vpop.f32.mrb[0].mxu0
    %v4219 = vadd.f32 0.0, %v4218
    %v4220 = vpop.f32.mrb[0].mxu0
    %4221 = vmatprep.mubr.bf16.mxu0 0
    %4222 = vmatmul.mubr.bf16.gmra.mrb[0].mxu0 %v4132
    %v4223 = vpop.f32.mrb[0].mxu0
    %v4224 = vadd.f32 0.0, %v4223
    %v4225 = vpop.f32.mrb[0].mxu0
    %v4226 = vpop.f32.mrb[0].mxu0
    %v4227 = vadd.f32 0.0, %v4226
    %v4228 = vpop.f32.mrb[0].mxu0
    %4229 = vmatprep.mubr.bf16.mxu0 0
    %4230 = vmatmul.mubr.bf16.gmra.mrb[0].mxu0 %v4135
    %v4231 = vpop.f32.mrb[0].mxu0
    %v4232 = vadd.f32 0.0, %v4231
    %v4233 = vpop.f32.mrb[0].mxu0
    %v4234 = vpop.f32.mrb[0].mxu0
    %v4235 = vadd.f32 0.0, %v4234
    %v4236 = vpop.f32.mrb[0].mxu0
    %4237 = vmatprep.mubr.bf16.mxu0 0
    %4238 = vmatmul.mubr.bf16.gmra.mrb[0].mxu0 %v4138
    %v4239 = vpop.f32.mrb[0].mxu0
    %v4240 = vadd.f32 0.0, %v4239
    %v4241 = vpop.f32.mrb[0].mxu0
    %v4242 = vpop.f32.mrb[0].mxu0
    %v4243 = vadd.f32 0.0, %v4242
    %v4244 = vpop.f32.mrb[0].mxu0
    %4245 = vmatprep.mubr.bf16.mxu0 0
    %4246 = vmatmul.mubr.bf16.gmra.mrb[0].mxu0 %v4141
    %v4247 = vpop.f32.mrb[0].mxu0
    %v4248 = vadd.f32 0.0, %v4247
    %v4249 = vpop.f32.mrb[0].mxu0
    %v4250 = vpop.f32.mrb[0].mxu0
    %v4251 = vadd.f32 0.0, %v4250
    %v4252 = vpop.f32.mrb[0].mxu0
    %4253 = vmatprep.mubr.bf16.mxu0 0
    %4254 = vmatmul.mubr.bf16.gmra.mrb[0].mxu0 %v4144
    %v4255 = vpop.f32.mrb[0].mxu0
    %v4256 = vadd.f32 0.0, %v4255
    %v4257 = vpop.f32.mrb[0].mxu0
    %v4258 = vpop.f32.mrb[0].mxu0
    %v4259 = vadd.f32 0.0, %v4258
    %v4260 = vpop.f32.mrb[0].mxu0
    %4261 = vmatprep.mubr.bf16.mxu0 0
    %4262 = vmatmul.mubr.bf16.gmra.mrb[0].mxu0 %v4147
    %v4263 = vpop.f32.mrb[0].mxu0
    %v4264 = vadd.f32 0.0, %v4263
    %v4265 = vpop.f32.mrb[0].mxu0
    %v4266 = vpop.f32.mrb[0].mxu0
    %v4267 = vadd.f32 0.0, %v4266
    %v4268 = vpop.f32.mrb[0].mxu0
    %4269 = vmatprep.mubr.bf16.mxu0 0
    %4270 = vmatmul.mubr.bf16.gmra.mrb[0].mxu0 %v4150
    %v4271 = vpop.f32.mrb[0].mxu0
    %v4272 = vadd.f32 0.0, %v4271
    %v4273 = vpop.f32.mrb[0].mxu0
    %v4274 = vpop.f32.mrb[0].mxu0
    %v4275 = vadd.f32 0.0, %v4274
    %v4276 = vpop.f32.mrb[0].mxu0
    %4277 = vmatprep.mubr.bf16.mxu0 0
    %4278 = vmatmul.mubr.bf16.gmra.mrb[0].mxu0 %v4153
    %v4279 = vpop.f32.mrb[0].mxu0
    %v4280 = vadd.f32 0.0, %v4279
    %v4281 = vpop.f32.mrb[0].mxu0
    %v4282 = vpop.f32.mrb[0].mxu0
    %v4283 = vadd.f32 0.0, %v4282
    %v4284 = vpop.f32.mrb[0].mxu0
    %4285 = vmatprep.mubr.bf16.mxu0 0
    %4286 = vmatmul.mubr.bf16.gmra.mrb[0].mxu0 %v4156
    %v4287 = vpop.f32.mrb[0].mxu0
    %v4288 = vadd.f32 0.0, %v4287
    %v4289 = vpop.f32.mrb[0].mxu0
    %v4290 = vpop.f32.mrb[0].mxu0
    %v4291 = vadd.f32 0.0, %v4290
    %v4292 = vpop.f32.mrb[0].mxu0
    %4293 = vmatprep.mubr.bf16.mxu0 0
    %4294 = vmatmul.mubr.bf16.gmra.mrb[0].mxu0 %v4159
    %v4295 = vpop.f32.mrb[0].mxu0
    %v4296 = vadd.f32 0.0, %v4295
    %v4297 = vpop.f32.mrb[0].mxu0
    %v4298 = vpop.f32.mrb[0].mxu0
    %v4299 = vadd.f32 0.0, %v4298
    %v4300 = vpop.f32.mrb[0].mxu0
    %4301 = vmatprep.mubr.bf16.mxu0 0
    %4302 = vmatmul.mubr.bf16.gmra.mrb[0].mxu0 %v4162
    %v4303 = vpop.f32.mrb[0].mxu0
    %v4304 = vadd.f32 0.0, %v4303
    %v4305 = vpop.f32.mrb[0].mxu0
    %v4306 = vpop.f32.mrb[0].mxu0
    %v4307 = vadd.f32 0.0, %v4306
    %v4308 = vpop.f32.mrb[0].mxu0
    %4309 = vmatprep.mubr.bf16.mxu0 0
    %4310 = vmatmul.mubr.bf16.gmra.mrb[0].mxu0 %v4165
    %v4311 = vpop.f32.mrb[0].mxu0
    %v4312 = vadd.f32 0.0, %v4311
    %v4313 = vpop.f32.mrb[0].mxu0
    %v4314 = vpop.f32.mrb[0].mxu0
    %v4315 = vadd.f32 0.0, %v4314
    %v4316 = vpop.f32.mrb[0].mxu0
    %4317 = vmatprep.mubr.bf16.mxu0 0
    %4318 = vmatmul.mubr.bf16.gmra.mrb[0].mxu0 %v4168
    %v4319 = vpop.f32.mrb[0].mxu0
    %v4320 = vadd.f32 0.0, %v4319
    %v4321 = vpop.f32.mrb[0].mxu0
    %v4322 = vpop.f32.mrb[0].mxu0
    %v4323 = vadd.f32 0.0, %v4322
    %v4324 = vpop.f32.mrb[0].mxu0
    %4325 = vmatprep.mubr.bf16.mxu0 0
    %4326 = vmatmul.mubr.bf16.gmra.mrb[0].mxu0 %v4171
    %v4327 = vpop.f32.mrb[0].mxu0
    %v4328 = vadd.f32 0.0, %v4327
    %v4329 = vpop.f32.mrb[0].mxu0
    %v4330 = vpop.f32.mrb[0].mxu0
    %v4331 = vadd.f32 0.0, %v4330
    %v4332 = vpop.f32.mrb[0].mxu0
    %4333 = vdwg.mxu0
    %v4334 = vadd.f32 %v837, %v4208
    %v4335 = vadd.f32 %v840, %v4211
    %v4336 = vadd.f32 %v845, %v4216
    %v4337 = vadd.f32 %v848, %v4219
    %v4338 = vadd.f32 %v853, %v4224
    %v4339 = vadd.f32 %v856, %v4227
    %v4340 = vadd.f32 %v861, %v4232
    %v4341 = vadd.f32 %v864, %v4235
    %v4342 = vadd.f32 %v869, %v4240
    %v4343 = vadd.f32 %v872, %v4243
    %v4344 = vadd.f32 %v877, %v4248
    %v4345 = vadd.f32 %v880, %v4251
    %v4346 = vadd.f32 %v885, %v4256
    %v4347 = vadd.f32 %v888, %v4259
    %v4348 = vadd.f32 %v893, %v4264
    %v4349 = vadd.f32 %v896, %v4267
    %v4350 = vadd.f32 %v901, %v4272
    %v4351 = vadd.f32 %v904, %v4275
    %v4352 = vadd.f32 %v909, %v4280
    %v4353 = vadd.f32 %v912, %v4283
    %v4354 = vadd.f32 %v917, %v4288
    %v4355 = vadd.f32 %v920, %v4291
    %v4356 = vadd.f32 %v925, %v4296
    %v4357 = vadd.f32 %v928, %v4299
    %v4358 = vadd.f32 %v933, %v4304
    %v4359 = vadd.f32 %v936, %v4307
    %v4360 = vadd.f32 %v941, %v4312
    %v4361 = vadd.f32 %v944, %v4315
    %v4362 = vadd.f32 %v949, %v4320
    %v4363 = vadd.f32 %v952, %v4323
    %v4364 = vadd.f32 %v957, %v4328
    %v4365 = vadd.f32 %v960, %v4331
    %v4366 = vtanh.pop %v4334
    %v4367 = vtanh.pop %v4335
    %v4368 = vtanh.pop %v4336
    %v4369 = vtanh.pop %v4337
    %v4370 = vtanh.pop %v4338
    %v4371 = vtanh.pop %v4339
    %v4372 = vtanh.pop %v4340
    %v4373 = vtanh.pop %v4341
    %v4374 = vtanh.pop %v4342
    %v4375 = vtanh.pop %v4343
    %v4376 = vtanh.pop %v4344
    %v4377 = vtanh.pop %v4345
    %v4378 = vtanh.pop %v4346
    %v4379 = vtanh.pop %v4347
    %v4380 = vtanh.pop %v4348
    %v4381 = vtanh.pop %v4349
    %v4382 = vtanh.pop %v4350
    %v4383 = vtanh.pop %v4351
    %v4384 = vtanh.pop %v4352
    %v4385 = vtanh.pop %v4353
    %v4386 = vtanh.pop %v4354
    %v4387 = vtanh.pop %v4355
    %v4388 = vtanh.pop %v4356
    %v4389 = vtanh.pop %v4357
    %v4390 = vtanh.pop %v4358
    %v4391 = vtanh.pop %v4359
    %v4392 = vtanh.pop %v4360
    %v4393 = vtanh.pop %v4361
    %v4394 = vtanh.pop %v4362
    %v4395 = vtanh.pop %v4363
    %v4396 = vtanh.pop %v4364
    %v4397 = vtanh.pop %v4365
    %v4398 = vsub.f32 1.0, %v3852
    %v4399 = vsub.f32 1.0, %v3853
    %v4400 = vsub.f32 1.0, %v3854
    %v4401 = vsub.f32 1.0, %v3855
    %v4402 = vsub.f32 1.0, %v3856
    %v4403 = vsub.f32 1.0, %v3857
    %v4404 = vsub.f32 1.0, %v3858
    %v4405 = vsub.f32 1.0, %v3859
    %v4406 = vsub.f32 1.0, %v3860
    %v4407 = vsub.f32 1.0, %v3861
    %v4408 = vsub.f32 1.0, %v3862
    %v4409 = vsub.f32 1.0, %v3863
    %v4410 = vsub.f32 1.0, %v3864
    %v4411 = vsub.f32 1.0, %v3865
    %v4412 = vsub.f32 1.0, %v3866
    %v4413 = vsub.f32 1.0, %v3867
    %v4414 = vsub.f32 1.0, %v3868
    %v4415 = vsub.f32 1.0, %v3869
    %v4416 = vsub.f32 1.0, %v3870
    %v4417 = vsub.f32 1.0, %v3871
    %v4418 = vsub.f32 1.0, %v3872
    %v4419 = vsub.f32 1.0, %v3873
    %v4420 = vsub.f32 1.0, %v3874
    %v4421 = vsub.f32 1.0, %v3875
    %v4422 = vsub.f32 1.0, %v3876
    %v4423 = vsub.f32 1.0, %v3877
    %v4424 = vsub.f32 1.0, %v3878
    %v4425 = vsub.f32 1.0, %v3879
    %v4426 = vsub.f32 1.0, %v3880
    %v4427 = vsub.f32 1.0, %v3881
    %v4428 = vsub.f32 1.0, %v3882
    %v4429 = vsub.f32 1.0, %v3883
    %4462 = vrot.lane.b32.xlu0 %v4366, 32
    %v4463 = vpop.permute.xlu0 %4462
    %4464 = vrot.lane.b32.xlu0 %v4367, 32
    %v4465 = vpop.permute.xlu0 %4464
    %4466 = vrot.lane.b32.xlu0 %v4368, 32
    %v4467 = vpop.permute.xlu0 %4466
    %4468 = vrot.lane.b32.xlu0 %v4369, 32
    %v4469 = vpop.permute.xlu0 %4468
    %4470 = vrot.lane.b32.xlu0 %v4370, 32
    %v4471 = vpop.permute.xlu0 %4470
    %4472 = vrot.lane.b32.xlu0 %v4371, 32
    %v4473 = vpop.permute.xlu0 %4472
    %4474 = vrot.lane.b32.xlu0 %v4372, 32
    %v4475 = vpop.permute.xlu0 %4474
    %4476 = vrot.lane.b32.xlu0 %v4373, 32
    %v4477 = vpop.permute.xlu0 %4476
    %4478 = vrot.lane.b32.xlu0 %v4374, 32
    %v4479 = vpop.permute.xlu0 %4478
    %4480 = vrot.lane.b32.xlu0 %v4375, 32
    %v4481 = vpop.permute.xlu0 %4480
    %4482 = vrot.lane.b32.xlu0 %v4376, 32
    %v4483 = vpop.permute.xlu0 %4482
    %4484 = vrot.lane.b32.xlu0 %v4377, 32
    %v4485 = vpop.permute.xlu0 %4484
    %4486 = vrot.lane.b32.xlu0 %v4378, 32
    %v4487 = vpop.permute.xlu0 %4486
    %4488 = vrot.lane.b32.xlu0 %v4379, 32
    %v4489 = vpop.permute.xlu0 %4488
    %4490 = vrot.lane.b32.xlu0 %v4380, 32
    %v4491 = vpop.permute.xlu0 %4490
    %4492 = vrot.lane.b32.xlu0 %v4381, 32
    %v4493 = vpop.permute.xlu0 %4492
    %4494 = vrot.lane.b32.xlu0 %v4382, 32
    %v4495 = vpop.permute.xlu0 %4494
    %4496 = vrot.lane.b32.xlu0 %v4383, 32
    %v4497 = vpop.permute.xlu0 %4496
    %4498 = vrot.lane.b32.xlu0 %v4384, 32
    %v4499 = vpop.permute.xlu0 %4498
    %4500 = vrot.lane.b32.xlu0 %v4385, 32
    %v4501 = vpop.permute.xlu0 %4500
    %4502 = vrot.lane.b32.xlu0 %v4386, 32
    %v4503 = vpop.permute.xlu0 %4502
    %4504 = vrot.lane.b32.xlu0 %v4387, 32
    %v4505 = vpop.permute.xlu0 %4504
    %4506 = vrot.lane.b32.xlu0 %v4388, 32
    %v4507 = vpop.permute.xlu0 %4506
    %4508 = vrot.lane.b32.xlu0 %v4389, 32
    %v4509 = vpop.permute.xlu0 %4508
    %4510 = vrot.lane.b32.xlu0 %v4390, 32
    %v4511 = vpop.permute.xlu0 %4510
    %4512 = vrot.lane.b32.xlu0 %v4391, 32
    %v4513 = vpop.permute.xlu0 %4512
    %4514 = vrot.lane.b32.xlu0 %v4392, 32
    %v4515 = vpop.permute.xlu0 %4514
    %4516 = vrot.lane.b32.xlu0 %v4393, 32
    %v4517 = vpop.permute.xlu0 %4516
    %4518 = vrot.lane.b32.xlu0 %v4394, 32
    %v4519 = vpop.permute.xlu0 %4518
    %4520 = vrot.lane.b32.xlu0 %v4395, 32
    %v4521 = vpop.permute.xlu0 %4520
    %4522 = vrot.lane.b32.xlu0 %v4396, 32
    %v4523 = vpop.permute.xlu0 %4522
    %4524 = vrot.lane.b32.xlu0 %v4397, 32
    %v4525 = vpop.permute.xlu0 %4524
    %v4558 = vmul.f32 %v4398, %v4463
    %v4559 = vmul.f32 %v4399, %v4465
    %v4560 = vmul.f32 %v4400, %v4467
    %v4561 = vmul.f32 %v4401, %v4469
    %v4562 = vmul.f32 %v4402, %v4471
    %v4563 = vmul.f32 %v4403, %v4473
    %v4564 = vmul.f32 %v4404, %v4475
    %v4565 = vmul.f32 %v4405, %v4477
    %v4566 = vmul.f32 %v4406, %v4479
    %v4567 = vmul.f32 %v4407, %v4481
    %v4568 = vmul.f32 %v4408, %v4483
    %v4569 = vmul.f32 %v4409, %v4485
    %v4570 = vmul.f32 %v4410, %v4487
    %v4571 = vmul.f32 %v4411, %v4489
    %v4572 = vmul.f32 %v4412, %v4491
    %v4573 = vmul.f32 %v4413, %v4493
    %v4574 = vmul.f32 %v4414, %v4495
    %v4575 = vmul.f32 %v4415, %v4497
    %v4576 = vmul.f32 %v4416, %v4499
    %v4577 = vmul.f32 %v4417, %v4501
    %v4578 = vmul.f32 %v4418, %v4503
    %v4579 = vmul.f32 %v4419, %v4505
    %v4580 = vmul.f32 %v4420, %v4507
    %v4581 = vmul.f32 %v4421, %v4509
    %v4582 = vmul.f32 %v4422, %v4511
    %v4583 = vmul.f32 %v4423, %v4513
    %v4584 = vmul.f32 %v4424, %v4515
    %v4585 = vmul.f32 %v4425, %v4517
    %v4586 = vmul.f32 %v4426, %v4519
    %v4587 = vmul.f32 %v4427, %v4521
    %v4588 = vmul.f32 %v4428, %v4523
    %v4589 = vmul.f32 %v4429, %v4525
    %4622 = vrot.lane.b32.xlu0 %v3498, 96
    %v4623 = vpop.permute.xlu0 %4622
    %4624 = vrot.lane.b32.xlu0 %v3499, 96
    %v4625 = vpop.permute.xlu0 %4624
    %4626 = vrot.lane.b32.xlu0 %v3500, 96
    %v4627 = vpop.permute.xlu0 %4626
    %4628 = vrot.lane.b32.xlu0 %v3501, 96
    %v4629 = vpop.permute.xlu0 %4628
    %4630 = vrot.lane.b32.xlu0 %v3502, 96
    %v4631 = vpop.permute.xlu0 %4630
    %4632 = vrot.lane.b32.xlu0 %v3503, 96
    %v4633 = vpop.permute.xlu0 %4632
    %4634 = vrot.lane.b32.xlu0 %v3504, 96
    %v4635 = vpop.permute.xlu0 %4634
    %4636 = vrot.lane.b32.xlu0 %v3505, 96
    %v4637 = vpop.permute.xlu0 %4636
    %4638 = vrot.lane.b32.xlu0 %v3506, 96
    %v4639 = vpop.permute.xlu0 %4638
    %4640 = vrot.lane.b32.xlu0 %v3507, 96
    %v4641 = vpop.permute.xlu0 %4640
    %4642 = vrot.lane.b32.xlu0 %v3508, 96
    %v4643 = vpop.permute.xlu0 %4642
    %4644 = vrot.lane.b32.xlu0 %v3509, 96
    %v4645 = vpop.permute.xlu0 %4644
    %4646 = vrot.lane.b32.xlu0 %v3510, 96
    %v4647 = vpop.permute.xlu0 %4646
    %4648 = vrot.lane.b32.xlu0 %v3511, 96
    %v4649 = vpop.permute.xlu0 %4648
    %4650 = vrot.lane.b32.xlu0 %v3512, 96
    %v4651 = vpop.permute.xlu0 %4650
    %4652 = vrot.lane.b32.xlu0 %v3513, 96
    %v4653 = vpop.permute.xlu0 %4652
    %4654 = vrot.lane.b32.xlu0 %v3514, 96
    %v4655 = vpop.permute.xlu0 %4654
    %4656 = vrot.lane.b32.xlu0 %v3515, 96
    %v4657 = vpop.permute.xlu0 %4656
    %4658 = vrot.lane.b32.xlu0 %v3516, 96
    %v4659 = vpop.permute.xlu0 %4658
    %4660 = vrot.lane.b32.xlu0 %v3517, 96
    %v4661 = vpop.permute.xlu0 %4660
    %4662 = vrot.lane.b32.xlu0 %v3518, 96
    %v4663 = vpop.permute.xlu0 %4662
    %4664 = vrot.lane.b32.xlu0 %v3519, 96
    %v4665 = vpop.permute.xlu0 %4664
    %4666 = vrot.lane.b32.xlu0 %v3520, 96
    %v4667 = vpop.permute.xlu0 %4666
    %4668 = vrot.lane.b32.xlu0 %v3521, 96
    %v4669 = vpop.permute.xlu0 %4668
    %4670 = vrot.lane.b32.xlu0 %v3522, 96
    %v4671 = vpop.permute.xlu0 %4670
    %4672 = vrot.lane.b32.xlu0 %v3523, 96
    %v4673 = vpop.permute.xlu0 %4672
    %4674 = vrot.lane.b32.xlu0 %v3524, 96
    %v4675 = vpop.permute.xlu0 %4674
    %4676 = vrot.lane.b32.xlu0 %v3525, 96
    %v4677 = vpop.permute.xlu0 %4676
    %4678 = vrot.lane.b32.xlu0 %v3526, 96
    %v4679 = vpop.permute.xlu0 %4678
    %4680 = vrot.lane.b32.xlu0 %v3527, 96
    %v4681 = vpop.permute.xlu0 %4680
    %4682 = vrot.lane.b32.xlu0 %v3528, 96
    %v4683 = vpop.permute.xlu0 %4682
    %4684 = vrot.lane.b32.xlu0 %v3529, 96
    %v4685 = vpop.permute.xlu0 %4684
    %v4718 = vmul.f32 %v3852, %v4623
    %v4719 = vmul.f32 %v3853, %v4625
    %v4720 = vmul.f32 %v3854, %v4627
    %v4721 = vmul.f32 %v3855, %v4629
    %v4722 = vmul.f32 %v3856, %v4631
    %v4723 = vmul.f32 %v3857, %v4633
    %v4724 = vmul.f32 %v3858, %v4635
    %v4725 = vmul.f32 %v3859, %v4637
    %v4726 = vmul.f32 %v3860, %v4639
    %v4727 = vmul.f32 %v3861, %v4641
    %v4728 = vmul.f32 %v3862, %v4643
    %v4729 = vmul.f32 %v3863, %v4645
    %v4730 = vmul.f32 %v3864, %v4647
    %v4731 = vmul.f32 %v3865, %v4649
    %v4732 = vmul.f32 %v3866, %v4651
    %v4733 = vmul.f32 %v3867, %v4653
    %v4734 = vmul.f32 %v3868, %v4655
    %v4735 = vmul.f32 %v3869, %v4657
    %v4736 = vmul.f32 %v3870, %v4659
    %v4737 = vmul.f32 %v3871, %v4661
    %v4738 = vmul.f32 %v3872, %v4663
    %v4739 = vmul.f32 %v3873, %v4665
    %v4740 = vmul.f32 %v3874, %v4667
    %v4741 = vmul.f32 %v3875, %v4669
    %v4742 = vmul.f32 %v3876, %v4671
    %v4743 = vmul.f32 %v3877, %v4673
    %v4744 = vmul.f32 %v3878, %v4675
    %v4745 = vmul.f32 %v3879, %v4677
    %v4746 = vmul.f32 %v3880, %v4679
    %v4747 = vmul.f32 %v3881, %v4681
    %v4748 = vmul.f32 %v3882, %v4683
    %v4749 = vmul.f32 %v3883, %v4685
    %4782 = vrot.lane.b32.xlu0 %v4718, 32
    %v4783 = vpop.permute.xlu0 %4782
    %4784 = vrot.lane.b32.xlu0 %v4719, 32
    %v4785 = vpop.permute.xlu0 %4784
    %4786 = vrot.lane.b32.xlu0 %v4720, 32
    %v4787 = vpop.permute.xlu0 %4786
    %4788 = vrot.lane.b32.xlu0 %v4721, 32
    %v4789 = vpop.permute.xlu0 %4788
    %4790 = vrot.lane.b32.xlu0 %v4722, 32
    %v4791 = vpop.permute.xlu0 %4790
    %4792 = vrot.lane.b32.xlu0 %v4723, 32
    %v4793 = vpop.permute.xlu0 %4792
    %4794 = vrot.lane.b32.xlu0 %v4724, 32
    %v4795 = vpop.permute.xlu0 %4794
    %4796 = vrot.lane.b32.xlu0 %v4725, 32
    %v4797 = vpop.permute.xlu0 %4796
    %4798 = vrot.lane.b32.xlu0 %v4726, 32
    %v4799 = vpop.permute.xlu0 %4798
    %4800 = vrot.lane.b32.xlu0 %v4727, 32
    %v4801 = vpop.permute.xlu0 %4800
    %4802 = vrot.lane.b32.xlu0 %v4728, 32
    %v4803 = vpop.permute.xlu0 %4802
    %4804 = vrot.lane.b32.xlu0 %v4729, 32
    %v4805 = vpop.permute.xlu0 %4804
    %4806 = vrot.lane.b32.xlu0 %v4730, 32
    %v4807 = vpop.permute.xlu0 %4806
    %4808 = vrot.lane.b32.xlu0 %v4731, 32
    %v4809 = vpop.permute.xlu0 %4808
    %4810 = vrot.lane.b32.xlu0 %v4732, 32
    %v4811 = vpop.permute.xlu0 %4810
    %4812 = vrot.lane.b32.xlu0 %v4733, 32
    %v4813 = vpop.permute.xlu0 %4812
    %4814 = vrot.lane.b32.xlu0 %v4734, 32
    %v4815 = vpop.permute.xlu0 %4814
    %4816 = vrot.lane.b32.xlu0 %v4735, 32
    %v4817 = vpop.permute.xlu0 %4816
    %4818 = vrot.lane.b32.xlu0 %v4736, 32
    %v4819 = vpop.permute.xlu0 %4818
    %4820 = vrot.lane.b32.xlu0 %v4737, 32
    %v4821 = vpop.permute.xlu0 %4820
    %4822 = vrot.lane.b32.xlu0 %v4738, 32
    %v4823 = vpop.permute.xlu0 %4822
    %4824 = vrot.lane.b32.xlu0 %v4739, 32
    %v4825 = vpop.permute.xlu0 %4824
    %4826 = vrot.lane.b32.xlu0 %v4740, 32
    %v4827 = vpop.permute.xlu0 %4826
    %4828 = vrot.lane.b32.xlu0 %v4741, 32
    %v4829 = vpop.permute.xlu0 %4828
    %4830 = vrot.lane.b32.xlu0 %v4742, 32
    %v4831 = vpop.permute.xlu0 %4830
    %4832 = vrot.lane.b32.xlu0 %v4743, 32
    %v4833 = vpop.permute.xlu0 %4832
    %4834 = vrot.lane.b32.xlu0 %v4744, 32
    %v4835 = vpop.permute.xlu0 %4834
    %4836 = vrot.lane.b32.xlu0 %v4745, 32
    %v4837 = vpop.permute.xlu0 %4836
    %4838 = vrot.lane.b32.xlu0 %v4746, 32
    %v4839 = vpop.permute.xlu0 %4838
    %4840 = vrot.lane.b32.xlu0 %v4747, 32
    %v4841 = vpop.permute.xlu0 %4840
    %4842 = vrot.lane.b32.xlu0 %v4748, 32
    %v4843 = vpop.permute.xlu0 %4842
    %4844 = vrot.lane.b32.xlu0 %v4749, 32
    %v4845 = vpop.permute.xlu0 %4844
    %v4878 = vadd.f32 %v4558, %v4783
    %v4879 = vadd.f32 %v4559, %v4785
    %v4880 = vadd.f32 %v4560, %v4787
    %v4881 = vadd.f32 %v4561, %v4789
    %v4882 = vadd.f32 %v4562, %v4791
    %v4883 = vadd.f32 %v4563, %v4793
    %v4884 = vadd.f32 %v4564, %v4795
    %v4885 = vadd.f32 %v4565, %v4797
    %v4886 = vadd.f32 %v4566, %v4799
    %v4887 = vadd.f32 %v4567, %v4801
    %v4888 = vadd.f32 %v4568, %v4803
    %v4889 = vadd.f32 %v4569, %v4805
    %v4890 = vadd.f32 %v4570, %v4807
    %v4891 = vadd.f32 %v4571, %v4809
    %v4892 = vadd.f32 %v4572, %v4811
    %v4893 = vadd.f32 %v4573, %v4813
    %v4894 = vadd.f32 %v4574, %v4815
    %v4895 = vadd.f32 %v4575, %v4817
    %v4896 = vadd.f32 %v4576, %v4819
    %v4897 = vadd.f32 %v4577, %v4821
    %v4898 = vadd.f32 %v4578, %v4823
    %v4899 = vadd.f32 %v4579, %v4825
    %v4900 = vadd.f32 %v4580, %v4827
    %v4901 = vadd.f32 %v4581, %v4829
    %v4902 = vadd.f32 %v4582, %v4831
    %v4903 = vadd.f32 %v4583, %v4833
    %v4904 = vadd.f32 %v4584, %v4835
    %v4905 = vadd.f32 %v4585, %v4837
    %v4906 = vadd.f32 %v4586, %v4839
    %v4907 = vadd.f32 %v4587, %v4841
    %v4908 = vadd.f32 %v4588, %v4843
    %v4909 = vadd.f32 %v4589, %v4845
    %v4910 = vld [vmem:[%s5] sm:$0x1]
    %v4911 = vld [vmem:[#allocation2] sm:$0x1]
    %4913 = vset.pattern.permute.xlu0 0
    %4914 = vperm.xlu0 %4913, %v4911
    %v4915 = vpop.permute.xlu0 %4914
    %v4917 = vlaneseq
    %v4918 = vshrl.u32 %v4917, 7
    %v4919 = vsub.s32 0, %v4918
    %v4920 = vrot.slane %v4915, %v4919
    %4953 = vrot.lane.b32.xlu0 %v4878, 96
    %v4954 = vpop.permute.xlu0 %4953
    %4955 = vrot.lane.b32.xlu0 %v4879, 96
    %v4956 = vpop.permute.xlu0 %4955
    %4957 = vrot.lane.b32.xlu0 %v4880, 96
    %v4958 = vpop.permute.xlu0 %4957
    %4959 = vrot.lane.b32.xlu0 %v4881, 96
    %v4960 = vpop.permute.xlu0 %4959
    %4961 = vrot.lane.b32.xlu0 %v4882, 96
    %v4962 = vpop.permute.xlu0 %4961
    %4963 = vrot.lane.b32.xlu0 %v4883, 96
    %v4964 = vpop.permute.xlu0 %4963
    %4965 = vrot.lane.b32.xlu0 %v4884, 96
    %v4966 = vpop.permute.xlu0 %4965
    %4967 = vrot.lane.b32.xlu0 %v4885, 96
    %v4968 = vpop.permute.xlu0 %4967
    %4969 = vrot.lane.b32.xlu0 %v4886, 96
    %v4970 = vpop.permute.xlu0 %4969
    %4971 = vrot.lane.b32.xlu0 %v4887, 96
    %v4972 = vpop.permute.xlu0 %4971
    %4973 = vrot.lane.b32.xlu0 %v4888, 96
    %v4974 = vpop.permute.xlu0 %4973
    %4975 = vrot.lane.b32.xlu0 %v4889, 96
    %v4976 = vpop.permute.xlu0 %4975
    %4977 = vrot.lane.b32.xlu0 %v4890, 96
    %v4978 = vpop.permute.xlu0 %4977
    %4979 = vrot.lane.b32.xlu0 %v4891, 96
    %v4980 = vpop.permute.xlu0 %4979
    %4981 = vrot.lane.b32.xlu0 %v4892, 96
    %v4982 = vpop.permute.xlu0 %4981
    %4983 = vrot.lane.b32.xlu0 %v4893, 96
    %v4984 = vpop.permute.xlu0 %4983
    %4985 = vrot.lane.b32.xlu0 %v4894, 96
    %v4986 = vpop.permute.xlu0 %4985
    %4987 = vrot.lane.b32.xlu0 %v4895, 96
    %v4988 = vpop.permute.xlu0 %4987
    %4989 = vrot.lane.b32.xlu0 %v4896, 96
    %v4990 = vpop.permute.xlu0 %4989
    %4991 = vrot.lane.b32.xlu0 %v4897, 96
    %v4992 = vpop.permute.xlu0 %4991
    %4993 = vrot.lane.b32.xlu0 %v4898, 96
    %v4994 = vpop.permute.xlu0 %4993
    %4995 = vrot.lane.b32.xlu0 %v4899, 96
    %v4996 = vpop.permute.xlu0 %4995
    %4997 = vrot.lane.b32.xlu0 %v4900, 96
    %v4998 = vpop.permute.xlu0 %4997
    %4999 = vrot.lane.b32.xlu0 %v4901, 96
    %v5000 = vpop.permute.xlu0 %4999
    %5001 = vrot.lane.b32.xlu0 %v4902, 96
    %v5002 = vpop.permute.xlu0 %5001
    %5003 = vrot.lane.b32.xlu0 %v4903, 96
    %v5004 = vpop.permute.xlu0 %5003
    %5005 = vrot.lane.b32.xlu0 %v4904, 96
    %v5006 = vpop.permute.xlu0 %5005
    %5007 = vrot.lane.b32.xlu0 %v4905, 96
    %v5008 = vpop.permute.xlu0 %5007
    %5009 = vrot.lane.b32.xlu0 %v4906, 96
    %v5010 = vpop.permute.xlu0 %5009
    %5011 = vrot.lane.b32.xlu0 %v4907, 96
    %v5012 = vpop.permute.xlu0 %5011
    %5013 = vrot.lane.b32.xlu0 %v4908, 96
    %v5014 = vpop.permute.xlu0 %5013
    %5015 = vrot.lane.b32.xlu0 %v4909, 96
    %v5016 = vpop.permute.xlu0 %5015
    %v5018 = vsel %vm1027, %v4910, 0
    %v5020 = vsel %vm1027, %v4954, 0
    %v5022 = vsel %vm1027, %v4956, 0
    %v5024 = vsel %vm1027, %v4958, 0
    %v5026 = vsel %vm1027, %v4960, 0
    %v5028 = vsel %vm1027, %v4962, 0
    %v5030 = vsel %vm1027, %v4964, 0
    %v5032 = vsel %vm1027, %v4966, 0
    %v5034 = vsel %vm1027, %v4968, 0
    %v5036 = vsel %vm1027, %v4970, 0
    %v5038 = vsel %vm1027, %v4972, 0
    %v5040 = vsel %vm1027, %v4974, 0
    %v5042 = vsel %vm1027, %v4976, 0
    %v5044 = vsel %vm1027, %v4978, 0
    %v5046 = vsel %vm1027, %v4980, 0
    %v5048 = vsel %vm1027, %v4982, 0
    %v5050 = vsel %vm1027, %v4984, 0
    %v5052 = vsel %vm1027, %v4986, 0
    %v5054 = vsel %vm1027, %v4988, 0
    %v5056 = vsel %vm1027, %v4990, 0
    %v5058 = vsel %vm1027, %v4992, 0
    %v5060 = vsel %vm1027, %v4994, 0
    %v5062 = vsel %vm1027, %v4996, 0
    %v5064 = vsel %vm1027, %v4998, 0
    %v5066 = vsel %vm1027, %v5000, 0
    %v5068 = vsel %vm1027, %v5002, 0
    %v5070 = vsel %vm1027, %v5004, 0
    %v5072 = vsel %vm1027, %v5006, 0
    %v5074 = vsel %vm1027, %v5008, 0
    %v5076 = vsel %vm1027, %v5010, 0
    %v5078 = vsel %vm1027, %v5012, 0
    %v5080 = vsel %vm1027, %v5014, 0
    %v5082 = vsel %vm1027, %v5016, 0
    %5084 = vmatprep.subr.mxu0 0.0
    %5085 = vmatpush1.xpose.msra.mxu0 %v5020
    %5086 = vmatprep.subr.mxu0 0.0
    %5087 = vmatpush1.xpose.msra.mxu0 %v5022
    %5088 = vmatprep.subr.mxu0 0.0
    %5089 = vmatpush1.xpose.msra.mxu0 %v5024
    %5090 = vmatprep.subr.mxu0 0.0
    %5091 = vmatpush1.xpose.msra.mxu0 %v5026
    %5092 = vmatprep.subr.mxu0 0.0
    %5093 = vmatpush1.xpose.msra.mxu0 %v5028
    %5094 = vmatprep.subr.mxu0 0.0
    %5095 = vmatpush1.xpose.msra.mxu0 %v5030
    %5096 = vmatprep.subr.mxu0 0.0
    %5097 = vmatpush1.xpose.msra.mxu0 %v5032
    %5098 = vmatprep.subr.mxu0 0.0
    %5099 = vmatpush1.xpose.msra.mxu0 %v5034
    %5100 = vmatprep.subr.mxu0 0.0
    %5101 = vmatpush1.xpose.msra.mxu0 %v5036
    %5102 = vmatprep.subr.mxu0 0.0
    %5103 = vmatpush1.xpose.msra.mxu0 %v5038
    %5104 = vmatprep.subr.mxu0 0.0
    %5105 = vmatpush1.xpose.msra.mxu0 %v5040
    %5106 = vmatprep.subr.mxu0 0.0
    %5107 = vmatpush1.xpose.msra.mxu0 %v5042
    %5108 = vmatprep.subr.mxu0 0.0
    %5109 = vmatpush1.xpose.msra.mxu0 %v5044
    %5110 = vmatprep.subr.mxu0 0.0
    %5111 = vmatpush1.xpose.msra.mxu0 %v5046
    %5112 = vmatprep.subr.mxu0 0.0
    %5113 = vmatpush1.xpose.msra.mxu0 %v5048
    %5114 = vmatprep.subr.mxu0 0.0
    %5115 = vmatpush1.xpose.msra.mxu0 %v5050
    %5116 = vmatprep.subr.mxu0 0.0
    %5117 = vmatpush1.xpose.msra.mxu0 %v5052
    %5118 = vmatprep.subr.mxu0 0.0
    %5119 = vmatpush1.xpose.msra.mxu0 %v5054
    %5120 = vmatprep.subr.mxu0 0.0
    %5121 = vmatpush1.xpose.msra.mxu0 %v5056
    %5122 = vmatprep.subr.mxu0 0.0
    %5123 = vmatpush1.xpose.msra.mxu0 %v5058
    %5124 = vmatprep.subr.mxu0 0.0
    %5125 = vmatpush1.xpose.msra.mxu0 %v5060
    %5126 = vmatprep.subr.mxu0 0.0
    %5127 = vmatpush1.xpose.msra.mxu0 %v5062
    %5128 = vmatprep.subr.mxu0 0.0
    %5129 = vmatpush1.xpose.msra.mxu0 %v5064
    %5130 = vmatprep.subr.mxu0 0.0
    %5131 = vmatpush1.xpose.msra.mxu0 %v5066
    %5132 = vmatprep.subr.mxu0 0.0
    %5133 = vmatpush1.xpose.msra.mxu0 %v5068
    %5134 = vmatprep.subr.mxu0 0.0
    %5135 = vmatpush1.xpose.msra.mxu0 %v5070
    %5136 = vmatprep.subr.mxu0 0.0
    %5137 = vmatpush1.xpose.msra.mxu0 %v5072
    %5138 = vmatprep.subr.mxu0 0.0
    %5139 = vmatpush1.xpose.msra.mxu0 %v5074
    %5140 = vmatprep.subr.mxu0 0.0
    %5141 = vmatpush1.xpose.msra.mxu0 %v5076
    %5142 = vmatprep.subr.mxu0 0.0
    %5143 = vmatpush1.xpose.msra.mxu0 %v5078
    %5144 = vmatprep.subr.mxu0 0.0
    %5145 = vmatpush1.xpose.msra.mxu0 %v5080
    %5146 = vmatprep.subr.mxu0 0.0
    %5147 = vmatpush1.xpose.msra.mxu0 %v5082
    %5148 = vmatprep.mubr.f32.mxu0 0.0
    %5149 = vmatmul.mubr.f32.gmra.mrb[0].mxu0 %v5018
    %v5150 = vpop.f32.mrb[0].mxu0
    %v5151 = vadd.f32 %v4920, %v5150
    %v5152 = vpop.f32.mrb[0].mxu0
    %v5153 = vadd.f32 %v4920, %v5152
    %5154 = vdwg.mxu0
    %v5157 = vcombine.low %v5151, %v5153
    %v5159 = vunpack.c.l.s4 1966171168
    %v5160 = vunpack.c.0.s8 %v5159
    %v5161 = vlaneseq
    %v5162 = vshrl.u32 %v5161, 7
    %v5163 = vsub.s32 %v5160, %v5162
    %v5164 = vrot.slane %v5157, %v5163
    %v5166 = vunpack.c.l.s4 1966171168
    %v5167 = vunpack.c.0.s8 %v5166
    %v5168 = vlaneseq
    %v5169 = vshrl.u32 %v5168, 7
    %v5170 = vsub.s32 %v5167, %v5169
    %v5171 = vrot.slane %v5164, %v5170
    %v5173 = vlaneseq
    %vm5174 = vcmp.ge.s32.totalorder %v5173, 0
    %vm5175 = vcmp.lt.s32.totalorder %v5173, 256
    %vm5176 = vmand %vm5174, %vm5175
    %5177 = vst.msk [vmem:[#allocation3] sm:$0x3] %vm5176, %v5171
    // Predicated region
    $region30: #{tpu_custom_call.1} parent=1 // pred_check
      _
    $region31: #{tpu_custom_call.1} parent=1 // pred_check_branch
      %5179 = sbr.rel (0) target = $region33
    $region32: #{tpu_custom_call.1} parent=1 // pred_region
      %s5181 = ssub.s32 32, 32
      %5182 = vsyncadd [#allocation4], %s5181
      %s5184 = sshll.u32 [#allocation3], 4
      %s5185 = int_to_ptr.vmem [resolvable:$true] %s5184
      %5187 = dma.vmem_to_hbm [thread:$0]  %s5185, 32, %s7, [#allocation4]
    $region33: #{tpu_custom_call.1} parent=1 // pred_fallthru
      _
    // Predicated region
    $region34: #{tpu_custom_call.1} parent=1 // pred_check
      _
    $region35: #{tpu_custom_call.1} parent=1 // pred_check_branch
      %5189 = sbr.rel (0) target = $region37
    $region36: #{tpu_custom_call.1} parent=1 // pred_region
      %5190 = dma.done [#allocation4], 32
    $region37: #{tpu_custom_call.1} parent=1 // pred_fallthru
      _
    %5191 = vsyncpa [#allocation4], 1

</llo_original>
